<compile_context>
chip_gen: v5e
topology: v5e:2x2
jax: 0.10.0
libtpu: 0.0.40
codegen_flags: <defaults>
</compile_context>

<pallas_src>
import functools

import jax
import jax.numpy as jnp
from jax.experimental import pallas as pl
from jax.experimental.pallas import tpu as pltpu

SQRT_HALF = 0.70710678118


# --------------------------------------------------------------------------- kernel
def wavenet_kernel(
    x_ref, cond_ref,
    win_ref, bin_ref,          # [Cin, P] bf16, [1, P] f32         input 1x1 conv
    wtap_ref,                  # [N*k, P, 2P] bf16                 per-tap filter|gate
    wcond_ref, bfg_ref,        # [N, 80, 2P] bf16, [N, 1, 2P] f32  cond proj (+folded biases)
    wrs_ref, brs_ref,          # [N, P, 2P] bf16, [N, 1, 2P] f32   residual|skip
    wo1_ref, bo1_ref, wo2_ref, bo2_ref,
    out_ref,
    *, dilations, kernel_size,
):
    f32, bf16 = jnp.float32, jnp.bfloat16
    Bt, T, Cin = x_ref.shape
    M = Bt * T                      # batch folded into the matmul M dimension
    P = win_ref.shape[1]            # lane-aligned channel group width (>=128)
    k = kernel_size

    def mm(a, w):                   # bf16 operands into the MXU, f32 accumulation
        return jnp.dot(a.astype(bf16), w, preferred_element_type=f32)

    x = x_ref[...].reshape(M, Cin)                       # bf16, no upcast
    cond = cond_ref[...].reshape(M, cond_ref.shape[2])   # bf16

    # hoisted: one [M,1] causal mask per distinct shift (row index only, broadcast later)
    shift_set = sorted({(k - 1 - j) * d for d in dilations for j in range(k - 1)} - {0})
    masks = {}
    if shift_set:
        tmod = jax.lax.broadcasted_iota(jnp.int32, (M, 1), 0) % T
        masks = {s: (tmod >= s) for s in shift_set}

    # ---- input 1x1 conv; h is carried zero-padded in cols C:P
    h = mm(x, win_ref[...]) + bin_ref[...]                # [M, P] f32

    skip_sum = None
    for blk, d in enumerate(dilations):
        # fg[:, :P]  = filter pre-activation, fg[:, P:] = gate pre-activation.
        # Unshifted tap (j = k-1) carries both the last filter tap AND the 1x1 gate conv.
        fg = (mm(h, wtap_ref[blk * k + (k - 1)])
              + mm(cond, wcond_ref[blk])
              + bfg_ref[blk])                             # [M, 2P] f32
        for j in range(k - 1):
            shift = (k - 1 - j) * d
            if shift == 0:
                fg += mm(h, wtap_ref[blk * k + j])
            else:
                # pltpu.roll has jnp.roll semantics: rolled[t] = h[t - shift]; rows whose
                # LOCAL time index < shift are wrap-around garbage and are zeroed
                # (== the causal left pad), including across folded-batch boundaries.
                tap = jnp.where(masks[shift], pltpu.roll(h, shift, axis=0), 0.0)
                fg += mm(tap, wtap_ref[blk * k + j])

        gate = 0.5 * (jnp.tanh(0.5 * fg[:, P:]) + 1.0)    # sigmoid via one tanh (EUP)
        out = jnp.tanh(fg[:, :P]) * gate                  # padded cols stay exactly 0

        rs = mm(out, wrs_ref[blk]) + brs_ref[blk]         # [M, 2P]: res | skip
        h = (h + rs[:, :P]) * SQRT_HALF
        skip = rs[:, P:]
        skip_sum = skip if skip_sum is None else skip_sum + skip

    # ---- output head (final store is lane-dense: 256 output channels)
    y = jnp.maximum(mm(skip_sum, wo1_ref[...]) + bo1_ref[...], 0.0)
    y = mm(y, wo2_ref[...]) + bo2_ref[...]
    out_ref[...] = y.reshape(Bt, T, y.shape[1]).astype(out_ref.dtype)


# --------------------------------------------------------------------------- param prep
_PARAM_ORDER = ("win", "bin", "wtap", "wcond", "bfg", "wrs", "brs",
                "wo1", "bo1", "wo2", "bo2")


def prepare_params(p):
    """One-time fusion of the per-layer Conv1d weights into lane-aligned matmul operands.

    Call this ONCE (outside the per-step path) and reuse the result for every forward.
    Weights are bf16 (MXU-native); biases stay f32 and are added in f32 on the VPU.
    All output-column groups are padded to 128-lane boundaries so every in-kernel slice
    is vreg-aligned (filter @ 0:C, gate @ P:P+C, residual @ 0:C, skip @ P:P+S).
    """
    f32, bf16 = jnp.float32, jnp.bfloat16
    N, k, C, _ = p["wdil"].shape
    S = p["wskip"].shape[2]
    Cin = p["win"].shape[0]
    Ccond = p["wcond"].shape[1]
    out_ch = p["wo2"].shape[1]
    P = 128 * (-(-max(C, S) // 128))          # lane-aligned group width

    # input conv: [Cin, P]
    win = jnp.zeros((Cin, P), f32).at[:, :C].set(p["win"])
    bin_ = jnp.zeros((1, P), f32).at[:, :C].set(p["bin"])

    # per-tap fused filter|gate weights: [N, k, P, 2P] -> [N*k, P, 2P]
    #   tap j carries wdil[:, j] at cols 0:C; the LAST tap (unshifted input) also
    #   carries the 1x1 gate conv at cols P:P+C.
    wtap = jnp.zeros((N, k, P, 2 * P), f32)
    for j in range(k):
        wtap = wtap.at[:, j, :C, :C].set(p["wdil"][:, j])
    wtap = wtap.at[:, k - 1, :C, P:P + C].set(p["wgate"])
    wtap = wtap.reshape(N * k, P, 2 * P)

    # conditioning projection per block (biases of dil/gate/cond convs folded in)
    wcond = jnp.zeros((N, Ccond, 2 * P), f32)
    wcond = wcond.at[:, :, :C].set(p["wcond"])
    wcond = wcond.at[:, :, P:P + C].set(p["wcondg"])
    bfg = jnp.zeros((N, 1, 2 * P), f32)
    bfg = bfg.at[:, :, :C].set(p["bdil"] + p["bcond"])
    bfg = bfg.at[:, :, P:P + C].set(p["bgate"] + p["bcondg"])

    # fused residual|skip
    wrs = jnp.zeros((N, P, 2 * P), f32)
    wrs = wrs.at[:, :C, :C].set(p["wres"])
    wrs = wrs.at[:, :C, P:P + S].set(p["wskip"])
    brs = jnp.zeros((N, 1, 2 * P), f32)
    brs = brs.at[:, :, :C].set(p["bres"])
    brs = brs.at[:, :, P:P + S].set(p["bskip"])

    # output head
    wo1 = jnp.zeros((P, P), f32).at[:S, :S].set(p["wo1"])
    bo1 = jnp.zeros((1, P), f32).at[:, :S].set(p["bo1"])
    wo2 = jnp.zeros((P, out_ch), f32).at[:S, :].set(p["wo2"])
    bo2 = p["bo2"].astype(f32)

    return {
        "win": win.astype(bf16), "bin": bin_,
        "wtap": wtap.astype(bf16),
        "wcond": wcond.astype(bf16), "bfg": bfg,
        "wrs": wrs.astype(bf16), "brs": brs,
        "wo1": wo1.astype(bf16), "bo1": bo1,
        "wo2": wo2.astype(bf16), "bo2": bo2,
    }


# --------------------------------------------------------------------------- tiling helpers
def _vmem_budget_bytes():
    """~75% of detected VMEM; conservative 64 MiB (v7x) assumption if unqueryable."""
    try:
        cap = int(pltpu.get_tpu_info().vmem_capacity_bytes)
    except Exception:
        cap = 64 * 1024 * 1024
    return min(cap * 3 // 4, 100 * 1024 * 1024)


def _pick_batch_tile(B, T, vmem_budget):
    bytes_per_row = 12 * 1024              # conservative f32-intermediate estimate (P=128)
    rows_cap = max(8, min(2048, vmem_budget // bytes_per_row))
    bt = max(1, min(B, rows_cap // T))
    if B >= 2:
        bt = max(1, min(bt, B // 2))       # >=2 parallel grid steps -> both v7x TCs busy
    while B % bt:
        bt -= 1
    return bt


# --------------------------------------------------------------------------- wrapper
def wavenet_forward(x, cond, fused, dilations, kernel_size, *,
                    batch_tile=None, out_dtype=jnp.float32):
    """x: [B,T,256], cond: [B,T,80] (any float dtype; consumed as bf16).
    `fused` is the output of prepare_params() — compute it once and reuse it."""
    B, T, Cin = x.shape
    Ccond = cond.shape[2]
    out_ch = fused["wo2"].shape[1]
    plist = [fused[n] for n in _PARAM_ORDER]

    x = x.astype(jnp.bfloat16)
    cond = cond.astype(jnp.bfloat16)

    vmem_budget = _vmem_budget_bytes()
    if batch_tile is None:
        batch_tile = _pick_batch_tile(B, T, vmem_budget)
    assert B % batch_tile == 0
    grid = (B // batch_tile,)

    def full_spec(arr):
        zeros = (0,) * arr.ndim
        return pl.BlockSpec(arr.shape, lambda g, _z=zeros: _z)

    in_specs = [
        pl.BlockSpec((batch_tile, T, Cin), lambda g: (g, 0, 0)),
        pl.BlockSpec((batch_tile, T, Ccond), lambda g: (g, 0, 0)),
    ] + [full_spec(p) for p in plist]
    out_specs = pl.BlockSpec((batch_tile, T, out_ch), lambda g: (g, 0, 0))

    kern = functools.partial(
        wavenet_kernel, dilations=tuple(dilations), kernel_size=kernel_size)

    # TODO(synk): add a time-tile grid axis (left-pad x/cond by the receptive field
    # (k-1)*sum(dilations) and fetch overlapped windows via manual DMA) so very long
    # sequences fit v7x's 64 MiB VMEM and both TCs stay busy even at B=1.
    return pl.pallas_call(
        kern,
        out_shape=jax.ShapeDtypeStruct((B, T, out_ch), out_dtype),
        grid_spec=pltpu.PrefetchScalarGridSpec(
            num_scalar_prefetch=0,
            grid=grid,
            in_specs=in_specs,
            out_specs=out_specs,
        ),
        compiler_params=pltpu.CompilerParams(
            dimension_semantics=("parallel",),
            vmem_limit_bytes=int(vmem_budget),
        ),
    )(x, cond, *plist)


# --------------------------------------------------------------------------- reference
def wavenet_reference(x, cond, p, dilations, kernel_size, mxu_dtype=jnp.float32):
    """Pure-JAX forward matching the PyTorch module (channels-last layout).

    mxu_dtype=jnp.bfloat16 mirrors the kernel's MXU input precision (bf16 operands,
    f32 accumulation) for a tight structural comparison.
    """
    f32 = jnp.float32

    def mm(a, w):
        return jnp.einsum("btc,cd->btd", a.astype(mxu_dtype), w.astype(mxu_dtype),
                          preferred_element_type=f32)

    T = x.shape[1]
    h = mm(x, p["win"]) + p["bin"]
    skip_sum = 0.0
    for blk, d in enumerate(dilations):
        acc = 0.0
        for j in range(kernel_size):
            shift = (kernel_size - 1 - j) * d
            xs = jnp.pad(h, ((0, 0), (shift, 0), (0, 0)))[:, :T, :]
            acc = acc + mm(xs, p["wdil"][blk, j])
        h_f = acc + p["bdil"][blk] + mm(cond, p["wcond"][blk]) + p["bcond"][blk]
        h_g = (mm(h, p["wgate"][blk]) + p["bgate"][blk]
               + mm(cond, p["wcondg"][blk]) + p["bcondg"][blk])
        out = jnp.tanh(h_f) * jax.nn.sigmoid(h_g)
        res = mm(out, p["wres"][blk]) + p["bres"][blk]
        skip = mm(out, p["wskip"][blk]) + p["bskip"][blk]
        h = (h + res) * SQRT_HALF
        skip_sum = skip_sum + skip
    y = jax.nn.relu(mm(skip_sum, p["wo1"]) + p["bo1"])
    y = mm(y, p["wo2"]) + p["bo2"]
    return y


# --------------------------------------------------------------------------- main
if __name__ == "__main__":
    # WaveNet(layers=3, blocks=2, residual_channels=32, skip_channels=32, kernel_size=2)
    layers, blocks = 3, 2
    residual_channels, skip_channels, kernel_size = 32, 32, 2
    in_channels, cond_channels = 256, 80
    B, T = 2, 64
    dilations = [2 ** l for _ in range(blocks) for l in range(layers)]
    N = len(dilations)
    C, S = residual_channels, skip_channels

    key = jax.random.PRNGKey(0)
    keys = iter(jax.random.split(key, 64))

    def w(shape, scale=0.1):
        return (scale * jax.random.normal(next(keys), shape)).astype(jnp.float32)

    params = {
        "win":   w((in_channels, C)),       "bin":   w((1, C)),
        "wdil":  w((N, kernel_size, C, C)), "bdil":  w((N, 1, C)),
        "wgate": w((N, C, C)),              "bgate": w((N, 1, C)),
        "wcond": w((N, cond_channels, C)),  "bcond": w((N, 1, C)),
        "wcondg": w((N, cond_channels, C)), "bcondg": w((N, 1, C)),
        "wres":  w((N, C, C)),              "bres":  w((N, 1, C)),
        "wskip": w((N, C, S)),              "bskip": w((N, 1, S)),
        "wo1":   w((S, S)),                 "bo1":   w((1, S)),
        "wo2":   w((S, 256)),               "bo2":   w((1, 256)),
    }

    # One-time fused-weight precompute (kept out of the per-call path).
    fused = prepare_params(params)
    fused = {k_: jax.block_until_ready(v) for k_, v in fused.items()}

    # inputs (channels-last layout, see the layout comment at the top)
    kx, kc = jax.random.split(jax.random.PRNGKey(1))
    x = jax.random.normal(kx, (B, T, in_channels), dtype=jnp.float32)
    cond = jax.random.normal(kc, (B, T, cond_channels), dtype=jnp.float32)
    x_bf = x.astype(jnp.bfloat16)
    cond_bf = cond.astype(jnp.bfloat16)

    out = jax.block_until_ready(
        wavenet_forward(x_bf, cond_bf, fused, dilations, kernel_size))
    assert out.shape == (B, T, 256), out.shape

    # Tight check vs a reference that mirrors the kernel's MXU input precision (bf16
    # operands, f32 accumulation): verifies fusion / lane-padding / causal masking.
    ref_bf16 = jax.block_until_ready(
        wavenet_reference(x, cond, params, dilations, kernel_size, mxu_dtype=jnp.bfloat16))
    assert jnp.allclose(out, ref_bf16, atol=1e-2, rtol=1e-2), (
        float(jnp.max(jnp.abs(out - ref_bf16))))

    # Loose sanity bound vs the full-f32 reference (bounds bf16 quantization error).
    ref_f32 = jax.block_until_ready(
        wavenet_reference(x, cond, params, dilations, kernel_size))
    assert jnp.allclose(out, ref_f32, atol=8e-2, rtol=8e-2), (
        float(jnp.max(jnp.abs(out - ref_f32))))

    print("KERNEL_OK")
</pallas_src>

<mosaic_0001>
module attributes {stable_mosaic.version = 11 : i64} {
  func.func @wavenet_kernel(%arg0: i32, %arg1: memref<1x64x256xbf16, #tpu.memory_space<vmem>>, %arg2: memref<1x64x80xbf16, #tpu.memory_space<vmem>>, %arg3: memref<256x128xbf16, #tpu.memory_space<vmem>>, %arg4: memref<1x128xf32, #tpu.memory_space<vmem>>, %arg5: memref<12x128x256xbf16, #tpu.memory_space<vmem>>, %arg6: memref<6x80x256xbf16, #tpu.memory_space<vmem>>, %arg7: memref<6x1x256xf32, #tpu.memory_space<vmem>>, %arg8: memref<6x128x256xbf16, #tpu.memory_space<vmem>>, %arg9: memref<6x1x256xf32, #tpu.memory_space<vmem>>, %arg10: memref<128x128xbf16, #tpu.memory_space<vmem>>, %arg11: memref<1x128xf32, #tpu.memory_space<vmem>>, %arg12: memref<128x256xbf16, #tpu.memory_space<vmem>>, %arg13: memref<1x256xf32, #tpu.memory_space<vmem>>, %arg14: memref<1x64x256xf32, #tpu.memory_space<vmem>>) attributes {dimension_semantics = [#tpu.dimension_semantics<parallel>], iteration_bounds = array<i64: 2>, scalar_prefetch = 0 : i64, scratch_operands = 0 : i64, tpu.core_type = #tpu.core_type<tc>, window_params = [{transform_indices = @transform_0, window_bounds = array<i64: 1, 64, 256>}, {transform_indices = @transform_1, window_bounds = array<i64: 1, 64, 80>}, {pipeline_mode = #tpu.pipeline_mode<synchronous>, transform_indices = @transform_2, window_bounds = array<i64: 256, 128>}, {pipeline_mode = #tpu.pipeline_mode<synchronous>, transform_indices = @transform_3, window_bounds = array<i64: 1, 128>}, {pipeline_mode = #tpu.pipeline_mode<synchronous>, transform_indices = @transform_4, window_bounds = array<i64: 12, 128, 256>}, {pipeline_mode = #tpu.pipeline_mode<synchronous>, transform_indices = @transform_5, window_bounds = array<i64: 6, 80, 256>}, {pipeline_mode = #tpu.pipeline_mode<synchronous>, transform_indices = @transform_6, window_bounds = array<i64: 6, 1, 256>}, {pipeline_mode = #tpu.pipeline_mode<synchronous>, transform_indices = @transform_7, window_bounds = array<i64: 6, 128, 256>}, {pipeline_mode = #tpu.pipeline_mode<synchronous>, transform_indices = @transform_8, window_bounds = array<i64: 6, 1, 256>}, {pipeline_mode = #tpu.pipeline_mode<synchronous>, transform_indices = @transform_9, window_bounds = array<i64: 128, 128>}, {pipeline_mode = #tpu.pipeline_mode<synchronous>, transform_indices = @transform_10, window_bounds = array<i64: 1, 128>}, {pipeline_mode = #tpu.pipeline_mode<synchronous>, transform_indices = @transform_11, window_bounds = array<i64: 128, 256>}, {pipeline_mode = #tpu.pipeline_mode<synchronous>, transform_indices = @transform_12, window_bounds = array<i64: 1, 256>}, {transform_indices = @transform_13, window_bounds = array<i64: 1, 64, 256>}]} {
    %c0 = arith.constant 0 : index
    %c0_0 = arith.constant 0 : index
    %c0_1 = arith.constant 0 : index
    %0 = vector.load %arg1[%c0, %c0_0, %c0_1] : memref<1x64x256xbf16, #tpu.memory_space<vmem>>, vector<1x64x256xbf16>
    %1 = vector.shape_cast %0 : vector<1x64x256xbf16> to vector<64x256xbf16>
    %c0_2 = arith.constant 0 : index
    %c0_3 = arith.constant 0 : index
    %c0_4 = arith.constant 0 : index
    %2 = vector.load %arg2[%c0_2, %c0_3, %c0_4] : memref<1x64x80xbf16, #tpu.memory_space<vmem>>, vector<1x64x80xbf16>
    %3 = vector.shape_cast %2 : vector<1x64x80xbf16> to vector<64x80xbf16>
    %4 = tpu.iota {dimensions = array<i32: 0>} : vector<64x1xi32>
    %c64_i32 = arith.constant 64 : i32
    %c0_i32 = arith.constant 0 : i32
    %5 = arith.cmpi eq, %c64_i32, %c0_i32 : i32
    %c1_i32 = arith.constant 1 : i32
    %6 = arith.select %5, %c1_i32, %c64_i32 : i32
    %7 = vector.broadcast %6 : i32 to vector<64x1xi32>
    %8 = arith.remsi %4, %7 : vector<64x1xi32>
    %c0_i32_5 = arith.constant 0 : i32
    %9 = vector.broadcast %c0_i32_5 : i32 to vector<64x1xi32>
    %10 = arith.cmpi ne, %8, %9 : vector<64x1xi32>
    %c0_i32_6 = arith.constant 0 : i32
    %11 = vector.broadcast %c0_i32_6 : i32 to vector<64x1xi32>
    %12 = arith.cmpi slt, %8, %11 : vector<64x1xi32>
    %c0_i32_7 = arith.constant 0 : i32
    %13 = arith.cmpi slt, %6, %c0_i32_7 : i32
    %14 = vector.broadcast %13 : i1 to vector<64x1xi1>
    %15 = vector.broadcast %14 : vector<64x1xi1> to vector<64x1xi1>
    %16 = arith.xori %12, %15 : vector<64x1xi1>
    %17 = arith.andi %16, %10 : vector<64x1xi1>
    %18 = vector.broadcast %6 : i32 to vector<64x1xi32>
    %19 = arith.addi %8, %18 : vector<64x1xi32>
    %20 = arith.select %17, %19, %8 : vector<64x1xi1>, vector<64x1xi32>
    %c1_i32_8 = arith.constant 1 : i32
    %21 = vector.broadcast %c1_i32_8 : i32 to vector<64x1xi32>
    %22 = arith.cmpi sge, %20, %21 : vector<64x1xi32>
    %c2_i32 = arith.constant 2 : i32
    %23 = vector.broadcast %c2_i32 : i32 to vector<64x1xi32>
    %24 = arith.cmpi sge, %20, %23 : vector<64x1xi32>
    %c4_i32 = arith.constant 4 : i32
    %25 = vector.broadcast %c4_i32 : i32 to vector<64x1xi32>
    %26 = arith.cmpi sge, %20, %25 : vector<64x1xi32>
    %c0_9 = arith.constant 0 : index
    %c0_10 = arith.constant 0 : index
    %27 = vector.load %arg3[%c0_9, %c0_10] : memref<256x128xbf16, #tpu.memory_space<vmem>>, vector<256x128xbf16>
    %cst = arith.constant dense<0.000000e+00> : vector<64x128xf32>
    %28 = tpu.matmul %1, %27, %cst {dimension_numbers = #tpu.dot_dimension_numbers<[1], [0], [0], [1], [0, 0, 1, 1], [], []>} : vector<64x256xbf16>, vector<256x128xbf16>, vector<64x128xf32> -> vector<64x128xf32>
    %c0_11 = arith.constant 0 : index
    %c0_12 = arith.constant 0 : index
    %29 = vector.load %arg4[%c0_11, %c0_12] : memref<1x128xf32, #tpu.memory_space<vmem>>, vector<1x128xf32>
    %30 = vector.broadcast %29 : vector<1x128xf32> to vector<64x128xf32>
    %31 = arith.addf %28, %30 : vector<64x128xf32>
    %c1 = arith.constant 1 : index
    %c0_13 = arith.constant 0 : index
    %c0_14 = arith.constant 0 : index
    %32 = vector.load %arg5[%c1, %c0_13, %c0_14] : memref<12x128x256xbf16, #tpu.memory_space<vmem>>, vector<1x128x256xbf16>
    %33 = vector.shape_cast %32 : vector<1x128x256xbf16> to vector<128x256xbf16>
    %34 = arith.truncf %31 : vector<64x128xf32> to vector<64x128xbf16>
    %cst_15 = arith.constant dense<0.000000e+00> : vector<64x256xf32>
    %35 = tpu.matmul %34, %33, %cst_15 {dimension_numbers = #tpu.dot_dimension_numbers<[1], [0], [0], [1], [0, 0, 1, 1], [], []>} : vector<64x128xbf16>, vector<128x256xbf16>, vector<64x256xf32> -> vector<64x256xf32>
    %c0_16 = arith.constant 0 : index
    %c0_17 = arith.constant 0 : index
    %c0_18 = arith.constant 0 : index
    %36 = vector.load %arg6[%c0_16, %c0_17, %c0_18] : memref<6x80x256xbf16, #tpu.memory_space<vmem>>, vector<1x80x256xbf16>
    %37 = vector.shape_cast %36 : vector<1x80x256xbf16> to vector<80x256xbf16>
    %cst_19 = arith.constant dense<0.000000e+00> : vector<64x256xf32>
    %38 = tpu.matmul %3, %37, %cst_19 {dimension_numbers = #tpu.dot_dimension_numbers<[1], [0], [0], [1], [0, 0, 1, 1], [], []>} : vector<64x80xbf16>, vector<80x256xbf16>, vector<64x256xf32> -> vector<64x256xf32>
    %39 = arith.addf %35, %38 : vector<64x256xf32>
    %c0_20 = arith.constant 0 : index
    %c0_21 = arith.constant 0 : index
    %c0_22 = arith.constant 0 : index
    %40 = vector.load %arg7[%c0_20, %c0_21, %c0_22] : memref<6x1x256xf32, #tpu.memory_space<vmem>>, vector<1x1x256xf32>
    %41 = vector.shape_cast %40 : vector<1x1x256xf32> to vector<1x256xf32>
    %42 = vector.broadcast %41 : vector<1x256xf32> to vector<64x256xf32>
    %43 = arith.addf %39, %42 : vector<64x256xf32>
    %c1_i32_23 = arith.constant 1 : i32
    %44 = tpu.dynamic_rotate %31 by %c1_i32_23 dim 0 : vector<64x128xf32>, i32 -> vector<64x128xf32>
    %cst_24 = arith.constant 0.000000e+00 : f32
    %45 = vector.shape_cast %22 : vector<64x1xi1> to vector<64x1xi1>
    %46 = vector.broadcast %45 : vector<64x1xi1> to vector<64x128xi1>
    %47 = vector.broadcast %cst_24 : f32 to vector<64x128xf32>
    %48 = arith.select %46, %44, %47 : vector<64x128xi1>, vector<64x128xf32>
    %c0_25 = arith.constant 0 : index
    %c0_26 = arith.constant 0 : index
    %c0_27 = arith.constant 0 : index
    %49 = vector.load %arg5[%c0_25, %c0_26, %c0_27] : memref<12x128x256xbf16, #tpu.memory_space<vmem>>, vector<1x128x256xbf16>
    %50 = vector.shape_cast %49 : vector<1x128x256xbf16> to vector<128x256xbf16>
    %51 = arith.truncf %48 : vector<64x128xf32> to vector<64x128xbf16>
    %cst_28 = arith.constant dense<0.000000e+00> : vector<64x256xf32>
    %52 = tpu.matmul %51, %50, %cst_28 {dimension_numbers = #tpu.dot_dimension_numbers<[1], [0], [0], [1], [0, 0, 1, 1], [], []>} : vector<64x128xbf16>, vector<128x256xbf16>, vector<64x256xf32> -> vector<64x256xf32>
    %53 = arith.addf %43, %52 : vector<64x256xf32>
    %54 = vector.extract_strided_slice %53 {offsets = [0, 128], sizes = [64, 128], strides = [1, 1]} : vector<64x256xf32> to vector<64x128xf32>
    %cst_29 = arith.constant 5.000000e-01 : f32
    %55 = vector.broadcast %cst_29 : f32 to vector<64x128xf32>
    %56 = arith.mulf %55, %54 : vector<64x128xf32>
    %57 = math.tanh %56 : vector<64x128xf32>
    %cst_30 = arith.constant 1.000000e+00 : f32
    %58 = vector.broadcast %cst_30 : f32 to vector<64x128xf32>
    %59 = arith.addf %57, %58 : vector<64x128xf32>
    %cst_31 = arith.constant 5.000000e-01 : f32
    %60 = vector.broadcast %cst_31 : f32 to vector<64x128xf32>
    %61 = arith.mulf %60, %59 : vector<64x128xf32>
    %62 = vector.extract_strided_slice %53 {offsets = [0, 0], sizes = [64, 128], strides = [1, 1]} : vector<64x256xf32> to vector<64x128xf32>
    %63 = math.tanh %62 : vector<64x128xf32>
    %64 = arith.mulf %63, %61 : vector<64x128xf32>
    %c0_32 = arith.constant 0 : index
    %c0_33 = arith.constant 0 : index
    %c0_34 = arith.constant 0 : index
    %65 = vector.load %arg8[%c0_32, %c0_33, %c0_34] : memref<6x128x256xbf16, #tpu.memory_space<vmem>>, vector<1x128x256xbf16>
    %66 = vector.shape_cast %65 : vector<1x128x256xbf16> to vector<128x256xbf16>
    %67 = arith.truncf %64 : vector<64x128xf32> to vector<64x128xbf16>
    %cst_35 = arith.constant dense<0.000000e+00> : vector<64x256xf32>
    %68 = tpu.matmul %67, %66, %cst_35 {dimension_numbers = #tpu.dot_dimension_numbers<[1], [0], [0], [1], [0, 0, 1, 1], [], []>} : vector<64x128xbf16>, vector<128x256xbf16>, vector<64x256xf32> -> vector<64x256xf32>
    %c0_36 = arith.constant 0 : index
    %c0_37 = arith.constant 0 : index
    %c0_38 = arith.constant 0 : index
    %69 = vector.load %arg9[%c0_36, %c0_37, %c0_38] : memref<6x1x256xf32, #tpu.memory_space<vmem>>, vector<1x1x256xf32>
    %70 = vector.shape_cast %69 : vector<1x1x256xf32> to vector<1x256xf32>
    %71 = vector.broadcast %70 : vector<1x256xf32> to vector<64x256xf32>
    %72 = arith.addf %68, %71 : vector<64x256xf32>
    %73 = vector.extract_strided_slice %72 {offsets = [0, 0], sizes = [64, 128], strides = [1, 1]} : vector<64x256xf32> to vector<64x128xf32>
    %74 = arith.addf %31, %73 : vector<64x128xf32>
    %cst_39 = arith.constant 0.707106769 : f32
    %75 = vector.broadcast %cst_39 : f32 to vector<64x128xf32>
    %76 = arith.mulf %74, %75 : vector<64x128xf32>
    %77 = vector.extract_strided_slice %72 {offsets = [0, 128], sizes = [64, 128], strides = [1, 1]} : vector<64x256xf32> to vector<64x128xf32>
    %c3 = arith.constant 3 : index
    %c0_40 = arith.constant 0 : index
    %c0_41 = arith.constant 0 : index
    %78 = vector.load %arg5[%c3, %c0_40, %c0_41] : memref<12x128x256xbf16, #tpu.memory_space<vmem>>, vector<1x128x256xbf16>
    %79 = vector.shape_cast %78 : vector<1x128x256xbf16> to vector<128x256xbf16>
    %80 = arith.truncf %76 : vector<64x128xf32> to vector<64x128xbf16>
    %cst_42 = arith.constant dense<0.000000e+00> : vector<64x256xf32>
    %81 = tpu.matmul %80, %79, %cst_42 {dimension_numbers = #tpu.dot_dimension_numbers<[1], [0], [0], [1], [0, 0, 1, 1], [], []>} : vector<64x128xbf16>, vector<128x256xbf16>, vector<64x256xf32> -> vector<64x256xf32>
    %c1_43 = arith.constant 1 : index
    %c0_44 = arith.constant 0 : index
    %c0_45 = arith.constant 0 : index
    %82 = vector.load %arg6[%c1_43, %c0_44, %c0_45] : memref<6x80x256xbf16, #tpu.memory_space<vmem>>, vector<1x80x256xbf16>
    %83 = vector.shape_cast %82 : vector<1x80x256xbf16> to vector<80x256xbf16>
    %cst_46 = arith.constant dense<0.000000e+00> : vector<64x256xf32>
    %84 = tpu.matmul %3, %83, %cst_46 {dimension_numbers = #tpu.dot_dimension_numbers<[1], [0], [0], [1], [0, 0, 1, 1], [], []>} : vector<64x80xbf16>, vector<80x256xbf16>, vector<64x256xf32> -> vector<64x256xf32>
    %85 = arith.addf %81, %84 : vector<64x256xf32>
    %c1_47 = arith.constant 1 : index
    %c0_48 = arith.constant 0 : index
    %c0_49 = arith.constant 0 : index
    %86 = vector.load %arg7[%c1_47, %c0_48, %c0_49] : memref<6x1x256xf32, #tpu.memory_space<vmem>>, vector<1x1x256xf32>
    %87 = vector.shape_cast %86 : vector<1x1x256xf32> to vector<1x256xf32>
    %88 = vector.broadcast %87 : vector<1x256xf32> to vector<64x256xf32>
    %89 = arith.addf %85, %88 : vector<64x256xf32>
    %c2_i32_50 = arith.constant 2 : i32
    %90 = tpu.dynamic_rotate %76 by %c2_i32_50 dim 0 : vector<64x128xf32>, i32 -> vector<64x128xf32>
    %cst_51 = arith.constant 0.000000e+00 : f32
    %91 = vector.shape_cast %24 : vector<64x1xi1> to vector<64x1xi1>
    %92 = vector.broadcast %91 : vector<64x1xi1> to vector<64x128xi1>
    %93 = vector.broadcast %cst_51 : f32 to vector<64x128xf32>
    %94 = arith.select %92, %90, %93 : vector<64x128xi1>, vector<64x128xf32>
    %c2 = arith.constant 2 : index
    %c0_52 = arith.constant 0 : index
    %c0_53 = arith.constant 0 : index
    %95 = vector.load %arg5[%c2, %c0_52, %c0_53] : memref<12x128x256xbf16, #tpu.memory_space<vmem>>, vector<1x128x256xbf16>
    %96 = vector.shape_cast %95 : vector<1x128x256xbf16> to vector<128x256xbf16>
    %97 = arith.truncf %94 : vector<64x128xf32> to vector<64x128xbf16>
    %cst_54 = arith.constant dense<0.000000e+00> : vector<64x256xf32>
    %98 = tpu.matmul %97, %96, %cst_54 {dimension_numbers = #tpu.dot_dimension_numbers<[1], [0], [0], [1], [0, 0, 1, 1], [], []>} : vector<64x128xbf16>, vector<128x256xbf16>, vector<64x256xf32> -> vector<64x256xf32>
    %99 = arith.addf %89, %98 : vector<64x256xf32>
    %100 = vector.extract_strided_slice %99 {offsets = [0, 128], sizes = [64, 128], strides = [1, 1]} : vector<64x256xf32> to vector<64x128xf32>
    %cst_55 = arith.constant 5.000000e-01 : f32
    %101 = vector.broadcast %cst_55 : f32 to vector<64x128xf32>
    %102 = arith.mulf %101, %100 : vector<64x128xf32>
    %103 = math.tanh %102 : vector<64x128xf32>
    %cst_56 = arith.constant 1.000000e+00 : f32
    %104 = vector.broadcast %cst_56 : f32 to vector<64x128xf32>
    %105 = arith.addf %103, %104 : vector<64x128xf32>
    %cst_57 = arith.constant 5.000000e-01 : f32
    %106 = vector.broadcast %cst_57 : f32 to vector<64x128xf32>
    %107 = arith.mulf %106, %105 : vector<64x128xf32>
    %108 = vector.extract_strided_slice %99 {offsets = [0, 0], sizes = [64, 128], strides = [1, 1]} : vector<64x256xf32> to vector<64x128xf32>
    %109 = math.tanh %108 : vector<64x128xf32>
    %110 = arith.mulf %109, %107 : vector<64x128xf32>
    %c1_58 = arith.constant 1 : index
    %c0_59 = arith.constant 0 : index
    %c0_60 = arith.constant 0 : index
    %111 = vector.load %arg8[%c1_58, %c0_59, %c0_60] : memref<6x128x256xbf16, #tpu.memory_space<vmem>>, vector<1x128x256xbf16>
    %112 = vector.shape_cast %111 : vector<1x128x256xbf16> to vector<128x256xbf16>
    %113 = arith.truncf %110 : vector<64x128xf32> to vector<64x128xbf16>
    %cst_61 = arith.constant dense<0.000000e+00> : vector<64x256xf32>
    %114 = tpu.matmul %113, %112, %cst_61 {dimension_numbers = #tpu.dot_dimension_numbers<[1], [0], [0], [1], [0, 0, 1, 1], [], []>} : vector<64x128xbf16>, vector<128x256xbf16>, vector<64x256xf32> -> vector<64x256xf32>
    %c1_62 = arith.constant 1 : index
    %c0_63 = arith.constant 0 : index
    %c0_64 = arith.constant 0 : index
    %115 = vector.load %arg9[%c1_62, %c0_63, %c0_64] : memref<6x1x256xf32, #tpu.memory_space<vmem>>, vector<1x1x256xf32>
    %116 = vector.shape_cast %115 : vector<1x1x256xf32> to vector<1x256xf32>
    %117 = vector.broadcast %116 : vector<1x256xf32> to vector<64x256xf32>
    %118 = arith.addf %114, %117 : vector<64x256xf32>
    %119 = vector.extract_strided_slice %118 {offsets = [0, 0], sizes = [64, 128], strides = [1, 1]} : vector<64x256xf32> to vector<64x128xf32>
    %120 = arith.addf %76, %119 : vector<64x128xf32>
    %cst_65 = arith.constant 0.707106769 : f32
    %121 = vector.broadcast %cst_65 : f32 to vector<64x128xf32>
    %122 = arith.mulf %120, %121 : vector<64x128xf32>
    %123 = vector.extract_strided_slice %118 {offsets = [0, 128], sizes = [64, 128], strides = [1, 1]} : vector<64x256xf32> to vector<64x128xf32>
    %124 = arith.addf %77, %123 : vector<64x128xf32>
    %c5 = arith.constant 5 : index
    %c0_66 = arith.constant 0 : index
    %c0_67 = arith.constant 0 : index
    %125 = vector.load %arg5[%c5, %c0_66, %c0_67] : memref<12x128x256xbf16, #tpu.memory_space<vmem>>, vector<1x128x256xbf16>
    %126 = vector.shape_cast %125 : vector<1x128x256xbf16> to vector<128x256xbf16>
    %127 = arith.truncf %122 : vector<64x128xf32> to vector<64x128xbf16>
    %cst_68 = arith.constant dense<0.000000e+00> : vector<64x256xf32>
    %128 = tpu.matmul %127, %126, %cst_68 {dimension_numbers = #tpu.dot_dimension_numbers<[1], [0], [0], [1], [0, 0, 1, 1], [], []>} : vector<64x128xbf16>, vector<128x256xbf16>, vector<64x256xf32> -> vector<64x256xf32>
    %c2_69 = arith.constant 2 : index
    %c0_70 = arith.constant 0 : index
    %c0_71 = arith.constant 0 : index
    %129 = vector.load %arg6[%c2_69, %c0_70, %c0_71] : memref<6x80x256xbf16, #tpu.memory_space<vmem>>, vector<1x80x256xbf16>
    %130 = vector.shape_cast %129 : vector<1x80x256xbf16> to vector<80x256xbf16>
    %cst_72 = arith.constant dense<0.000000e+00> : vector<64x256xf32>
    %131 = tpu.matmul %3, %130, %cst_72 {dimension_numbers = #tpu.dot_dimension_numbers<[1], [0], [0], [1], [0, 0, 1, 1], [], []>} : vector<64x80xbf16>, vector<80x256xbf16>, vector<64x256xf32> -> vector<64x256xf32>
    %132 = arith.addf %128, %131 : vector<64x256xf32>
    %c2_73 = arith.constant 2 : index
    %c0_74 = arith.constant 0 : index
    %c0_75 = arith.constant 0 : index
    %133 = vector.load %arg7[%c2_73, %c0_74, %c0_75] : memref<6x1x256xf32, #tpu.memory_space<vmem>>, vector<1x1x256xf32>
    %134 = vector.shape_cast %133 : vector<1x1x256xf32> to vector<1x256xf32>
    %135 = vector.broadcast %134 : vector<1x256xf32> to vector<64x256xf32>
    %136 = arith.addf %132, %135 : vector<64x256xf32>
    %c4_i32_76 = arith.constant 4 : i32
    %137 = tpu.dynamic_rotate %122 by %c4_i32_76 dim 0 : vector<64x128xf32>, i32 -> vector<64x128xf32>
    %cst_77 = arith.constant 0.000000e+00 : f32
    %138 = vector.shape_cast %26 : vector<64x1xi1> to vector<64x1xi1>
    %139 = vector.broadcast %138 : vector<64x1xi1> to vector<64x128xi1>
    %140 = vector.broadcast %cst_77 : f32 to vector<64x128xf32>
    %141 = arith.select %139, %137, %140 : vector<64x128xi1>, vector<64x128xf32>
    %c4 = arith.constant 4 : index
    %c0_78 = arith.constant 0 : index
    %c0_79 = arith.constant 0 : index
    %142 = vector.load %arg5[%c4, %c0_78, %c0_79] : memref<12x128x256xbf16, #tpu.memory_space<vmem>>, vector<1x128x256xbf16>
    %143 = vector.shape_cast %142 : vector<1x128x256xbf16> to vector<128x256xbf16>
    %144 = arith.truncf %141 : vector<64x128xf32> to vector<64x128xbf16>
    %cst_80 = arith.constant dense<0.000000e+00> : vector<64x256xf32>
    %145 = tpu.matmul %144, %143, %cst_80 {dimension_numbers = #tpu.dot_dimension_numbers<[1], [0], [0], [1], [0, 0, 1, 1], [], []>} : vector<64x128xbf16>, vector<128x256xbf16>, vector<64x256xf32> -> vector<64x256xf32>
    %146 = arith.addf %136, %145 : vector<64x256xf32>
    %147 = vector.extract_strided_slice %146 {offsets = [0, 128], sizes = [64, 128], strides = [1, 1]} : vector<64x256xf32> to vector<64x128xf32>
    %cst_81 = arith.constant 5.000000e-01 : f32
    %148 = vector.broadcast %cst_81 : f32 to vector<64x128xf32>
    %149 = arith.mulf %148, %147 : vector<64x128xf32>
    %150 = math.tanh %149 : vector<64x128xf32>
    %cst_82 = arith.constant 1.000000e+00 : f32
    %151 = vector.broadcast %cst_82 : f32 to vector<64x128xf32>
    %152 = arith.addf %150, %151 : vector<64x128xf32>
    %cst_83 = arith.constant 5.000000e-01 : f32
    %153 = vector.broadcast %cst_83 : f32 to vector<64x128xf32>
    %154 = arith.mulf %153, %152 : vector<64x128xf32>
    %155 = vector.extract_strided_slice %146 {offsets = [0, 0], sizes = [64, 128], strides = [1, 1]} : vector<64x256xf32> to vector<64x128xf32>
    %156 = math.tanh %155 : vector<64x128xf32>
    %157 = arith.mulf %156, %154 : vector<64x128xf32>
    %c2_84 = arith.constant 2 : index
    %c0_85 = arith.constant 0 : index
    %c0_86 = arith.constant 0 : index
    %158 = vector.load %arg8[%c2_84, %c0_85, %c0_86] : memref<6x128x256xbf16, #tpu.memory_space<vmem>>, vector<1x128x256xbf16>
    %159 = vector.shape_cast %158 : vector<1x128x256xbf16> to vector<128x256xbf16>
    %160 = arith.truncf %157 : vector<64x128xf32> to vector<64x128xbf16>
    %cst_87 = arith.constant dense<0.000000e+00> : vector<64x256xf32>
    %161 = tpu.matmul %160, %159, %cst_87 {dimension_numbers = #tpu.dot_dimension_numbers<[1], [0], [0], [1], [0, 0, 1, 1], [], []>} : vector<64x128xbf16>, vector<128x256xbf16>, vector<64x256xf32> -> vector<64x256xf32>
    %c2_88 = arith.constant 2 : index
    %c0_89 = arith.constant 0 : index
    %c0_90 = arith.constant 0 : index
    %162 = vector.load %arg9[%c2_88, %c0_89, %c0_90] : memref<6x1x256xf32, #tpu.memory_space<vmem>>, vector<1x1x256xf32>
    %163 = vector.shape_cast %162 : vector<1x1x256xf32> to vector<1x256xf32>
    %164 = vector.broadcast %163 : vector<1x256xf32> to vector<64x256xf32>
    %165 = arith.addf %161, %164 : vector<64x256xf32>
    %166 = vector.extract_strided_slice %165 {offsets = [0, 0], sizes = [64, 128], strides = [1, 1]} : vector<64x256xf32> to vector<64x128xf32>
    %167 = arith.addf %122, %166 : vector<64x128xf32>
    %cst_91 = arith.constant 0.707106769 : f32
    %168 = vector.broadcast %cst_91 : f32 to vector<64x128xf32>
    %169 = arith.mulf %167, %168 : vector<64x128xf32>
    %170 = vector.extract_strided_slice %165 {offsets = [0, 128], sizes = [64, 128], strides = [1, 1]} : vector<64x256xf32> to vector<64x128xf32>
    %171 = arith.addf %124, %170 : vector<64x128xf32>
    %c7 = arith.constant 7 : index
    %c0_92 = arith.constant 0 : index
    %c0_93 = arith.constant 0 : index
    %172 = vector.load %arg5[%c7, %c0_92, %c0_93] : memref<12x128x256xbf16, #tpu.memory_space<vmem>>, vector<1x128x256xbf16>
    %173 = vector.shape_cast %172 : vector<1x128x256xbf16> to vector<128x256xbf16>
    %174 = arith.truncf %169 : vector<64x128xf32> to vector<64x128xbf16>
    %cst_94 = arith.constant dense<0.000000e+00> : vector<64x256xf32>
    %175 = tpu.matmul %174, %173, %cst_94 {dimension_numbers = #tpu.dot_dimension_numbers<[1], [0], [0], [1], [0, 0, 1, 1], [], []>} : vector<64x128xbf16>, vector<128x256xbf16>, vector<64x256xf32> -> vector<64x256xf32>
    %c3_95 = arith.constant 3 : index
    %c0_96 = arith.constant 0 : index
    %c0_97 = arith.constant 0 : index
    %176 = vector.load %arg6[%c3_95, %c0_96, %c0_97] : memref<6x80x256xbf16, #tpu.memory_space<vmem>>, vector<1x80x256xbf16>
    %177 = vector.shape_cast %176 : vector<1x80x256xbf16> to vector<80x256xbf16>
    %cst_98 = arith.constant dense<0.000000e+00> : vector<64x256xf32>
    %178 = tpu.matmul %3, %177, %cst_98 {dimension_numbers = #tpu.dot_dimension_numbers<[1], [0], [0], [1], [0, 0, 1, 1], [], []>} : vector<64x80xbf16>, vector<80x256xbf16>, vector<64x256xf32> -> vector<64x256xf32>
    %179 = arith.addf %175, %178 : vector<64x256xf32>
    %c3_99 = arith.constant 3 : index
    %c0_100 = arith.constant 0 : index
    %c0_101 = arith.constant 0 : index
    %180 = vector.load %arg7[%c3_99, %c0_100, %c0_101] : memref<6x1x256xf32, #tpu.memory_space<vmem>>, vector<1x1x256xf32>
    %181 = vector.shape_cast %180 : vector<1x1x256xf32> to vector<1x256xf32>
    %182 = vector.broadcast %181 : vector<1x256xf32> to vector<64x256xf32>
    %183 = arith.addf %179, %182 : vector<64x256xf32>
    %c1_i32_102 = arith.constant 1 : i32
    %184 = tpu.dynamic_rotate %169 by %c1_i32_102 dim 0 : vector<64x128xf32>, i32 -> vector<64x128xf32>
    %cst_103 = arith.constant 0.000000e+00 : f32
    %185 = vector.shape_cast %22 : vector<64x1xi1> to vector<64x1xi1>
    %186 = vector.broadcast %185 : vector<64x1xi1> to vector<64x128xi1>
    %187 = vector.broadcast %cst_103 : f32 to vector<64x128xf32>
    %188 = arith.select %186, %184, %187 : vector<64x128xi1>, vector<64x128xf32>
    %c6 = arith.constant 6 : index
    %c0_104 = arith.constant 0 : index
    %c0_105 = arith.constant 0 : index
    %189 = vector.load %arg5[%c6, %c0_104, %c0_105] : memref<12x128x256xbf16, #tpu.memory_space<vmem>>, vector<1x128x256xbf16>
    %190 = vector.shape_cast %189 : vector<1x128x256xbf16> to vector<128x256xbf16>
    %191 = arith.truncf %188 : vector<64x128xf32> to vector<64x128xbf16>
    %cst_106 = arith.constant dense<0.000000e+00> : vector<64x256xf32>
    %192 = tpu.matmul %191, %190, %cst_106 {dimension_numbers = #tpu.dot_dimension_numbers<[1], [0], [0], [1], [0, 0, 1, 1], [], []>} : vector<64x128xbf16>, vector<128x256xbf16>, vector<64x256xf32> -> vector<64x256xf32>
    %193 = arith.addf %183, %192 : vector<64x256xf32>
    %194 = vector.extract_strided_slice %193 {offsets = [0, 128], sizes = [64, 128], strides = [1, 1]} : vector<64x256xf32> to vector<64x128xf32>
    %cst_107 = arith.constant 5.000000e-01 : f32
    %195 = vector.broadcast %cst_107 : f32 to vector<64x128xf32>
    %196 = arith.mulf %195, %194 : vector<64x128xf32>
    %197 = math.tanh %196 : vector<64x128xf32>
    %cst_108 = arith.constant 1.000000e+00 : f32
    %198 = vector.broadcast %cst_108 : f32 to vector<64x128xf32>
    %199 = arith.addf %197, %198 : vector<64x128xf32>
    %cst_109 = arith.constant 5.000000e-01 : f32
    %200 = vector.broadcast %cst_109 : f32 to vector<64x128xf32>
    %201 = arith.mulf %200, %199 : vector<64x128xf32>
    %202 = vector.extract_strided_slice %193 {offsets = [0, 0], sizes = [64, 128], strides = [1, 1]} : vector<64x256xf32> to vector<64x128xf32>
    %203 = math.tanh %202 : vector<64x128xf32>
    %204 = arith.mulf %203, %201 : vector<64x128xf32>
    %c3_110 = arith.constant 3 : index
    %c0_111 = arith.constant 0 : index
    %c0_112 = arith.constant 0 : index
    %205 = vector.load %arg8[%c3_110, %c0_111, %c0_112] : memref<6x128x256xbf16, #tpu.memory_space<vmem>>, vector<1x128x256xbf16>
    %206 = vector.shape_cast %205 : vector<1x128x256xbf16> to vector<128x256xbf16>
    %207 = arith.truncf %204 : vector<64x128xf32> to vector<64x128xbf16>
    %cst_113 = arith.constant dense<0.000000e+00> : vector<64x256xf32>
    %208 = tpu.matmul %207, %206, %cst_113 {dimension_numbers = #tpu.dot_dimension_numbers<[1], [0], [0], [1], [0, 0, 1, 1], [], []>} : vector<64x128xbf16>, vector<128x256xbf16>, vector<64x256xf32> -> vector<64x256xf32>
    %c3_114 = arith.constant 3 : index
    %c0_115 = arith.constant 0 : index
    %c0_116 = arith.constant 0 : index
    %209 = vector.load %arg9[%c3_114, %c0_115, %c0_116] : memref<6x1x256xf32, #tpu.memory_space<vmem>>, vector<1x1x256xf32>
    %210 = vector.shape_cast %209 : vector<1x1x256xf32> to vector<1x256xf32>
    %211 = vector.broadcast %210 : vector<1x256xf32> to vector<64x256xf32>
    %212 = arith.addf %208, %211 : vector<64x256xf32>
    %213 = vector.extract_strided_slice %212 {offsets = [0, 0], sizes = [64, 128], strides = [1, 1]} : vector<64x256xf32> to vector<64x128xf32>
    %214 = arith.addf %169, %213 : vector<64x128xf32>
    %cst_117 = arith.constant 0.707106769 : f32
    %215 = vector.broadcast %cst_117 : f32 to vector<64x128xf32>
    %216 = arith.mulf %214, %215 : vector<64x128xf32>
    %217 = vector.extract_strided_slice %212 {offsets = [0, 128], sizes = [64, 128], strides = [1, 1]} : vector<64x256xf32> to vector<64x128xf32>
    %218 = arith.addf %171, %217 : vector<64x128xf32>
    %c9 = arith.constant 9 : index
    %c0_118 = arith.constant 0 : index
    %c0_119 = arith.constant 0 : index
    %219 = vector.load %arg5[%c9, %c0_118, %c0_119] : memref<12x128x256xbf16, #tpu.memory_space<vmem>>, vector<1x128x256xbf16>
    %220 = vector.shape_cast %219 : vector<1x128x256xbf16> to vector<128x256xbf16>
    %221 = arith.truncf %216 : vector<64x128xf32> to vector<64x128xbf16>
    %cst_120 = arith.constant dense<0.000000e+00> : vector<64x256xf32>
    %222 = tpu.matmul %221, %220, %cst_120 {dimension_numbers = #tpu.dot_dimension_numbers<[1], [0], [0], [1], [0, 0, 1, 1], [], []>} : vector<64x128xbf16>, vector<128x256xbf16>, vector<64x256xf32> -> vector<64x256xf32>
    %c4_121 = arith.constant 4 : index
    %c0_122 = arith.constant 0 : index
    %c0_123 = arith.constant 0 : index
    %223 = vector.load %arg6[%c4_121, %c0_122, %c0_123] : memref<6x80x256xbf16, #tpu.memory_space<vmem>>, vector<1x80x256xbf16>
    %224 = vector.shape_cast %223 : vector<1x80x256xbf16> to vector<80x256xbf16>
    %cst_124 = arith.constant dense<0.000000e+00> : vector<64x256xf32>
    %225 = tpu.matmul %3, %224, %cst_124 {dimension_numbers = #tpu.dot_dimension_numbers<[1], [0], [0], [1], [0, 0, 1, 1], [], []>} : vector<64x80xbf16>, vector<80x256xbf16>, vector<64x256xf32> -> vector<64x256xf32>
    %226 = arith.addf %222, %225 : vector<64x256xf32>
    %c4_125 = arith.constant 4 : index
    %c0_126 = arith.constant 0 : index
    %c0_127 = arith.constant 0 : index
    %227 = vector.load %arg7[%c4_125, %c0_126, %c0_127] : memref<6x1x256xf32, #tpu.memory_space<vmem>>, vector<1x1x256xf32>
    %228 = vector.shape_cast %227 : vector<1x1x256xf32> to vector<1x256xf32>
    %229 = vector.broadcast %228 : vector<1x256xf32> to vector<64x256xf32>
    %230 = arith.addf %226, %229 : vector<64x256xf32>
    %c2_i32_128 = arith.constant 2 : i32
    %231 = tpu.dynamic_rotate %216 by %c2_i32_128 dim 0 : vector<64x128xf32>, i32 -> vector<64x128xf32>
    %cst_129 = arith.constant 0.000000e+00 : f32
    %232 = vector.shape_cast %24 : vector<64x1xi1> to vector<64x1xi1>
    %233 = vector.broadcast %232 : vector<64x1xi1> to vector<64x128xi1>
    %234 = vector.broadcast %cst_129 : f32 to vector<64x128xf32>
    %235 = arith.select %233, %231, %234 : vector<64x128xi1>, vector<64x128xf32>
    %c8 = arith.constant 8 : index
    %c0_130 = arith.constant 0 : index
    %c0_131 = arith.constant 0 : index
    %236 = vector.load %arg5[%c8, %c0_130, %c0_131] : memref<12x128x256xbf16, #tpu.memory_space<vmem>>, vector<1x128x256xbf16>
    %237 = vector.shape_cast %236 : vector<1x128x256xbf16> to vector<128x256xbf16>
    %238 = arith.truncf %235 : vector<64x128xf32> to vector<64x128xbf16>
    %cst_132 = arith.constant dense<0.000000e+00> : vector<64x256xf32>
    %239 = tpu.matmul %238, %237, %cst_132 {dimension_numbers = #tpu.dot_dimension_numbers<[1], [0], [0], [1], [0, 0, 1, 1], [], []>} : vector<64x128xbf16>, vector<128x256xbf16>, vector<64x256xf32> -> vector<64x256xf32>
    %240 = arith.addf %230, %239 : vector<64x256xf32>
    %241 = vector.extract_strided_slice %240 {offsets = [0, 128], sizes = [64, 128], strides = [1, 1]} : vector<64x256xf32> to vector<64x128xf32>
    %cst_133 = arith.constant 5.000000e-01 : f32
    %242 = vector.broadcast %cst_133 : f32 to vector<64x128xf32>
    %243 = arith.mulf %242, %241 : vector<64x128xf32>
    %244 = math.tanh %243 : vector<64x128xf32>
    %cst_134 = arith.constant 1.000000e+00 : f32
    %245 = vector.broadcast %cst_134 : f32 to vector<64x128xf32>
    %246 = arith.addf %244, %245 : vector<64x128xf32>
    %cst_135 = arith.constant 5.000000e-01 : f32
    %247 = vector.broadcast %cst_135 : f32 to vector<64x128xf32>
    %248 = arith.mulf %247, %246 : vector<64x128xf32>
    %249 = vector.extract_strided_slice %240 {offsets = [0, 0], sizes = [64, 128], strides = [1, 1]} : vector<64x256xf32> to vector<64x128xf32>
    %250 = math.tanh %249 : vector<64x128xf32>
    %251 = arith.mulf %250, %248 : vector<64x128xf32>
    %c4_136 = arith.constant 4 : index
    %c0_137 = arith.constant 0 : index
    %c0_138 = arith.constant 0 : index
    %252 = vector.load %arg8[%c4_136, %c0_137, %c0_138] : memref<6x128x256xbf16, #tpu.memory_space<vmem>>, vector<1x128x256xbf16>
    %253 = vector.shape_cast %252 : vector<1x128x256xbf16> to vector<128x256xbf16>
    %254 = arith.truncf %251 : vector<64x128xf32> to vector<64x128xbf16>
    %cst_139 = arith.constant dense<0.000000e+00> : vector<64x256xf32>
    %255 = tpu.matmul %254, %253, %cst_139 {dimension_numbers = #tpu.dot_dimension_numbers<[1], [0], [0], [1], [0, 0, 1, 1], [], []>} : vector<64x128xbf16>, vector<128x256xbf16>, vector<64x256xf32> -> vector<64x256xf32>
    %c4_140 = arith.constant 4 : index
    %c0_141 = arith.constant 0 : index
    %c0_142 = arith.constant 0 : index
    %256 = vector.load %arg9[%c4_140, %c0_141, %c0_142] : memref<6x1x256xf32, #tpu.memory_space<vmem>>, vector<1x1x256xf32>
    %257 = vector.shape_cast %256 : vector<1x1x256xf32> to vector<1x256xf32>
    %258 = vector.broadcast %257 : vector<1x256xf32> to vector<64x256xf32>
    %259 = arith.addf %255, %258 : vector<64x256xf32>
    %260 = vector.extract_strided_slice %259 {offsets = [0, 0], sizes = [64, 128], strides = [1, 1]} : vector<64x256xf32> to vector<64x128xf32>
    %261 = arith.addf %216, %260 : vector<64x128xf32>
    %cst_143 = arith.constant 0.707106769 : f32
    %262 = vector.broadcast %cst_143 : f32 to vector<64x128xf32>
    %263 = arith.mulf %261, %262 : vector<64x128xf32>
    %264 = vector.extract_strided_slice %259 {offsets = [0, 128], sizes = [64, 128], strides = [1, 1]} : vector<64x256xf32> to vector<64x128xf32>
    %265 = arith.addf %218, %264 : vector<64x128xf32>
    %c11 = arith.constant 11 : index
    %c0_144 = arith.constant 0 : index
    %c0_145 = arith.constant 0 : index
    %266 = vector.load %arg5[%c11, %c0_144, %c0_145] : memref<12x128x256xbf16, #tpu.memory_space<vmem>>, vector<1x128x256xbf16>
    %267 = vector.shape_cast %266 : vector<1x128x256xbf16> to vector<128x256xbf16>
    %268 = arith.truncf %263 : vector<64x128xf32> to vector<64x128xbf16>
    %cst_146 = arith.constant dense<0.000000e+00> : vector<64x256xf32>
    %269 = tpu.matmul %268, %267, %cst_146 {dimension_numbers = #tpu.dot_dimension_numbers<[1], [0], [0], [1], [0, 0, 1, 1], [], []>} : vector<64x128xbf16>, vector<128x256xbf16>, vector<64x256xf32> -> vector<64x256xf32>
    %c5_147 = arith.constant 5 : index
    %c0_148 = arith.constant 0 : index
    %c0_149 = arith.constant 0 : index
    %270 = vector.load %arg6[%c5_147, %c0_148, %c0_149] : memref<6x80x256xbf16, #tpu.memory_space<vmem>>, vector<1x80x256xbf16>
    %271 = vector.shape_cast %270 : vector<1x80x256xbf16> to vector<80x256xbf16>
    %cst_150 = arith.constant dense<0.000000e+00> : vector<64x256xf32>
    %272 = tpu.matmul %3, %271, %cst_150 {dimension_numbers = #tpu.dot_dimension_numbers<[1], [0], [0], [1], [0, 0, 1, 1], [], []>} : vector<64x80xbf16>, vector<80x256xbf16>, vector<64x256xf32> -> vector<64x256xf32>
    %273 = arith.addf %269, %272 : vector<64x256xf32>
    %c5_151 = arith.constant 5 : index
    %c0_152 = arith.constant 0 : index
    %c0_153 = arith.constant 0 : index
    %274 = vector.load %arg7[%c5_151, %c0_152, %c0_153] : memref<6x1x256xf32, #tpu.memory_space<vmem>>, vector<1x1x256xf32>
    %275 = vector.shape_cast %274 : vector<1x1x256xf32> to vector<1x256xf32>
    %276 = vector.broadcast %275 : vector<1x256xf32> to vector<64x256xf32>
    %277 = arith.addf %273, %276 : vector<64x256xf32>
    %c4_i32_154 = arith.constant 4 : i32
    %278 = tpu.dynamic_rotate %263 by %c4_i32_154 dim 0 : vector<64x128xf32>, i32 -> vector<64x128xf32>
    %cst_155 = arith.constant 0.000000e+00 : f32
    %279 = vector.shape_cast %26 : vector<64x1xi1> to vector<64x1xi1>
    %280 = vector.broadcast %279 : vector<64x1xi1> to vector<64x128xi1>
    %281 = vector.broadcast %cst_155 : f32 to vector<64x128xf32>
    %282 = arith.select %280, %278, %281 : vector<64x128xi1>, vector<64x128xf32>
    %c10 = arith.constant 10 : index
    %c0_156 = arith.constant 0 : index
    %c0_157 = arith.constant 0 : index
    %283 = vector.load %arg5[%c10, %c0_156, %c0_157] : memref<12x128x256xbf16, #tpu.memory_space<vmem>>, vector<1x128x256xbf16>
    %284 = vector.shape_cast %283 : vector<1x128x256xbf16> to vector<128x256xbf16>
    %285 = arith.truncf %282 : vector<64x128xf32> to vector<64x128xbf16>
    %cst_158 = arith.constant dense<0.000000e+00> : vector<64x256xf32>
    %286 = tpu.matmul %285, %284, %cst_158 {dimension_numbers = #tpu.dot_dimension_numbers<[1], [0], [0], [1], [0, 0, 1, 1], [], []>} : vector<64x128xbf16>, vector<128x256xbf16>, vector<64x256xf32> -> vector<64x256xf32>
    %287 = arith.addf %277, %286 : vector<64x256xf32>
    %288 = vector.extract_strided_slice %287 {offsets = [0, 128], sizes = [64, 128], strides = [1, 1]} : vector<64x256xf32> to vector<64x128xf32>
    %cst_159 = arith.constant 5.000000e-01 : f32
    %289 = vector.broadcast %cst_159 : f32 to vector<64x128xf32>
    %290 = arith.mulf %289, %288 : vector<64x128xf32>
    %291 = math.tanh %290 : vector<64x128xf32>
    %cst_160 = arith.constant 1.000000e+00 : f32
    %292 = vector.broadcast %cst_160 : f32 to vector<64x128xf32>
    %293 = arith.addf %291, %292 : vector<64x128xf32>
    %cst_161 = arith.constant 5.000000e-01 : f32
    %294 = vector.broadcast %cst_161 : f32 to vector<64x128xf32>
    %295 = arith.mulf %294, %293 : vector<64x128xf32>
    %296 = vector.extract_strided_slice %287 {offsets = [0, 0], sizes = [64, 128], strides = [1, 1]} : vector<64x256xf32> to vector<64x128xf32>
    %297 = math.tanh %296 : vector<64x128xf32>
    %298 = arith.mulf %297, %295 : vector<64x128xf32>
    %c5_162 = arith.constant 5 : index
    %c0_163 = arith.constant 0 : index
    %c0_164 = arith.constant 0 : index
    %299 = vector.load %arg8[%c5_162, %c0_163, %c0_164] : memref<6x128x256xbf16, #tpu.memory_space<vmem>>, vector<1x128x256xbf16>
    %300 = vector.shape_cast %299 : vector<1x128x256xbf16> to vector<128x256xbf16>
    %301 = arith.truncf %298 : vector<64x128xf32> to vector<64x128xbf16>
    %cst_165 = arith.constant dense<0.000000e+00> : vector<64x256xf32>
    %302 = tpu.matmul %301, %300, %cst_165 {dimension_numbers = #tpu.dot_dimension_numbers<[1], [0], [0], [1], [0, 0, 1, 1], [], []>} : vector<64x128xbf16>, vector<128x256xbf16>, vector<64x256xf32> -> vector<64x256xf32>
    %c5_166 = arith.constant 5 : index
    %c0_167 = arith.constant 0 : index
    %c0_168 = arith.constant 0 : index
    %303 = vector.load %arg9[%c5_166, %c0_167, %c0_168] : memref<6x1x256xf32, #tpu.memory_space<vmem>>, vector<1x1x256xf32>
    %304 = vector.shape_cast %303 : vector<1x1x256xf32> to vector<1x256xf32>
    %305 = vector.broadcast %304 : vector<1x256xf32> to vector<64x256xf32>
    %306 = arith.addf %302, %305 : vector<64x256xf32>
    %307 = vector.extract_strided_slice %306 {offsets = [0, 128], sizes = [64, 128], strides = [1, 1]} : vector<64x256xf32> to vector<64x128xf32>
    %308 = arith.addf %265, %307 : vector<64x128xf32>
    %c0_169 = arith.constant 0 : index
    %c0_170 = arith.constant 0 : index
    %309 = vector.load %arg10[%c0_169, %c0_170] : memref<128x128xbf16, #tpu.memory_space<vmem>>, vector<128x128xbf16>
    %310 = arith.truncf %308 : vector<64x128xf32> to vector<64x128xbf16>
    %cst_171 = arith.constant dense<0.000000e+00> : vector<64x128xf32>
    %311 = tpu.matmul %310, %309, %cst_171 {dimension_numbers = #tpu.dot_dimension_numbers<[1], [0], [0], [1], [0, 0, 1, 1], [], []>} : vector<64x128xbf16>, vector<128x128xbf16>, vector<64x128xf32> -> vector<64x128xf32>
    %c0_172 = arith.constant 0 : index
    %c0_173 = arith.constant 0 : index
    %312 = vector.load %arg11[%c0_172, %c0_173] : memref<1x128xf32, #tpu.memory_space<vmem>>, vector<1x128xf32>
    %313 = vector.broadcast %312 : vector<1x128xf32> to vector<64x128xf32>
    %314 = arith.addf %311, %313 : vector<64x128xf32>
    %cst_174 = arith.constant 0.000000e+00 : f32
    %315 = vector.broadcast %cst_174 : f32 to vector<64x128xf32>
    %316 = arith.maximumf %314, %315 : vector<64x128xf32>
    %c0_175 = arith.constant 0 : index
    %c0_176 = arith.constant 0 : index
    %317 = vector.load %arg12[%c0_175, %c0_176] : memref<128x256xbf16, #tpu.memory_space<vmem>>, vector<128x256xbf16>
    %318 = arith.truncf %316 : vector<64x128xf32> to vector<64x128xbf16>
    %cst_177 = arith.constant dense<0.000000e+00> : vector<64x256xf32>
    %319 = tpu.matmul %318, %317, %cst_177 {dimension_numbers = #tpu.dot_dimension_numbers<[1], [0], [0], [1], [0, 0, 1, 1], [], []>} : vector<64x128xbf16>, vector<128x256xbf16>, vector<64x256xf32> -> vector<64x256xf32>
    %c0_178 = arith.constant 0 : index
    %c0_179 = arith.constant 0 : index
    %320 = vector.load %arg13[%c0_178, %c0_179] : memref<1x256xf32, #tpu.memory_space<vmem>>, vector<1x256xf32>
    %321 = vector.broadcast %320 : vector<1x256xf32> to vector<64x256xf32>
    %322 = arith.addf %319, %321 : vector<64x256xf32>
    %323 = vector.shape_cast %322 : vector<64x256xf32> to vector<1x64x256xf32>
    %c0_180 = arith.constant 0 : index
    %c0_181 = arith.constant 0 : index
    %c0_182 = arith.constant 0 : index
    %324 = vector.load %arg14[%c0_180, %c0_181, %c0_182] : memref<1x64x256xf32, #tpu.memory_space<vmem>>, vector<1x64x256xf32>
    tpu.vector_store %arg14[%c0_180, %c0_181, %c0_182], %323 {strides = array<i32>} : memref<1x64x256xf32, #tpu.memory_space<vmem>>, vector<1x64x256xf32>,
    return
  }
  func.func @transform_0(%arg0: i32) -> (i32, i32, i32) {
    %c0_i32 = arith.constant 0 : i32
    %c0_i32_0 = arith.constant 0 : i32
    %c0_i32_1 = arith.constant 0 : i32
    return %arg0, %c0_i32, %c0_i32_0 : i32, i32, i32
  }
  func.func @transform_1(%arg0: i32) -> (i32, i32, i32) {
    %c0_i32 = arith.constant 0 : i32
    %c0_i32_0 = arith.constant 0 : i32
    %c0_i32_1 = arith.constant 0 : i32
    return %arg0, %c0_i32, %c0_i32_0 : i32, i32, i32
  }
  func.func @transform_2(%arg0: i32) -> (i32, i32) {
    %c0_i32 = arith.constant 0 : i32
    %c0_i32_0 = arith.constant 0 : i32
    %c0_i32_1 = arith.constant 0 : i32
    return %c0_i32, %c0_i32_0 : i32, i32
  }
  func.func @transform_3(%arg0: i32) -> (i32, i32) {
    %c0_i32 = arith.constant 0 : i32
    %c0_i32_0 = arith.constant 0 : i32
    %c0_i32_1 = arith.constant 0 : i32
    return %c0_i32, %c0_i32_0 : i32, i32
  }
  func.func @transform_4(%arg0: i32) -> (i32, i32, i32) {
    %c0_i32 = arith.constant 0 : i32
    %c0_i32_0 = arith.constant 0 : i32
    %c0_i32_1 = arith.constant 0 : i32
    %c0_i32_2 = arith.constant 0 : i32
    return %c0_i32, %c0_i32_0, %c0_i32_1 : i32, i32, i32
  }
  func.func @transform_5(%arg0: i32) -> (i32, i32, i32) {
    %c0_i32 = arith.constant 0 : i32
    %c0_i32_0 = arith.constant 0 : i32
    %c0_i32_1 = arith.constant 0 : i32
    %c0_i32_2 = arith.constant 0 : i32
    return %c0_i32, %c0_i32_0, %c0_i32_1 : i32, i32, i32
  }
  func.func @transform_6(%arg0: i32) -> (i32, i32, i32) {
    %c0_i32 = arith.constant 0 : i32
    %c0_i32_0 = arith.constant 0 : i32
    %c0_i32_1 = arith.constant 0 : i32
    %c0_i32_2 = arith.constant 0 : i32
    return %c0_i32, %c0_i32_0, %c0_i32_1 : i32, i32, i32
  }
  func.func @transform_7(%arg0: i32) -> (i32, i32, i32) {
    %c0_i32 = arith.constant 0 : i32
    %c0_i32_0 = arith.constant 0 : i32
    %c0_i32_1 = arith.constant 0 : i32
    %c0_i32_2 = arith.constant 0 : i32
    return %c0_i32, %c0_i32_0, %c0_i32_1 : i32, i32, i32
  }
  func.func @transform_8(%arg0: i32) -> (i32, i32, i32) {
    %c0_i32 = arith.constant 0 : i32
    %c0_i32_0 = arith.constant 0 : i32
    %c0_i32_1 = arith.constant 0 : i32
    %c0_i32_2 = arith.constant 0 : i32
    return %c0_i32, %c0_i32_0, %c0_i32_1 : i32, i32, i32
  }
  func.func @transform_9(%arg0: i32) -> (i32, i32) {
    %c0_i32 = arith.constant 0 : i32
    %c0_i32_0 = arith.constant 0 : i32
    %c0_i32_1 = arith.constant 0 : i32
    return %c0_i32, %c0_i32_0 : i32, i32
  }
  func.func @transform_10(%arg0: i32) -> (i32, i32) {
    %c0_i32 = arith.constant 0 : i32
    %c0_i32_0 = arith.constant 0 : i32
    %c0_i32_1 = arith.constant 0 : i32
    return %c0_i32, %c0_i32_0 : i32, i32
  }
  func.func @transform_11(%arg0: i32) -> (i32, i32) {
    %c0_i32 = arith.constant 0 : i32
    %c0_i32_0 = arith.constant 0 : i32
    %c0_i32_1 = arith.constant 0 : i32
    return %c0_i32, %c0_i32_0 : i32, i32
  }
  func.func @transform_12(%arg0: i32) -> (i32, i32) {
    %c0_i32 = arith.constant 0 : i32
    %c0_i32_0 = arith.constant 0 : i32
    %c0_i32_1 = arith.constant 0 : i32
    return %c0_i32, %c0_i32_0 : i32, i32
  }
  func.func @transform_13(%arg0: i32) -> (i32, i32, i32) {
    %c0_i32 = arith.constant 0 : i32
    %c0_i32_0 = arith.constant 0 : i32
    %c0_i32_1 = arith.constant 0 : i32
    return %arg0, %c0_i32, %c0_i32_0 : i32, i32, i32
  }
}

</mosaic_0001>

<llo_original>
// kernel: tpu_custom_call.1
$region0: #{tpu_custom_call.1}
  #allocation0 [shape = 'u32[]', space=smem, size = 0x4, offset = 0x4, fixed_abs, tag = 'smem constant byte address 0x4 - core index']
  #allocation1 [shape = 'u32[72,128]{1,0:T(1,128)}', space=vmem, size = 0x9000, scoped, tag = 'internal scratch']
  %s0 = inlined_call_operand.hbm [shape: bf16[2,64,256], index: 0, kind: input, shape index: {}]
  %s1 = inlined_call_operand.hbm [shape: bf16[2,64,80], index: 1, kind: input, shape index: {}]
  %s2 = inlined_call_operand.hbm [shape: bf16[256,128], index: 2, kind: input, shape index: {}]
  %s3 = inlined_call_operand.vmem [shape: f32[1,128], index: 3, kind: input, shape index: {}]
  %s4 = inlined_call_operand.hbm [shape: bf16[12,128,256], index: 4, kind: input, shape index: {}]
  %s5 = inlined_call_operand.hbm [shape: bf16[6,80,256], index: 5, kind: input, shape index: {}]
  %s6 = inlined_call_operand.hbm [shape: f32[6,1,256], index: 6, kind: input, shape index: {}]
  %s7 = inlined_call_operand.hbm [shape: bf16[6,128,256], index: 7, kind: input, shape index: {}]
  %s8 = inlined_call_operand.hbm [shape: f32[6,1,256], index: 8, kind: input, shape index: {}]
  %s9 = inlined_call_operand.hbm [shape: bf16[128,128], index: 9, kind: input, shape index: {}]
  %s10 = inlined_call_operand.vmem [shape: f32[1,128], index: 10, kind: input, shape index: {}]
  %s11 = inlined_call_operand.hbm [shape: bf16[128,256], index: 11, kind: input, shape index: {}]
  %s12 = inlined_call_operand.vmem [shape: f32[1,256], index: 12, kind: input, shape index: {}]
  %s13 = inlined_call_operand.hbm [shape: f32[2,64,256], index: 13, kind: output, shape index: {}]
  %s14 = sld [smem:[#allocation0]]
  $region125: #{tpu_custom_call.1} parent=0
    _
  %s16 = ssub.s32 1, %s14
  %s17 = scalar_select 0, %s16, %s14
  $region1: #{tpu_custom_call.1} parent=0
    #allocation2 [shape = 'u8[65536]{0}', space=vmem, size = 0x10000, scoped, tag = 'input window, operand 0']
    #allocation3 [shape = 's32[2]{0}', space=sflag, size = 0x8, scoped, tag = 'scoped memory for tpu_custom_call.1']
    #allocation4 [shape = 's32[2]{0}', space=sflag, size = 0x8, scoped, tag = 'scoped memory for tpu_custom_call.1']
    #allocation5 [shape = 'u8[32768]{0}', space=vmem, size = 0x8000, scoped, tag = 'input window, operand 1']
    #allocation6 [shape = 's32[2]{0}', space=sflag, size = 0x8, scoped, tag = 'scoped memory for tpu_custom_call.1']
    #allocation7 [shape = 'u8[65536]{0}', space=vmem, size = 0x10000, scoped, tag = 'input window, operand 2, single buffered']
    #allocation8 [shape = 'u8[786432]{0}', space=vmem, size = 0xc0000, scoped, tag = 'input window, operand 4, single buffered']
    #allocation9 [shape = 's32[1]{0}', space=sflag, size = 0x4, scoped, tag = 'scoped memory for tpu_custom_call.1']
    #allocation10 [shape = 'u8[245760]{0}', space=vmem, size = 0x3c000, scoped, tag = 'input window, operand 5, single buffered']
    #allocation11 [shape = 'u8[6144]{0}', space=vmem, size = 0x1800, scoped, tag = 'input window, operand 6, single buffered']
    #allocation12 [shape = 's32[1]{0}', space=sflag, size = 0x4, scoped, tag = 'scoped memory for tpu_custom_call.1']
    #allocation13 [shape = 'u8[393216]{0}', space=vmem, size = 0x60000, scoped, tag = 'input window, operand 7, single buffered']
    #allocation14 [shape = 'u8[6144]{0}', space=vmem, size = 0x1800, scoped, tag = 'input window, operand 8, single buffered']
    #allocation15 [shape = 's32[1]{0}', space=sflag, size = 0x4, scoped, tag = 'scoped memory for tpu_custom_call.1']
    #allocation16 [shape = 'u8[32768]{0}', space=vmem, size = 0x8000, scoped, tag = 'input window, operand 9, single buffered']
    #allocation17 [shape = 'u8[65536]{0}', space=vmem, size = 0x10000, scoped, tag = 'input window, operand 11, single buffered']
    #allocation18 [shape = 's32[1]{0}', space=sflag, size = 0x4, scoped, tag = 'scoped memory for tpu_custom_call.1']
    #allocation19 [shape = 'u8[131072]{0}', space=vmem, size = 0x20000, scoped, tag = 'output window, operand 0']
    %18 = vsyncpa [#allocation3], 0
    %s19 = scalar_lea.sflag [#allocation3], 1
    %20 = vsyncpa %s19, 0
    %21 = vsyncpa [#allocation6], 0
    %s22 = scalar_lea.sflag [#allocation6], 1
    %23 = vsyncpa %s22, 0
    %24 = vsyncpa [#allocation9], 0
    %25 = vsyncpa [#allocation12], 0
    %26 = vsyncpa [#allocation15], 0
    %27 = vsyncpa [#allocation18], 0
    %28 = vsyncpa [#allocation4], 0
    %s29 = scalar_lea.sflag [#allocation4], 1
    %30 = vsyncpa %s29, 0
    loop: start=0, step=1, limit=4
    $region2: #{tpu_custom_call.1} parent=1 // loop_pre_header
      _
    $region3: #{tpu_custom_call.1} parent=1 // loop_header
      %s32 = sphi 0, %s36
      %p33 = scmp.ge.s32.totalorder %s32, 4
      %s42 = sphi 0, %s44
      %s45 = sphi 0, %s42
      %s46 = sphi 0, %s45
      %s62 = sphi 0, %s46
      %s68 = sphi 0, %s70
      %s71 = sphi 0, %s68
      %s72 = sphi 0, %s71
      %s88 = sphi 0, %s72
      %s92 = sphi 0, %s92
      %s94 = sphi 0, %s92
      %s95 = sphi 0, %s94
      %s109 = sphi 0, %s95
      %s113 = sphi 0, %s113
      %s115 = sphi 0, %s113
      %s116 = sphi 0, %s115
      %s130 = sphi 0, %s116
      %s134 = sphi 0, %s134
      %s136 = sphi 0, %s134
      %s137 = sphi 0, %s136
      %s151 = sphi 0, %s137
      %s155 = sphi 0, %s155
      %s157 = sphi 0, %s155
      %s158 = sphi 0, %s157
      %s172 = sphi 0, %s158
      %s176 = sphi 0, %s176
      %s178 = sphi 0, %s176
      %s179 = sphi 0, %s178
      %s193 = sphi 0, %s179
      %s197 = sphi 0, %s197
      %s199 = sphi 0, %s197
      %s200 = sphi 0, %s199
      %s214 = sphi 0, %s200
      %s218 = sphi 0, %s218
      %s220 = sphi 0, %s218
      %s221 = sphi 0, %s220
      %s235 = sphi 0, %s221
      %s239 = sphi 0, %s239
      %s241 = sphi 0, %s239
      %s242 = sphi 0, %s241
      %s256 = sphi 0, %s242
      %s260 = sphi 0, %s260
      %s262 = sphi 0, %s260
      %s263 = sphi 0, %s262
      %s277 = sphi 0, %s263
      %s281 = sphi 0, %s281
      %s283 = sphi 0, %s281
      %s284 = sphi 0, %s283
      %s298 = sphi 0, %s284
      %s302 = sphi 0, %s302
      %s304 = sphi 0, %s302
      %s305 = sphi 0, %s304
      %s319 = sphi 0, %s305
      %s325 = sphi 0, %s327
      %s328 = sphi 0, %s325
      %s329 = sphi 0, %s328
      %s345 = sphi 0, %s329
    $region4: #{tpu_custom_call.1} parent=1 // loop_header_branch
      %35 = sbr.rel (%p33) target = $region8
    $region5: #{tpu_custom_call.1} parent=1 // loop_body
      %s37 = ssub.s32 %s32, 1
      %s38 = ssub.s32 %s32, 2
      %s39 = sadd.s32 %s32, 1
      %s40 = ssub.s32 %s32, %s39
      %p41 = scmp.eq.s32.totalorder %s40, 0
      %s43 = sadd.s32 %s42, 1
      %s44 = scalar_select %p41, %s42, %s43
      %p47 = pneg %p41
      %p48 = scmp.eq.s32.totalorder %s32, 1
      %p49 = por %p47, %p48
      %p50 = scmp.ne.s32.totalorder %s42, %s45
      %p51 = scmp.eq.s32.totalorder %s32, 0
      %p52 = por %p50, %p51
      %p53 = scmp.ne.s32.totalorder %s42, %s45
      %p54 = scmp.eq.s32.totalorder %s37, 1
      %p55 = por %p53, %p54
      %p56 = scmp.ne.s32.totalorder %s45, %s46
      %p57 = scmp.eq.s32.totalorder %s37, 0
      %p58 = por %p56, %p57
      %p59 = scmp.ne.s32.totalorder %s45, %s46
      %p60 = scmp.eq.s32.totalorder %s38, 1
      %p61 = por %p59, %p60
      %p63 = scmp.ne.s32.totalorder %s46, %s62
      %p64 = scmp.eq.s32.totalorder %s38, 0
      %p65 = por %p63, %p64
      %s66 = ssub.s32 %s32, %s39
      %p67 = scmp.eq.s32.totalorder %s66, 0
      %s69 = sadd.s32 %s68, 1
      %s70 = scalar_select %p67, %s68, %s69
      %p73 = pneg %p67
      %p74 = scmp.eq.s32.totalorder %s32, 1
      %p75 = por %p73, %p74
      %p76 = scmp.ne.s32.totalorder %s68, %s71
      %p77 = scmp.eq.s32.totalorder %s32, 0
      %p78 = por %p76, %p77
      %p79 = scmp.ne.s32.totalorder %s68, %s71
      %p80 = scmp.eq.s32.totalorder %s37, 1
      %p81 = por %p79, %p80
      %p82 = scmp.ne.s32.totalorder %s71, %s72
      %p83 = scmp.eq.s32.totalorder %s37, 0
      %p84 = por %p82, %p83
      %p85 = scmp.ne.s32.totalorder %s71, %s72
      %p86 = scmp.eq.s32.totalorder %s38, 1
      %p87 = por %p85, %p86
      %p89 = scmp.ne.s32.totalorder %s72, %s88
      %p90 = scmp.eq.s32.totalorder %s38, 0
      %p91 = por %p89, %p90
      %s93 = sadd.s32 %s92, 1
      %p96 = scmp.eq.s32.totalorder %s32, 1
      %p97 = scmp.ne.s32.totalorder %s92, %s94
      %p98 = scmp.eq.s32.totalorder %s32, 0
      %p99 = por %p97, %p98
      %p100 = scmp.ne.s32.totalorder %s92, %s94
      %p101 = scmp.eq.s32.totalorder %s37, 1
      %p102 = por %p100, %p101
      %p103 = scmp.ne.s32.totalorder %s94, %s95
      %p104 = scmp.eq.s32.totalorder %s37, 0
      %p105 = por %p103, %p104
      %p106 = scmp.ne.s32.totalorder %s94, %s95
      %p107 = scmp.eq.s32.totalorder %s38, 1
      %p108 = por %p106, %p107
      %p110 = scmp.ne.s32.totalorder %s95, %s109
      %p111 = scmp.eq.s32.totalorder %s38, 0
      %p112 = por %p110, %p111
      %s114 = sadd.s32 %s113, 1
      %p117 = scmp.eq.s32.totalorder %s32, 1
      %p118 = scmp.ne.s32.totalorder %s113, %s115
      %p119 = scmp.eq.s32.totalorder %s32, 0
      %p120 = por %p118, %p119
      %p121 = scmp.ne.s32.totalorder %s113, %s115
      %p122 = scmp.eq.s32.totalorder %s37, 1
      %p123 = por %p121, %p122
      %p124 = scmp.ne.s32.totalorder %s115, %s116
      %p125 = scmp.eq.s32.totalorder %s37, 0
      %p126 = por %p124, %p125
      %p127 = scmp.ne.s32.totalorder %s115, %s116
      %p128 = scmp.eq.s32.totalorder %s38, 1
      %p129 = por %p127, %p128
      %p131 = scmp.ne.s32.totalorder %s116, %s130
      %p132 = scmp.eq.s32.totalorder %s38, 0
      %p133 = por %p131, %p132
      %s135 = sadd.s32 %s134, 1
      %p138 = scmp.eq.s32.totalorder %s32, 1
      %p139 = scmp.ne.s32.totalorder %s134, %s136
      %p140 = scmp.eq.s32.totalorder %s32, 0
      %p141 = por %p139, %p140
      %p142 = scmp.ne.s32.totalorder %s134, %s136
      %p143 = scmp.eq.s32.totalorder %s37, 1
      %p144 = por %p142, %p143
      %p145 = scmp.ne.s32.totalorder %s136, %s137
      %p146 = scmp.eq.s32.totalorder %s37, 0
      %p147 = por %p145, %p146
      %p148 = scmp.ne.s32.totalorder %s136, %s137
      %p149 = scmp.eq.s32.totalorder %s38, 1
      %p150 = por %p148, %p149
      %p152 = scmp.ne.s32.totalorder %s137, %s151
      %p153 = scmp.eq.s32.totalorder %s38, 0
      %p154 = por %p152, %p153
      %s156 = sadd.s32 %s155, 1
      %p159 = scmp.eq.s32.totalorder %s32, 1
      %p160 = scmp.ne.s32.totalorder %s155, %s157
      %p161 = scmp.eq.s32.totalorder %s32, 0
      %p162 = por %p160, %p161
      %p163 = scmp.ne.s32.totalorder %s155, %s157
      %p164 = scmp.eq.s32.totalorder %s37, 1
      %p165 = por %p163, %p164
      %p166 = scmp.ne.s32.totalorder %s157, %s158
      %p167 = scmp.eq.s32.totalorder %s37, 0
      %p168 = por %p166, %p167
      %p169 = scmp.ne.s32.totalorder %s157, %s158
      %p170 = scmp.eq.s32.totalorder %s38, 1
      %p171 = por %p169, %p170
      %p173 = scmp.ne.s32.totalorder %s158, %s172
      %p174 = scmp.eq.s32.totalorder %s38, 0
      %p175 = por %p173, %p174
      %s177 = sadd.s32 %s176, 1
      %p180 = scmp.eq.s32.totalorder %s32, 1
      %p181 = scmp.ne.s32.totalorder %s176, %s178
      %p182 = scmp.eq.s32.totalorder %s32, 0
      %p183 = por %p181, %p182
      %p184 = scmp.ne.s32.totalorder %s176, %s178
      %p185 = scmp.eq.s32.totalorder %s37, 1
      %p186 = por %p184, %p185
      %p187 = scmp.ne.s32.totalorder %s178, %s179
      %p188 = scmp.eq.s32.totalorder %s37, 0
      %p189 = por %p187, %p188
      %p190 = scmp.ne.s32.totalorder %s178, %s179
      %p191 = scmp.eq.s32.totalorder %s38, 1
      %p192 = por %p190, %p191
      %p194 = scmp.ne.s32.totalorder %s179, %s193
      %p195 = scmp.eq.s32.totalorder %s38, 0
      %p196 = por %p194, %p195
      %s198 = sadd.s32 %s197, 1
      %p201 = scmp.eq.s32.totalorder %s32, 1
      %p202 = scmp.ne.s32.totalorder %s197, %s199
      %p203 = scmp.eq.s32.totalorder %s32, 0
      %p204 = por %p202, %p203
      %p205 = scmp.ne.s32.totalorder %s197, %s199
      %p206 = scmp.eq.s32.totalorder %s37, 1
      %p207 = por %p205, %p206
      %p208 = scmp.ne.s32.totalorder %s199, %s200
      %p209 = scmp.eq.s32.totalorder %s37, 0
      %p210 = por %p208, %p209
      %p211 = scmp.ne.s32.totalorder %s199, %s200
      %p212 = scmp.eq.s32.totalorder %s38, 1
      %p213 = por %p211, %p212
      %p215 = scmp.ne.s32.totalorder %s200, %s214
      %p216 = scmp.eq.s32.totalorder %s38, 0
      %p217 = por %p215, %p216
      %s219 = sadd.s32 %s218, 1
      %p222 = scmp.eq.s32.totalorder %s32, 1
      %p223 = scmp.ne.s32.totalorder %s218, %s220
      %p224 = scmp.eq.s32.totalorder %s32, 0
      %p225 = por %p223, %p224
      %p226 = scmp.ne.s32.totalorder %s218, %s220
      %p227 = scmp.eq.s32.totalorder %s37, 1
      %p228 = por %p226, %p227
      %p229 = scmp.ne.s32.totalorder %s220, %s221
      %p230 = scmp.eq.s32.totalorder %s37, 0
      %p231 = por %p229, %p230
      %p232 = scmp.ne.s32.totalorder %s220, %s221
      %p233 = scmp.eq.s32.totalorder %s38, 1
      %p234 = por %p232, %p233
      %p236 = scmp.ne.s32.totalorder %s221, %s235
      %p237 = scmp.eq.s32.totalorder %s38, 0
      %p238 = por %p236, %p237
      %s240 = sadd.s32 %s239, 1
      %p243 = scmp.eq.s32.totalorder %s32, 1
      %p244 = scmp.ne.s32.totalorder %s239, %s241
      %p245 = scmp.eq.s32.totalorder %s32, 0
      %p246 = por %p244, %p245
      %p247 = scmp.ne.s32.totalorder %s239, %s241
      %p248 = scmp.eq.s32.totalorder %s37, 1
      %p249 = por %p247, %p248
      %p250 = scmp.ne.s32.totalorder %s241, %s242
      %p251 = scmp.eq.s32.totalorder %s37, 0
      %p252 = por %p250, %p251
      %p253 = scmp.ne.s32.totalorder %s241, %s242
      %p254 = scmp.eq.s32.totalorder %s38, 1
      %p255 = por %p253, %p254
      %p257 = scmp.ne.s32.totalorder %s242, %s256
      %p258 = scmp.eq.s32.totalorder %s38, 0
      %p259 = por %p257, %p258
      %s261 = sadd.s32 %s260, 1
      %p264 = scmp.eq.s32.totalorder %s32, 1
      %p265 = scmp.ne.s32.totalorder %s260, %s262
      %p266 = scmp.eq.s32.totalorder %s32, 0
      %p267 = por %p265, %p266
      %p268 = scmp.ne.s32.totalorder %s260, %s262
      %p269 = scmp.eq.s32.totalorder %s37, 1
      %p270 = por %p268, %p269
      %p271 = scmp.ne.s32.totalorder %s262, %s263
      %p272 = scmp.eq.s32.totalorder %s37, 0
      %p273 = por %p271, %p272
      %p274 = scmp.ne.s32.totalorder %s262, %s263
      %p275 = scmp.eq.s32.totalorder %s38, 1
      %p276 = por %p274, %p275
      %p278 = scmp.ne.s32.totalorder %s263, %s277
      %p279 = scmp.eq.s32.totalorder %s38, 0
      %p280 = por %p278, %p279
      %s282 = sadd.s32 %s281, 1
      %p285 = scmp.eq.s32.totalorder %s32, 1
      %p286 = scmp.ne.s32.totalorder %s281, %s283
      %p287 = scmp.eq.s32.totalorder %s32, 0
      %p288 = por %p286, %p287
      %p289 = scmp.ne.s32.totalorder %s281, %s283
      %p290 = scmp.eq.s32.totalorder %s37, 1
      %p291 = por %p289, %p290
      %p292 = scmp.ne.s32.totalorder %s283, %s284
      %p293 = scmp.eq.s32.totalorder %s37, 0
      %p294 = por %p292, %p293
      %p295 = scmp.ne.s32.totalorder %s283, %s284
      %p296 = scmp.eq.s32.totalorder %s38, 1
      %p297 = por %p295, %p296
      %p299 = scmp.ne.s32.totalorder %s284, %s298
      %p300 = scmp.eq.s32.totalorder %s38, 0
      %p301 = por %p299, %p300
      %s303 = sadd.s32 %s302, 1
      %p306 = scmp.eq.s32.totalorder %s32, 1
      %p307 = scmp.ne.s32.totalorder %s302, %s304
      %p308 = scmp.eq.s32.totalorder %s32, 0
      %p309 = por %p307, %p308
      %p310 = scmp.ne.s32.totalorder %s302, %s304
      %p311 = scmp.eq.s32.totalorder %s37, 1
      %p312 = por %p310, %p311
      %p313 = scmp.ne.s32.totalorder %s304, %s305
      %p314 = scmp.eq.s32.totalorder %s37, 0
      %p315 = por %p313, %p314
      %p316 = scmp.ne.s32.totalorder %s304, %s305
      %p317 = scmp.eq.s32.totalorder %s38, 1
      %p318 = por %p316, %p317
      %p320 = scmp.ne.s32.totalorder %s305, %s319
      %p321 = scmp.eq.s32.totalorder %s38, 0
      %p322 = por %p320, %p321
      %s323 = ssub.s32 %s32, %s39
      %p324 = scmp.eq.s32.totalorder %s323, 0
      %s326 = sadd.s32 %s325, 1
      %s327 = scalar_select %p324, %s325, %s326
      %p330 = pneg %p324
      %p331 = scmp.eq.s32.totalorder %s32, 1
      %p332 = por %p330, %p331
      %p333 = scmp.ne.s32.totalorder %s325, %s328
      %p334 = scmp.eq.s32.totalorder %s32, 0
      %p335 = por %p333, %p334
      %p336 = scmp.ne.s32.totalorder %s325, %s328
      %p337 = scmp.eq.s32.totalorder %s37, 1
      %p338 = por %p336, %p337
      %p339 = scmp.ne.s32.totalorder %s328, %s329
      %p340 = scmp.eq.s32.totalorder %s37, 0
      %p341 = por %p339, %p340
      %p342 = scmp.ne.s32.totalorder %s328, %s329
      %p343 = scmp.eq.s32.totalorder %s38, 1
      %p344 = por %p342, %p343
      %p346 = scmp.ne.s32.totalorder %s329, %s345
      %p347 = scmp.eq.s32.totalorder %s38, 0
      %p348 = por %p346, %p347
      %p349 = scmp.le.s32.totalorder 1, %s32
      %p350 = scmp.lt.s32.totalorder %s32, 3
      %p351 = pnand %p349, %p350
      %p352 = pneg %p351
      // Predicated region
      $region9: #{tpu_custom_call.1} parent=5 // pred_check
        _
      $region10: #{tpu_custom_call.1} parent=5 // pred_check_branch
        %354 = sbr.rel (%p351) target = $region12
      $region11: #{tpu_custom_call.1} parent=5 // pred_region
        %s355 = ssub.s32 %s32, 1
        // Predicated region
        $region13: #{tpu_custom_call.1} parent=11 // pred_check
          %p356 = pneg %p105
        $region14: #{tpu_custom_call.1} parent=11 // pred_check_branch
          %358 = sbr.rel (%p356) target = $region16
        $region15: #{tpu_custom_call.1} parent=11 // pred_region
          %360 = vsyncadd [#allocation6], 0
          %s361 = sshll.u32 %s2, 4
          %s362 = int_to_ptr.hbm [resolvable:$true] %s361
          %s363 = sshll.u32 [#allocation7], 4
          %s364 = int_to_ptr.vmem [resolvable:$true] %s363
          %369 = dma.hbm_to_vmem [thread:$0]  %s362, 2048, %s364, [#allocation6], 64, 64, 4
        $region16: #{tpu_custom_call.1} parent=11 // pred_fallthru
          _
        // Predicated region
        $region17: #{tpu_custom_call.1} parent=11 // pred_check
          %p370 = pneg %p126
        $region18: #{tpu_custom_call.1} parent=11 // pred_check_branch
          %372 = sbr.rel (%p370) target = $region20
        $region19: #{tpu_custom_call.1} parent=11 // pred_region
          _
        $region20: #{tpu_custom_call.1} parent=11 // pred_fallthru
          _
        // Predicated region
        $region21: #{tpu_custom_call.1} parent=11 // pred_check
          %p373 = pneg %p147
        $region22: #{tpu_custom_call.1} parent=11 // pred_check_branch
          %375 = sbr.rel (%p373) target = $region24
        $region23: #{tpu_custom_call.1} parent=11 // pred_region
          %377 = vsyncadd [#allocation9], 0
          %s378 = sshll.u32 %s4, 4
          %s379 = int_to_ptr.hbm [resolvable:$true] %s378
          %s380 = sshll.u32 [#allocation8], 4
          %s381 = int_to_ptr.vmem [resolvable:$true] %s380
          %386 = dma.hbm_to_vmem [thread:$0]  %s379, 24576, %s381, [#allocation9], 128, 128, 8
        $region24: #{tpu_custom_call.1} parent=11 // pred_fallthru
          _
        // Predicated region
        $region25: #{tpu_custom_call.1} parent=11 // pred_check
          %p387 = pneg %p168
        $region26: #{tpu_custom_call.1} parent=11 // pred_check_branch
          %389 = sbr.rel (%p387) target = $region28
        $region27: #{tpu_custom_call.1} parent=11 // pred_region
          %391 = vsyncadd [#allocation9], 0
          %s392 = sshll.u32 %s5, 4
          %s393 = int_to_ptr.hbm [resolvable:$true] %s392
          %s394 = sshll.u32 [#allocation10], 4
          %s395 = int_to_ptr.vmem [resolvable:$true] %s394
          %400 = dma.hbm_to_vmem [thread:$0]  %s393, 7680, %s395, [#allocation9], 128, 128, 8
        $region28: #{tpu_custom_call.1} parent=11 // pred_fallthru
          _
        // Predicated region
        $region29: #{tpu_custom_call.1} parent=11 // pred_check
          %p401 = pneg %p189
        $region30: #{tpu_custom_call.1} parent=11 // pred_check_branch
          %403 = sbr.rel (%p401) target = $region32
        $region31: #{tpu_custom_call.1} parent=11 // pred_region
          %405 = vsyncadd [#allocation12], 0
          %s406 = sshll.u32 %s6, 4
          %s407 = int_to_ptr.hbm [resolvable:$true] %s406
          %s408 = sshll.u32 [#allocation11], 4
          %s409 = int_to_ptr.vmem [resolvable:$true] %s408
          %414 = dma.hbm_to_vmem [thread:$0]  %s407, 192, %s409, [#allocation12], 32, 32, 2
        $region32: #{tpu_custom_call.1} parent=11 // pred_fallthru
          _
        // Predicated region
        $region33: #{tpu_custom_call.1} parent=11 // pred_check
          %p415 = pneg %p210
        $region34: #{tpu_custom_call.1} parent=11 // pred_check_branch
          %417 = sbr.rel (%p415) target = $region36
        $region35: #{tpu_custom_call.1} parent=11 // pred_region
          %419 = vsyncadd [#allocation12], 0
          %s420 = sshll.u32 %s7, 4
          %s421 = int_to_ptr.hbm [resolvable:$true] %s420
          %s422 = sshll.u32 [#allocation13], 4
          %s423 = int_to_ptr.vmem [resolvable:$true] %s422
          %428 = dma.hbm_to_vmem [thread:$0]  %s421, 12288, %s423, [#allocation12], 128, 128, 8
        $region36: #{tpu_custom_call.1} parent=11 // pred_fallthru
          _
        // Predicated region
        $region37: #{tpu_custom_call.1} parent=11 // pred_check
          %p429 = pneg %p231
        $region38: #{tpu_custom_call.1} parent=11 // pred_check_branch
          %431 = sbr.rel (%p429) target = $region40
        $region39: #{tpu_custom_call.1} parent=11 // pred_region
          %433 = vsyncadd [#allocation15], 0
          %s434 = sshll.u32 %s8, 4
          %s435 = int_to_ptr.hbm [resolvable:$true] %s434
          %s436 = sshll.u32 [#allocation14], 4
          %s437 = int_to_ptr.vmem [resolvable:$true] %s436
          %442 = dma.hbm_to_vmem [thread:$0]  %s435, 192, %s437, [#allocation15], 32, 32, 2
        $region40: #{tpu_custom_call.1} parent=11 // pred_fallthru
          _
        // Predicated region
        $region41: #{tpu_custom_call.1} parent=11 // pred_check
          %p443 = pneg %p252
        $region42: #{tpu_custom_call.1} parent=11 // pred_check_branch
          %445 = sbr.rel (%p443) target = $region44
        $region43: #{tpu_custom_call.1} parent=11 // pred_region
          %447 = vsyncadd [#allocation15], 0
          %s448 = sshll.u32 %s9, 4
          %s449 = int_to_ptr.hbm [resolvable:$true] %s448
          %s450 = sshll.u32 [#allocation16], 4
          %s451 = int_to_ptr.vmem [resolvable:$true] %s450
          %456 = dma.hbm_to_vmem [thread:$0]  %s449, 1024, %s451, [#allocation15], 64, 64, 4
        $region44: #{tpu_custom_call.1} parent=11 // pred_fallthru
          _
        // Predicated region
        $region45: #{tpu_custom_call.1} parent=11 // pred_check
          %p457 = pneg %p273
        $region46: #{tpu_custom_call.1} parent=11 // pred_check_branch
          %459 = sbr.rel (%p457) target = $region48
        $region47: #{tpu_custom_call.1} parent=11 // pred_region
          _
        $region48: #{tpu_custom_call.1} parent=11 // pred_fallthru
          _
        // Predicated region
        $region49: #{tpu_custom_call.1} parent=11 // pred_check
          %p460 = pneg %p294
        $region50: #{tpu_custom_call.1} parent=11 // pred_check_branch
          %462 = sbr.rel (%p460) target = $region52
        $region51: #{tpu_custom_call.1} parent=11 // pred_region
          %464 = vsyncadd [#allocation18], 0
          %s465 = sshll.u32 %s11, 4
          %s466 = int_to_ptr.hbm [resolvable:$true] %s465
          %s467 = sshll.u32 [#allocation17], 4
          %s468 = int_to_ptr.vmem [resolvable:$true] %s467
          %473 = dma.hbm_to_vmem [thread:$0]  %s466, 2048, %s468, [#allocation18], 128, 128, 8
        $region52: #{tpu_custom_call.1} parent=11 // pred_fallthru
          _
        // Predicated region
        $region53: #{tpu_custom_call.1} parent=11 // pred_check
          %p474 = pneg %p315
        $region54: #{tpu_custom_call.1} parent=11 // pred_check_branch
          %476 = sbr.rel (%p474) target = $region56
        $region55: #{tpu_custom_call.1} parent=11 // pred_region
          _
        $region56: #{tpu_custom_call.1} parent=11 // pred_fallthru
          _
      $region12: #{tpu_custom_call.1} parent=5 // pred_fallthru
        _
      %p477 = scmp.lt.s32.totalorder %s32, 2
      // Predicated region
      $region57: #{tpu_custom_call.1} parent=5 // pred_check
        %p478 = pneg %p477
      $region58: #{tpu_custom_call.1} parent=5 // pred_check_branch
        %480 = sbr.rel (%p478) target = $region60
      $region59: #{tpu_custom_call.1} parent=5 // pred_region
        // Predicated region
        $region61: #{tpu_custom_call.1} parent=59 // pred_check
          %p481 = pneg %p52
        $region62: #{tpu_custom_call.1} parent=59 // pred_check_branch
          %483 = sbr.rel (%p481) target = $region64
        $region63: #{tpu_custom_call.1} parent=59 // pred_region
          %s484 = sand.u32 %s42, 1
          %s485 = scalar_lea.sflag [#allocation3], %s484
          %s486 = sand.u32 %s42, 1
          %s487 = smul.addr %s486, 64
          %s488 = scalar_lea.vmem [#allocation2], %s487
          %490 = vsyncadd %s485, 0
          %s491 = smul.addr %s32, 16
          %s492 = smul.addr %s491, 4
          %s493 = scalar_lea.hbm %s0, %s492
          %s494 = sshll.u32 %s493, 4
          %s495 = int_to_ptr.hbm [resolvable:$true] %s494
          %s496 = sshll.u32 %s488, 4
          %s497 = int_to_ptr.vmem [resolvable:$true] %s496
          %502 = dma.hbm_to_vmem [thread:$0]  %s495, 1024, %s497, %s485, 128, 128, 8
        $region64: #{tpu_custom_call.1} parent=59 // pred_fallthru
          _
        // Predicated region
        $region65: #{tpu_custom_call.1} parent=59 // pred_check
          %p503 = pneg %p78
        $region66: #{tpu_custom_call.1} parent=59 // pred_check_branch
          %505 = sbr.rel (%p503) target = $region68
        $region67: #{tpu_custom_call.1} parent=59 // pred_region
          %s506 = sand.u32 %s32, 1
          %s507 = scalar_lea.sflag [#allocation6], %s506
          %s508 = sand.u32 %s68, 1
          %s509 = smul.addr %s508, 32
          %s510 = scalar_lea.vmem [#allocation5], %s509
          %512 = vsyncadd %s507, 0
          %s513 = smul.addr %s32, 8
          %s514 = smul.addr %s513, 4
          %s515 = scalar_lea.hbm %s1, %s514
          %s516 = sshll.u32 %s515, 4
          %s517 = int_to_ptr.hbm [resolvable:$true] %s516
          %s518 = sshll.u32 %s510, 4
          %s519 = int_to_ptr.vmem [resolvable:$true] %s518
          %524 = dma.hbm_to_vmem [thread:$0]  %s517, 512, %s519, %s507, 64, 64, 4
        $region68: #{tpu_custom_call.1} parent=59 // pred_fallthru
          _
      $region60: #{tpu_custom_call.1} parent=5 // pred_fallthru
        _
      %p525 = scmp.le.s32.totalorder 1, %s32
      %p526 = scmp.lt.s32.totalorder %s32, 3
      %p527 = pnand %p525, %p526
      %p528 = pneg %p527
      // Predicated region
      $region69: #{tpu_custom_call.1} parent=5 // pred_check
        _
      $region70: #{tpu_custom_call.1} parent=5 // pred_check_branch
        %530 = sbr.rel (%p527) target = $region72
      $region71: #{tpu_custom_call.1} parent=5 // pred_region
        %s531 = ssub.s32 %s32, 1
        %s532 = sand.u32 %s45, 1
        %s533 = scalar_lea.sflag [#allocation3], %s532
        %s534 = sand.u32 %s45, 1
        %s535 = smul.addr %s534, 64
        %s536 = scalar_lea.vmem [#allocation2], %s535
        // Predicated region
        $region73: #{tpu_custom_call.1} parent=71 // pred_check
          %p537 = pneg %p58
        $region74: #{tpu_custom_call.1} parent=71 // pred_check_branch
          %539 = sbr.rel (%p537) target = $region76
        $region75: #{tpu_custom_call.1} parent=71 // pred_region
          %541 = dma.done %s533, 1024
        $region76: #{tpu_custom_call.1} parent=71 // pred_fallthru
          _
        %s542 = sand.u32 %s37, 1
        %s543 = scalar_lea.sflag [#allocation6], %s542
        %s544 = sand.u32 %s71, 1
        %s545 = smul.addr %s544, 32
        %s546 = scalar_lea.vmem [#allocation5], %s545
        // Predicated region
        $region77: #{tpu_custom_call.1} parent=71 // pred_check
          %p547 = pneg %p84
        $region78: #{tpu_custom_call.1} parent=71 // pred_check_branch
          %549 = sbr.rel (%p547) target = $region80
        $region79: #{tpu_custom_call.1} parent=71 // pred_region
          %551 = dma.done %s543, 512
        $region80: #{tpu_custom_call.1} parent=71 // pred_fallthru
          _
        // Predicated region
        $region81: #{tpu_custom_call.1} parent=71 // pred_check
          %p552 = pneg %p105
        $region82: #{tpu_custom_call.1} parent=71 // pred_check_branch
          %554 = sbr.rel (%p552) target = $region84
        $region83: #{tpu_custom_call.1} parent=71 // pred_region
          %556 = dma.done [#allocation6], 2048
        $region84: #{tpu_custom_call.1} parent=71 // pred_fallthru
          _
        // Predicated region
        $region85: #{tpu_custom_call.1} parent=71 // pred_check
          %p557 = pneg %p147
        $region86: #{tpu_custom_call.1} parent=71 // pred_check_branch
          %559 = sbr.rel (%p557) target = $region88
        $region87: #{tpu_custom_call.1} parent=71 // pred_region
          %561 = dma.done [#allocation9], 24576
        $region88: #{tpu_custom_call.1} parent=71 // pred_fallthru
          _
        // Predicated region
        $region89: #{tpu_custom_call.1} parent=71 // pred_check
          %p562 = pneg %p168
        $region90: #{tpu_custom_call.1} parent=71 // pred_check_branch
          %564 = sbr.rel (%p562) target = $region92
        $region91: #{tpu_custom_call.1} parent=71 // pred_region
          %566 = dma.done [#allocation9], 7680
        $region92: #{tpu_custom_call.1} parent=71 // pred_fallthru
          _
        // Predicated region
        $region93: #{tpu_custom_call.1} parent=71 // pred_check
          %p567 = pneg %p189
        $region94: #{tpu_custom_call.1} parent=71 // pred_check_branch
          %569 = sbr.rel (%p567) target = $region96
        $region95: #{tpu_custom_call.1} parent=71 // pred_region
          %571 = dma.done [#allocation12], 192
        $region96: #{tpu_custom_call.1} parent=71 // pred_fallthru
          _
        // Predicated region
        $region97: #{tpu_custom_call.1} parent=71 // pred_check
          %p572 = pneg %p210
        $region98: #{tpu_custom_call.1} parent=71 // pred_check_branch
          %574 = sbr.rel (%p572) target = $region100
        $region99: #{tpu_custom_call.1} parent=71 // pred_region
          %576 = dma.done [#allocation12], 12288
        $region100: #{tpu_custom_call.1} parent=71 // pred_fallthru
          _
        // Predicated region
        $region101: #{tpu_custom_call.1} parent=71 // pred_check
          %p577 = pneg %p231
        $region102: #{tpu_custom_call.1} parent=71 // pred_check_branch
          %579 = sbr.rel (%p577) target = $region104
        $region103: #{tpu_custom_call.1} parent=71 // pred_region
          %581 = dma.done [#allocation15], 192
        $region104: #{tpu_custom_call.1} parent=71 // pred_fallthru
          _
        // Predicated region
        $region105: #{tpu_custom_call.1} parent=71 // pred_check
          %p582 = pneg %p252
        $region106: #{tpu_custom_call.1} parent=71 // pred_check_branch
          %584 = sbr.rel (%p582) target = $region108
        $region107: #{tpu_custom_call.1} parent=71 // pred_region
          %586 = dma.done [#allocation15], 1024
        $region108: #{tpu_custom_call.1} parent=71 // pred_fallthru
          _
        // Predicated region
        $region109: #{tpu_custom_call.1} parent=71 // pred_check
          %p587 = pneg %p294
        $region110: #{tpu_custom_call.1} parent=71 // pred_check_branch
          %589 = sbr.rel (%p587) target = $region112
        $region111: #{tpu_custom_call.1} parent=71 // pred_region
          %591 = dma.done [#allocation18], 2048
        $region112: #{tpu_custom_call.1} parent=71 // pred_fallthru
          _
        %s592 = sand.u32 %s45, 1
        %s593 = scalar_lea.sflag [#allocation3], %s592
        %s594 = sand.u32 %s45, 1
        %s595 = smul.addr %s594, 64
        %s596 = scalar_lea.vmem [#allocation2], %s595
        %p597 = pneg %p58
        %p598 = pneg %p55
        %s599 = sand.u32 %s37, 1
        %s600 = scalar_lea.sflag [#allocation6], %s599
        %s601 = sand.u32 %s71, 1
        %s602 = smul.addr %s601, 32
        %s603 = scalar_lea.vmem [#allocation5], %s602
        %p604 = pneg %p84
        %p605 = pneg %p81
        %p606 = pneg %p105
        %p607 = pneg %p102
        %p608 = pneg %p126
        %p609 = pneg %p123
        %p610 = pneg %p147
        %p611 = pneg %p144
        %p612 = pneg %p168
        %p613 = pneg %p165
        %p614 = pneg %p189
        %p615 = pneg %p186
        %p616 = pneg %p210
        %p617 = pneg %p207
        %p618 = pneg %p231
        %p619 = pneg %p228
        %p620 = pneg %p252
        %p621 = pneg %p249
        %p622 = pneg %p273
        %p623 = pneg %p270
        %p624 = pneg %p294
        %p625 = pneg %p291
        %p626 = pneg %p315
        %p627 = pneg %p312
        %p628 = pneg %p341
        %p629 = pneg %p338
        %s630 = sand.u32 %s328, 1
        %s631 = scalar_lea.sflag [#allocation4], %s630
        %s632 = sand.u32 %s328, 1
        %s633 = smul.addr %s632, 128
        %s634 = scalar_lea.vmem [#allocation19], %s633
        %v636 = vld [vmem:[%s536] sm:$0xff]
        %v637 = vld [vmem:[%s536 + $0x8] sm:$0xff]
        %v638 = vld [vmem:[%s536 + $0x10] sm:$0xff]
        %v639 = vld [vmem:[%s536 + $0x18] sm:$0xff]
        %v640 = vld [vmem:[%s536 + $0x20] sm:$0xff]
        %v641 = vld [vmem:[%s536 + $0x28] sm:$0xff]
        %v642 = vld [vmem:[%s536 + $0x30] sm:$0xff]
        %v643 = vld [vmem:[%s536 + $0x38] sm:$0xff]
        %v644 = vld [vmem:[%s546] sm:$0xf]
        %v645 = vld [vmem:[%s546 + $0x4] sm:$0xf]
        %v646 = vld [vmem:[%s546 + $0x8] sm:$0xf]
        %v647 = vld [vmem:[%s546 + $0xc] sm:$0xf]
        %v648 = vld [vmem:[%s546 + $0x10] sm:$0xf]
        %v649 = vld [vmem:[%s546 + $0x14] sm:$0xf]
        %v650 = vld [vmem:[%s546 + $0x18] sm:$0xf]
        %v651 = vld [vmem:[%s546 + $0x1c] sm:$0xf]
        %v652 = vlaneseq
        %v653 = vshrl.u32 %v652, 7
        %v654 = vadd.s32 %v653, 8
        %v655 = vadd.s32 %v653, 16
        %v656 = vadd.s32 %v653, 24
        %v657 = vadd.s32 %v653, 32
        %v658 = vadd.s32 %v653, 40
        %v659 = vadd.s32 %v653, 48
        %v660 = vadd.s32 %v653, 56
        %vm661 = vcmp.lt.s32.totalorder %v653, 0
        %v662 = vsub.s32 0, %v653
        %v663 = vsel %vm661, %v662, %v653
        %v664 = vshrl.u32 %v663, 6
        %v665 = vand.u32 %v663, 63
        %v666 = vsub.s32 0, %v665
        %v667 = vsel %vm661, %v666, %v665
        %vm668 = vcmp.lt.s32.totalorder %v654, 0
        %v669 = vsub.s32 0, %v654
        %v670 = vsel %vm668, %v669, %v654
        %v671 = vshrl.u32 %v670, 6
        %v672 = vand.u32 %v670, 63
        %v673 = vsub.s32 0, %v672
        %v674 = vsel %vm668, %v673, %v672
        %vm675 = vcmp.lt.s32.totalorder %v655, 0
        %v676 = vsub.s32 0, %v655
        %v677 = vsel %vm675, %v676, %v655
        %v678 = vshrl.u32 %v677, 6
        %v679 = vand.u32 %v677, 63
        %v680 = vsub.s32 0, %v679
        %v681 = vsel %vm675, %v680, %v679
        %vm682 = vcmp.lt.s32.totalorder %v656, 0
        %v683 = vsub.s32 0, %v656
        %v684 = vsel %vm682, %v683, %v656
        %v685 = vshrl.u32 %v684, 6
        %v686 = vand.u32 %v684, 63
        %v687 = vsub.s32 0, %v686
        %v688 = vsel %vm682, %v687, %v686
        %vm689 = vcmp.lt.s32.totalorder %v657, 0
        %v690 = vsub.s32 0, %v657
        %v691 = vsel %vm689, %v690, %v657
        %v692 = vshrl.u32 %v691, 6
        %v693 = vand.u32 %v691, 63
        %v694 = vsub.s32 0, %v693
        %v695 = vsel %vm689, %v694, %v693
        %vm696 = vcmp.lt.s32.totalorder %v658, 0
        %v697 = vsub.s32 0, %v658
        %v698 = vsel %vm696, %v697, %v658
        %v699 = vshrl.u32 %v698, 6
        %v700 = vand.u32 %v698, 63
        %v701 = vsub.s32 0, %v700
        %v702 = vsel %vm696, %v701, %v700
        %vm703 = vcmp.lt.s32.totalorder %v659, 0
        %v704 = vsub.s32 0, %v659
        %v705 = vsel %vm703, %v704, %v659
        %v706 = vshrl.u32 %v705, 6
        %v707 = vand.u32 %v705, 63
        %v708 = vsub.s32 0, %v707
        %v709 = vsel %vm703, %v708, %v707
        %vm710 = vcmp.lt.s32.totalorder %v660, 0
        %v711 = vsub.s32 0, %v660
        %v712 = vsel %vm710, %v711, %v660
        %v713 = vshrl.u32 %v712, 6
        %v714 = vand.u32 %v712, 63
        %v715 = vsub.s32 0, %v714
        %v716 = vsel %vm710, %v715, %v714
        %vm717 = vcmp.ne.s32.totalorder %v667, 0
        %vm718 = vcmp.ne.s32.totalorder %v674, 0
        %vm719 = vcmp.ne.s32.totalorder %v681, 0
        %vm720 = vcmp.ne.s32.totalorder %v688, 0
        %vm721 = vcmp.ne.s32.totalorder %v695, 0
        %vm722 = vcmp.ne.s32.totalorder %v702, 0
        %vm723 = vcmp.ne.s32.totalorder %v709, 0
        %vm724 = vcmp.ne.s32.totalorder %v716, 0
        %vm725 = vcmp.lt.s32.totalorder %v667, 0
        %vm726 = vcmp.lt.s32.totalorder %v674, 0
        %vm727 = vcmp.lt.s32.totalorder %v681, 0
        %vm728 = vcmp.lt.s32.totalorder %v688, 0
        %vm729 = vcmp.lt.s32.totalorder %v695, 0
        %vm730 = vcmp.lt.s32.totalorder %v702, 0
        %vm731 = vcmp.lt.s32.totalorder %v709, 0
        %vm732 = vcmp.lt.s32.totalorder %v716, 0
        %vm733 = vmand %vm725, %vm717
        %vm734 = vmand %vm726, %vm718
        %vm735 = vmand %vm727, %vm719
        %vm736 = vmand %vm728, %vm720
        %vm737 = vmand %vm729, %vm721
        %vm738 = vmand %vm730, %vm722
        %vm739 = vmand %vm731, %vm723
        %vm740 = vmand %vm732, %vm724
        %v741 = vadd.s32 %v667, 64
        %v742 = vadd.s32 %v674, 64
        %v743 = vadd.s32 %v681, 64
        %v744 = vadd.s32 %v688, 64
        %v745 = vadd.s32 %v695, 64
        %v746 = vadd.s32 %v702, 64
        %v747 = vadd.s32 %v709, 64
        %v748 = vadd.s32 %v716, 64
        %v749 = vsel %vm733, %v741, %v667
        %v750 = vsel %vm734, %v742, %v674
        %v751 = vsel %vm735, %v743, %v681
        %v752 = vsel %vm736, %v744, %v688
        %v753 = vsel %vm737, %v745, %v695
        %v754 = vsel %vm738, %v746, %v702
        %v755 = vsel %vm739, %v747, %v709
        %v756 = vsel %vm740, %v748, %v716
        %vm757 = vcmp.ge.s32.totalorder %v749, 1
        %vm758 = vcmp.ge.s32.totalorder %v750, 1
        %vm759 = vcmp.ge.s32.totalorder %v751, 1
        %vm760 = vcmp.ge.s32.totalorder %v752, 1
        %vm761 = vcmp.ge.s32.totalorder %v753, 1
        %vm762 = vcmp.ge.s32.totalorder %v754, 1
        %vm763 = vcmp.ge.s32.totalorder %v755, 1
        %vm764 = vcmp.ge.s32.totalorder %v756, 1
        %vm765 = vcmp.ge.s32.totalorder %v749, 2
        %vm766 = vcmp.ge.s32.totalorder %v750, 2
        %vm767 = vcmp.ge.s32.totalorder %v751, 2
        %vm768 = vcmp.ge.s32.totalorder %v752, 2
        %vm769 = vcmp.ge.s32.totalorder %v753, 2
        %vm770 = vcmp.ge.s32.totalorder %v754, 2
        %vm771 = vcmp.ge.s32.totalorder %v755, 2
        %vm772 = vcmp.ge.s32.totalorder %v756, 2
        %vm773 = vcmp.ge.s32.totalorder %v749, 4
        %vm774 = vcmp.ge.s32.totalorder %v750, 4
        %vm775 = vcmp.ge.s32.totalorder %v751, 4
        %vm776 = vcmp.ge.s32.totalorder %v752, 4
        %vm777 = vcmp.ge.s32.totalorder %v753, 4
        %vm778 = vcmp.ge.s32.totalorder %v754, 4
        %vm779 = vcmp.ge.s32.totalorder %v755, 4
        %vm780 = vcmp.ge.s32.totalorder %v756, 4
        %v781 = vld [vmem:[#allocation7] sm:$0xf]
        %v782 = vld [vmem:[#allocation7 + $0x4] sm:$0xf]
        %v783 = vld [vmem:[#allocation7 + $0x8] sm:$0xf]
        %v784 = vld [vmem:[#allocation7 + $0xc] sm:$0xf]
        %v785 = vld [vmem:[#allocation7 + $0x10] sm:$0xf]
        %v786 = vld [vmem:[#allocation7 + $0x14] sm:$0xf]
        %v787 = vld [vmem:[#allocation7 + $0x18] sm:$0xf]
        %v788 = vld [vmem:[#allocation7 + $0x1c] sm:$0xf]
        %v789 = vld [vmem:[#allocation7 + $0x20] sm:$0xf]
        %v790 = vld [vmem:[#allocation7 + $0x24] sm:$0xf]
        %v791 = vld [vmem:[#allocation7 + $0x28] sm:$0xf]
        %v792 = vld [vmem:[#allocation7 + $0x2c] sm:$0xf]
        %v793 = vld [vmem:[#allocation7 + $0x30] sm:$0xf]
        %v794 = vld [vmem:[#allocation7 + $0x34] sm:$0xf]
        %v795 = vld [vmem:[#allocation7 + $0x38] sm:$0xf]
        %v796 = vld [vmem:[#allocation7 + $0x3c] sm:$0xf]
        %v797 = vld [vmem:[#allocation7 + $0x40] sm:$0xf]
        %v798 = vld [vmem:[#allocation7 + $0x44] sm:$0xf]
        %v799 = vld [vmem:[#allocation7 + $0x48] sm:$0xf]
        %v800 = vld [vmem:[#allocation7 + $0x4c] sm:$0xf]
        %v801 = vld [vmem:[#allocation7 + $0x50] sm:$0xf]
        %v802 = vld [vmem:[#allocation7 + $0x54] sm:$0xf]
        %v803 = vld [vmem:[#allocation7 + $0x58] sm:$0xf]
        %v804 = vld [vmem:[#allocation7 + $0x5c] sm:$0xf]
        %v805 = vld [vmem:[#allocation7 + $0x60] sm:$0xf]
        %v806 = vld [vmem:[#allocation7 + $0x64] sm:$0xf]
        %v807 = vld [vmem:[#allocation7 + $0x68] sm:$0xf]
        %v808 = vld [vmem:[#allocation7 + $0x6c] sm:$0xf]
        %v809 = vld [vmem:[#allocation7 + $0x70] sm:$0xf]
        %v810 = vld [vmem:[#allocation7 + $0x74] sm:$0xf]
        %v811 = vld [vmem:[#allocation7 + $0x78] sm:$0xf]
        %v812 = vld [vmem:[#allocation7 + $0x7c] sm:$0xf]
        %v813 = vld [vmem:[%s3] sm:$0x1]
        %v815 = vperm.slane %v813, 0
        %v825 = vunpack.c.l.b16 %v636
        %v826 = vunpack.c.h.b16 %v636
        %v827 = vunpack.c.l.b16 %v637
        %v828 = vunpack.c.h.b16 %v637
        %v829 = vunpack.c.l.b16 %v638
        %v830 = vunpack.c.h.b16 %v638
        %v831 = vunpack.c.l.b16 %v639
        %v832 = vunpack.c.h.b16 %v639
        %v833 = vunpack.c.l.b16 %v640
        %v834 = vunpack.c.h.b16 %v640
        %v835 = vunpack.c.l.b16 %v641
        %v836 = vunpack.c.h.b16 %v641
        %v837 = vunpack.c.l.b16 %v642
        %v838 = vunpack.c.h.b16 %v642
        %v839 = vunpack.c.l.b16 %v643
        %v840 = vunpack.c.h.b16 %v643
        %v841 = vpack.c.b16 %v827, %v825
        %v842 = vpack.c.b16 %v828, %v826
        %v843 = vpack.c.b16 %v831, %v829
        %v844 = vpack.c.b16 %v832, %v830
        %v845 = vpack.c.b16 %v835, %v833
        %v846 = vpack.c.b16 %v836, %v834
        %v847 = vpack.c.b16 %v839, %v837
        %v848 = vpack.c.b16 %v840, %v838
        %v889 = vunpack.c.l.b16 %v781
        %v890 = vunpack.c.l.b16 %v782
        %v891 = vunpack.c.l.b16 %v783
        %v892 = vunpack.c.l.b16 %v784
        %v893 = vunpack.c.l.b16 %v785
        %v894 = vunpack.c.l.b16 %v786
        %v895 = vunpack.c.l.b16 %v787
        %v896 = vunpack.c.l.b16 %v788
        %v897 = vunpack.c.l.b16 %v789
        %v898 = vunpack.c.l.b16 %v790
        %v899 = vunpack.c.l.b16 %v791
        %v900 = vunpack.c.l.b16 %v792
        %v901 = vunpack.c.l.b16 %v793
        %v902 = vunpack.c.l.b16 %v794
        %v903 = vunpack.c.l.b16 %v795
        %v904 = vunpack.c.l.b16 %v796
        %v905 = vunpack.c.l.b16 %v797
        %v906 = vunpack.c.l.b16 %v798
        %v907 = vunpack.c.l.b16 %v799
        %v908 = vunpack.c.l.b16 %v800
        %v909 = vunpack.c.l.b16 %v801
        %v910 = vunpack.c.l.b16 %v802
        %v911 = vunpack.c.l.b16 %v803
        %v912 = vunpack.c.l.b16 %v804
        %v913 = vunpack.c.l.b16 %v805
        %v914 = vunpack.c.l.b16 %v806
        %v915 = vunpack.c.l.b16 %v807
        %v916 = vunpack.c.l.b16 %v808
        %v917 = vunpack.c.l.b16 %v809
        %v918 = vunpack.c.l.b16 %v810
        %v919 = vunpack.c.l.b16 %v811
        %v920 = vunpack.c.l.b16 %v812
        %v921 = vpack.c.b16 %v890, %v889
        %v922 = vpack.c.b16 %v892, %v891
        %v923 = vpack.c.b16 %v894, %v893
        %v924 = vpack.c.b16 %v896, %v895
        %v925 = vpack.c.b16 %v898, %v897
        %v926 = vpack.c.b16 %v900, %v899
        %v927 = vpack.c.b16 %v902, %v901
        %v928 = vpack.c.b16 %v904, %v903
        %v929 = vpack.c.b16 %v906, %v905
        %v930 = vpack.c.b16 %v908, %v907
        %v931 = vpack.c.b16 %v910, %v909
        %v932 = vpack.c.b16 %v912, %v911
        %v933 = vpack.c.b16 %v914, %v913
        %v934 = vpack.c.b16 %v916, %v915
        %v935 = vpack.c.b16 %v918, %v917
        %v936 = vpack.c.b16 %v920, %v919
        %953 = vmatpush.bf16.msra.mxu0 %v928
        %954 = vmatpush.bf16.msra.mxu0 %v927
        %955 = vmatpush.bf16.msra.mxu0 %v926
        %956 = vmatpush.bf16.msra.mxu0 %v925
        %957 = vmatpush.bf16.msra.mxu0 %v924
        %958 = vmatpush.bf16.msra.mxu0 %v923
        %959 = vmatpush.bf16.msra.mxu0 %v922
        %960 = vmatpush.bf16.msra.mxu0 %v921
        %961 = vmatmul.bf16.gmra.mxu0 %v841
        %v962 = vpop.f32.mrf.mxu0
        %v963 = vadd.f32 %v815, %v962
        %v964 = vpop.f32.mrf.mxu0
        %v965 = vadd.f32 %v815, %v964
        %966 = vmatmul.bf16.gmra.mxu0 %v843
        %v967 = vpop.f32.mrf.mxu0
        %v968 = vadd.f32 %v815, %v967
        %v969 = vpop.f32.mrf.mxu0
        %v970 = vadd.f32 %v815, %v969
        %971 = vmatmul.bf16.gmra.mxu0 %v845
        %v972 = vpop.f32.mrf.mxu0
        %v973 = vadd.f32 %v815, %v972
        %v974 = vpop.f32.mrf.mxu0
        %v975 = vadd.f32 %v815, %v974
        %976 = vmatmul.bf16.gmra.mxu0 %v847
        %v977 = vpop.f32.mrf.mxu0
        %v978 = vadd.f32 %v815, %v977
        %v979 = vpop.f32.mrf.mxu0
        %v980 = vadd.f32 %v815, %v979
        %981 = vdwg.mxu0
        %982 = vmatpush.bf16.msra.mxu0 %v936
        %983 = vmatpush.bf16.msra.mxu0 %v935
        %984 = vmatpush.bf16.msra.mxu0 %v934
        %985 = vmatpush.bf16.msra.mxu0 %v933
        %986 = vmatpush.bf16.msra.mxu0 %v932
        %987 = vmatpush.bf16.msra.mxu0 %v931
        %988 = vmatpush.bf16.msra.mxu0 %v930
        %989 = vmatpush.bf16.msra.mxu0 %v929
        %990 = vmatmul.bf16.gmra.mxu0 %v842
        %v991 = vpop.f32.mrf.mxu0
        %v992 = vadd.f32 %v963, %v991
        %v993 = vpop.f32.mrf.mxu0
        %v994 = vadd.f32 %v965, %v993
        %995 = vmatmul.bf16.gmra.mxu0 %v844
        %v996 = vpop.f32.mrf.mxu0
        %v997 = vadd.f32 %v968, %v996
        %v998 = vpop.f32.mrf.mxu0
        %v999 = vadd.f32 %v970, %v998
        %1000 = vmatmul.bf16.gmra.mxu0 %v846
        %v1001 = vpop.f32.mrf.mxu0
        %v1002 = vadd.f32 %v973, %v1001
        %v1003 = vpop.f32.mrf.mxu0
        %v1004 = vadd.f32 %v975, %v1003
        %1005 = vmatmul.bf16.gmra.mxu0 %v848
        %v1006 = vpop.f32.mrf.mxu0
        %v1007 = vadd.f32 %v978, %v1006
        %v1008 = vpop.f32.mrf.mxu0
        %v1009 = vadd.f32 %v980, %v1008
        %1010 = vdwg.mxu0
        %s1011 = scalar_lea.vmem [#allocation8], 128
        %v1012 = vld [vmem:[%s1011] sm:$0xff]
        %v1013 = vld [vmem:[%s1011 + $0x8] sm:$0xff]
        %v1014 = vld [vmem:[%s1011 + $0x10] sm:$0xff]
        %v1015 = vld [vmem:[%s1011 + $0x18] sm:$0xff]
        %v1016 = vld [vmem:[%s1011 + $0x20] sm:$0xff]
        %v1017 = vld [vmem:[%s1011 + $0x28] sm:$0xff]
        %v1018 = vld [vmem:[%s1011 + $0x30] sm:$0xff]
        %v1019 = vld [vmem:[%s1011 + $0x38] sm:$0xff]
        %v1020 = vld [vmem:[%s1011 + $0x40] sm:$0xff]
        %v1021 = vld [vmem:[%s1011 + $0x48] sm:$0xff]
        %v1022 = vld [vmem:[%s1011 + $0x50] sm:$0xff]
        %v1023 = vld [vmem:[%s1011 + $0x58] sm:$0xff]
        %v1024 = vld [vmem:[%s1011 + $0x60] sm:$0xff]
        %v1025 = vld [vmem:[%s1011 + $0x68] sm:$0xff]
        %v1026 = vld [vmem:[%s1011 + $0x70] sm:$0xff]
        %v1027 = vld [vmem:[%s1011 + $0x78] sm:$0xff]
        %v1028 = vpack.c.bf16 %v994, %v992
        %v1029 = vpack.c.bf16 %v999, %v997
        %v1030 = vpack.c.bf16 %v1004, %v1002
        %v1031 = vpack.c.bf16 %v1009, %v1007
        %v1032 = vld [vmem:[#allocation10] sm:$0xff]
        %v1033 = vld [vmem:[#allocation10 + $0x8] sm:$0xff]
        %v1034 = vld [vmem:[#allocation10 + $0x10] sm:$0xff]
        %v1035 = vld [vmem:[#allocation10 + $0x18] sm:$0xff]
        %v1036 = vld [vmem:[#allocation10 + $0x20] sm:$0xff]
        %v1037 = vld [vmem:[#allocation10 + $0x28] sm:$0xff]
        %v1038 = vld [vmem:[#allocation10 + $0x30] sm:$0xff]
        %v1039 = vld [vmem:[#allocation10 + $0x38] sm:$0xff]
        %v1040 = vld [vmem:[#allocation10 + $0x40] sm:$0xff]
        %v1041 = vld [vmem:[#allocation10 + $0x48] sm:$0xff]
        %v1050 = vunpack.c.l.b16 %v644
        %v1051 = vunpack.c.l.b16 %v645
        %v1052 = vunpack.c.l.b16 %v646
        %v1053 = vunpack.c.l.b16 %v647
        %v1054 = vunpack.c.l.b16 %v648
        %v1055 = vunpack.c.l.b16 %v649
        %v1056 = vunpack.c.l.b16 %v650
        %v1057 = vunpack.c.l.b16 %v651
        %v1058 = vpack.c.b16 %v1051, %v1050
        %v1059 = vpack.c.b16 %v1053, %v1052
        %v1060 = vpack.c.b16 %v1055, %v1054
        %v1061 = vpack.c.b16 %v1057, %v1056
        %v1072 = vunpack.c.l.b16 %v1032
        %v1073 = vunpack.c.h.b16 %v1032
        %v1074 = vunpack.c.l.b16 %v1033
        %v1075 = vunpack.c.h.b16 %v1033
        %v1076 = vunpack.c.l.b16 %v1034
        %v1077 = vunpack.c.h.b16 %v1034
        %v1078 = vunpack.c.l.b16 %v1035
        %v1079 = vunpack.c.h.b16 %v1035
        %v1080 = vunpack.c.l.b16 %v1036
        %v1081 = vunpack.c.h.b16 %v1036
        %v1082 = vunpack.c.l.b16 %v1037
        %v1083 = vunpack.c.h.b16 %v1037
        %v1084 = vunpack.c.l.b16 %v1038
        %v1085 = vunpack.c.h.b16 %v1038
        %v1086 = vunpack.c.l.b16 %v1039
        %v1087 = vunpack.c.h.b16 %v1039
        %v1088 = vunpack.c.l.b16 %v1040
        %v1089 = vunpack.c.h.b16 %v1040
        %v1090 = vunpack.c.l.b16 %v1041
        %v1091 = vunpack.c.h.b16 %v1041
        %v1092 = vpack.c.b16 %v1074, %v1072
        %v1093 = vpack.c.b16 %v1075, %v1073
        %v1094 = vpack.c.b16 %v1078, %v1076
        %v1095 = vpack.c.b16 %v1079, %v1077
        %v1096 = vpack.c.b16 %v1082, %v1080
        %v1097 = vpack.c.b16 %v1083, %v1081
        %v1098 = vpack.c.b16 %v1086, %v1084
        %v1099 = vpack.c.b16 %v1087, %v1085
        %v1100 = vpack.c.b16 %v1090, %v1088
        %v1101 = vpack.c.b16 %v1091, %v1089
        %vm1112 = vcmask 654336
        %v1114 = vsel %vm1112, %v1058, 0
        %v1117 = vsel %vm1112, %v1059, 0
        %v1120 = vsel %vm1112, %v1060, 0
        %v1123 = vsel %vm1112, %v1061, 0
        %1125 = vmatpush.bf16.msra.mxu0 0
        %1126 = vmatpush.bf16.msra.mxu0 0
        %1127 = vmatpush.bf16.msra.mxu0 0
        %1128 = vmatpush.bf16.msra.mxu0 %v1100
        %1129 = vmatpush.bf16.msra.mxu0 %v1098
        %1130 = vmatpush.bf16.msra.mxu0 %v1096
        %1131 = vmatpush.bf16.msra.mxu0 %v1094
        %1132 = vmatpush.bf16.msra.mxu0 %v1092
        %1133 = vmatmul.bf16.gmra.mxu0 %v1114
        %v1134 = vpop.f32.mrf.mxu0
        %v1135 = vadd.f32 0.0, %v1134
        %v1136 = vpop.f32.mrf.mxu0
        %v1137 = vadd.f32 0.0, %v1136
        %1138 = vmatmul.bf16.gmra.mxu0 %v1117
        %v1139 = vpop.f32.mrf.mxu0
        %v1140 = vadd.f32 0.0, %v1139
        %v1141 = vpop.f32.mrf.mxu0
        %v1142 = vadd.f32 0.0, %v1141
        %1143 = vmatmul.bf16.gmra.mxu0 %v1120
        %v1144 = vpop.f32.mrf.mxu0
        %v1145 = vadd.f32 0.0, %v1144
        %v1146 = vpop.f32.mrf.mxu0
        %v1147 = vadd.f32 0.0, %v1146
        %1148 = vmatmul.bf16.gmra.mxu0 %v1123
        %v1149 = vpop.f32.mrf.mxu0
        %v1150 = vadd.f32 0.0, %v1149
        %v1151 = vpop.f32.mrf.mxu0
        %v1152 = vadd.f32 0.0, %v1151
        %1153 = vdwg.mxu0
        %1154 = vmatpush.bf16.msra.mxu0 0
        %1155 = vmatpush.bf16.msra.mxu0 0
        %1156 = vmatpush.bf16.msra.mxu0 0
        %1157 = vmatpush.bf16.msra.mxu0 %v1101
        %1158 = vmatpush.bf16.msra.mxu0 %v1099
        %1159 = vmatpush.bf16.msra.mxu0 %v1097
        %1160 = vmatpush.bf16.msra.mxu0 %v1095
        %1161 = vmatpush.bf16.msra.mxu0 %v1093
        %1162 = vmatmul.bf16.gmra.mxu0 %v1114
        %v1163 = vpop.f32.mrf.mxu0
        %v1164 = vadd.f32 0.0, %v1163
        %v1165 = vpop.f32.mrf.mxu0
        %v1166 = vadd.f32 0.0, %v1165
        %1167 = vmatmul.bf16.gmra.mxu0 %v1117
        %v1168 = vpop.f32.mrf.mxu0
        %v1169 = vadd.f32 0.0, %v1168
        %v1170 = vpop.f32.mrf.mxu0
        %v1171 = vadd.f32 0.0, %v1170
        %1172 = vmatmul.bf16.gmra.mxu0 %v1120
        %v1173 = vpop.f32.mrf.mxu0
        %v1174 = vadd.f32 0.0, %v1173
        %v1175 = vpop.f32.mrf.mxu0
        %v1176 = vadd.f32 0.0, %v1175
        %1177 = vmatmul.bf16.gmra.mxu0 %v1123
        %v1178 = vpop.f32.mrf.mxu0
        %v1179 = vadd.f32 0.0, %v1178
        %v1180 = vpop.f32.mrf.mxu0
        %v1181 = vadd.f32 0.0, %v1180
        %1182 = vdwg.mxu0
        %v1199 = vunpack.c.l.b16 %v1012
        %v1200 = vunpack.c.h.b16 %v1012
        %v1201 = vunpack.c.l.b16 %v1013
        %v1202 = vunpack.c.h.b16 %v1013
        %v1203 = vunpack.c.l.b16 %v1014
        %v1204 = vunpack.c.h.b16 %v1014
        %v1205 = vunpack.c.l.b16 %v1015
        %v1206 = vunpack.c.h.b16 %v1015
        %v1207 = vunpack.c.l.b16 %v1016
        %v1208 = vunpack.c.h.b16 %v1016
        %v1209 = vunpack.c.l.b16 %v1017
        %v1210 = vunpack.c.h.b16 %v1017
        %v1211 = vunpack.c.l.b16 %v1018
        %v1212 = vunpack.c.h.b16 %v1018
        %v1213 = vunpack.c.l.b16 %v1019
        %v1214 = vunpack.c.h.b16 %v1019
        %v1215 = vunpack.c.l.b16 %v1020
        %v1216 = vunpack.c.h.b16 %v1020
        %v1217 = vunpack.c.l.b16 %v1021
        %v1218 = vunpack.c.h.b16 %v1021
        %v1219 = vunpack.c.l.b16 %v1022
        %v1220 = vunpack.c.h.b16 %v1022
        %v1221 = vunpack.c.l.b16 %v1023
        %v1222 = vunpack.c.h.b16 %v1023
        %v1223 = vunpack.c.l.b16 %v1024
        %v1224 = vunpack.c.h.b16 %v1024
        %v1225 = vunpack.c.l.b16 %v1025
        %v1226 = vunpack.c.h.b16 %v1025
        %v1227 = vunpack.c.l.b16 %v1026
        %v1228 = vunpack.c.h.b16 %v1026
        %v1229 = vunpack.c.l.b16 %v1027
        %v1230 = vunpack.c.h.b16 %v1027
        %v1231 = vpack.c.b16 %v1201, %v1199
        %v1232 = vpack.c.b16 %v1202, %v1200
        %v1233 = vpack.c.b16 %v1205, %v1203
        %v1234 = vpack.c.b16 %v1206, %v1204
        %v1235 = vpack.c.b16 %v1209, %v1207
        %v1236 = vpack.c.b16 %v1210, %v1208
        %v1237 = vpack.c.b16 %v1213, %v1211
        %v1238 = vpack.c.b16 %v1214, %v1212
        %v1239 = vpack.c.b16 %v1217, %v1215
        %v1240 = vpack.c.b16 %v1218, %v1216
        %v1241 = vpack.c.b16 %v1221, %v1219
        %v1242 = vpack.c.b16 %v1222, %v1220
        %v1243 = vpack.c.b16 %v1225, %v1223
        %v1244 = vpack.c.b16 %v1226, %v1224
        %v1245 = vpack.c.b16 %v1229, %v1227
        %v1246 = vpack.c.b16 %v1230, %v1228
        %1263 = vmatpush.bf16.msra.mxu0 %v1245
        %1264 = vmatpush.bf16.msra.mxu0 %v1243
        %1265 = vmatpush.bf16.msra.mxu0 %v1241
        %1266 = vmatpush.bf16.msra.mxu0 %v1239
        %1267 = vmatpush.bf16.msra.mxu0 %v1237
        %1268 = vmatpush.bf16.msra.mxu0 %v1235
        %1269 = vmatpush.bf16.msra.mxu0 %v1233
        %1270 = vmatpush.bf16.msra.mxu0 %v1231
        %1271 = vmatmul.bf16.gmra.mxu0 %v1028
        %v1272 = vpop.f32.mrf.mxu0
        %v1273 = vadd.f32 %v1135, %v1272
        %v1274 = vpop.f32.mrf.mxu0
        %v1275 = vadd.f32 %v1137, %v1274
        %1276 = vmatmul.bf16.gmra.mxu0 %v1029
        %v1277 = vpop.f32.mrf.mxu0
        %v1278 = vadd.f32 %v1140, %v1277
        %v1279 = vpop.f32.mrf.mxu0
        %v1280 = vadd.f32 %v1142, %v1279
        %1281 = vmatmul.bf16.gmra.mxu0 %v1030
        %v1282 = vpop.f32.mrf.mxu0
        %v1283 = vadd.f32 %v1145, %v1282
        %v1284 = vpop.f32.mrf.mxu0
        %v1285 = vadd.f32 %v1147, %v1284
        %1286 = vmatmul.bf16.gmra.mxu0 %v1031
        %v1287 = vpop.f32.mrf.mxu0
        %v1288 = vadd.f32 %v1150, %v1287
        %v1289 = vpop.f32.mrf.mxu0
        %v1290 = vadd.f32 %v1152, %v1289
        %1291 = vdwg.mxu0
        %1292 = vmatpush.bf16.msra.mxu0 %v1246
        %1293 = vmatpush.bf16.msra.mxu0 %v1244
        %1294 = vmatpush.bf16.msra.mxu0 %v1242
        %1295 = vmatpush.bf16.msra.mxu0 %v1240
        %1296 = vmatpush.bf16.msra.mxu0 %v1238
        %1297 = vmatpush.bf16.msra.mxu0 %v1236
        %1298 = vmatpush.bf16.msra.mxu0 %v1234
        %1299 = vmatpush.bf16.msra.mxu0 %v1232
        %1300 = vmatmul.bf16.gmra.mxu0 %v1028
        %v1301 = vpop.f32.mrf.mxu0
        %v1302 = vadd.f32 %v1164, %v1301
        %v1303 = vpop.f32.mrf.mxu0
        %v1304 = vadd.f32 %v1166, %v1303
        %1305 = vmatmul.bf16.gmra.mxu0 %v1029
        %v1306 = vpop.f32.mrf.mxu0
        %v1307 = vadd.f32 %v1169, %v1306
        %v1308 = vpop.f32.mrf.mxu0
        %v1309 = vadd.f32 %v1171, %v1308
        %1310 = vmatmul.bf16.gmra.mxu0 %v1030
        %v1311 = vpop.f32.mrf.mxu0
        %v1312 = vadd.f32 %v1174, %v1311
        %v1313 = vpop.f32.mrf.mxu0
        %v1314 = vadd.f32 %v1176, %v1313
        %1315 = vmatmul.bf16.gmra.mxu0 %v1031
        %v1316 = vpop.f32.mrf.mxu0
        %v1317 = vadd.f32 %v1179, %v1316
        %v1318 = vpop.f32.mrf.mxu0
        %v1319 = vadd.f32 %v1181, %v1318
        %1320 = vdwg.mxu0
        %v1321 = vld [vmem:[#allocation11] sm:$0x3]
        %v1323 = vperm.slane %v1321, 0
        %v1324 = vperm.slane %v1321, 1
        %v1327 = vadd.f32 %v1273, %v1323
        %v1328 = vadd.f32 %v1302, %v1324
        %v1329 = vadd.f32 %v1275, %v1323
        %v1330 = vadd.f32 %v1304, %v1324
        %v1331 = vadd.f32 %v1278, %v1323
        %v1332 = vadd.f32 %v1307, %v1324
        %v1333 = vadd.f32 %v1280, %v1323
        %v1334 = vadd.f32 %v1309, %v1324
        %v1335 = vadd.f32 %v1283, %v1323
        %v1336 = vadd.f32 %v1312, %v1324
        %v1337 = vadd.f32 %v1285, %v1323
        %v1338 = vadd.f32 %v1314, %v1324
        %v1339 = vadd.f32 %v1288, %v1323
        %v1340 = vadd.f32 %v1317, %v1324
        %v1341 = vadd.f32 %v1290, %v1323
        %v1342 = vadd.f32 %v1319, %v1324
        %v1343 = vrot.slane %v992, 7
        %v1344 = vrot.slane %v994, 7
        %v1345 = vrot.slane %v997, 7
        %v1346 = vrot.slane %v999, 7
        %v1347 = vrot.slane %v1002, 7
        %v1348 = vrot.slane %v1004, 7
        %v1349 = vrot.slane %v1007, 7
        %v1350 = vrot.slane %v1009, 7
        %vm1351 = vcmp.lt.s32.totalorder %v653, 1
        %v1352 = vsel %vm1351, %v1349, %v1350
        %v1353 = vsel %vm1351, %v1348, %v1349
        %v1354 = vsel %vm1351, %v1347, %v1348
        %v1355 = vsel %vm1351, %v1346, %v1347
        %v1356 = vsel %vm1351, %v1345, %v1346
        %v1357 = vsel %vm1351, %v1344, %v1345
        %v1358 = vsel %vm1351, %v1343, %v1344
        %v1359 = vsel %vm1351, %v1350, %v1343
        %v1360 = vsel %vm757, 1, 0
        %v1361 = vsel %vm758, 1, 0
        %v1362 = vsel %vm759, 1, 0
        %v1363 = vsel %vm760, 1, 0
        %v1364 = vsel %vm761, 1, 0
        %v1365 = vsel %vm762, 1, 0
        %v1366 = vsel %vm763, 1, 0
        %v1367 = vsel %vm764, 1, 0
        %vm1368 = vcmp.eq.s32.totalorder %v1360, 1
        %vm1369 = vcmp.eq.s32.totalorder %v1361, 1
        %vm1370 = vcmp.eq.s32.totalorder %v1362, 1
        %vm1371 = vcmp.eq.s32.totalorder %v1363, 1
        %vm1372 = vcmp.eq.s32.totalorder %v1364, 1
        %vm1373 = vcmp.eq.s32.totalorder %v1365, 1
        %vm1374 = vcmp.eq.s32.totalorder %v1366, 1
        %vm1375 = vcmp.eq.s32.totalorder %v1367, 1
        %v1376 = vsel %vm1368, %v1359, 0.0
        %v1377 = vsel %vm1369, %v1358, 0.0
        %v1378 = vsel %vm1370, %v1357, 0.0
        %v1379 = vsel %vm1371, %v1356, 0.0
        %v1380 = vsel %vm1372, %v1355, 0.0
        %v1381 = vsel %vm1373, %v1354, 0.0
        %v1382 = vsel %vm1374, %v1353, 0.0
        %v1383 = vsel %vm1375, %v1352, 0.0
        %v1384 = vld [vmem:[#allocation8] sm:$0xff]
        %v1385 = vld [vmem:[#allocation8 + $0x8] sm:$0xff]
        %v1386 = vld [vmem:[#allocation8 + $0x10] sm:$0xff]
        %v1387 = vld [vmem:[#allocation8 + $0x18] sm:$0xff]
        %v1388 = vld [vmem:[#allocation8 + $0x20] sm:$0xff]
        %v1389 = vld [vmem:[#allocation8 + $0x28] sm:$0xff]
        %v1390 = vld [vmem:[#allocation8 + $0x30] sm:$0xff]
        %v1391 = vld [vmem:[#allocation8 + $0x38] sm:$0xff]
        %v1392 = vld [vmem:[#allocation8 + $0x40] sm:$0xff]
        %v1393 = vld [vmem:[#allocation8 + $0x48] sm:$0xff]
        %v1394 = vld [vmem:[#allocation8 + $0x50] sm:$0xff]
        %v1395 = vld [vmem:[#allocation8 + $0x58] sm:$0xff]
        %v1396 = vld [vmem:[#allocation8 + $0x60] sm:$0xff]
        %v1397 = vld [vmem:[#allocation8 + $0x68] sm:$0xff]
        %v1398 = vld [vmem:[#allocation8 + $0x70] sm:$0xff]
        %v1399 = vld [vmem:[#allocation8 + $0x78] sm:$0xff]
        %v1400 = vpack.c.bf16 %v1377, %v1376
        %v1401 = vpack.c.bf16 %v1379, %v1378
        %v1402 = vpack.c.bf16 %v1381, %v1380
        %v1403 = vpack.c.bf16 %v1383, %v1382
        %v1420 = vunpack.c.l.b16 %v1384
        %v1421 = vunpack.c.h.b16 %v1384
        %v1422 = vunpack.c.l.b16 %v1385
        %v1423 = vunpack.c.h.b16 %v1385
        %v1424 = vunpack.c.l.b16 %v1386
        %v1425 = vunpack.c.h.b16 %v1386
        %v1426 = vunpack.c.l.b16 %v1387
        %v1427 = vunpack.c.h.b16 %v1387
        %v1428 = vunpack.c.l.b16 %v1388
        %v1429 = vunpack.c.h.b16 %v1388
        %v1430 = vunpack.c.l.b16 %v1389
        %v1431 = vunpack.c.h.b16 %v1389
        %v1432 = vunpack.c.l.b16 %v1390
        %v1433 = vunpack.c.h.b16 %v1390
        %v1434 = vunpack.c.l.b16 %v1391
        %v1435 = vunpack.c.h.b16 %v1391
        %v1436 = vunpack.c.l.b16 %v1392
        %v1437 = vunpack.c.h.b16 %v1392
        %v1438 = vunpack.c.l.b16 %v1393
        %v1439 = vunpack.c.h.b16 %v1393
        %v1440 = vunpack.c.l.b16 %v1394
        %v1441 = vunpack.c.h.b16 %v1394
        %v1442 = vunpack.c.l.b16 %v1395
        %v1443 = vunpack.c.h.b16 %v1395
        %v1444 = vunpack.c.l.b16 %v1396
        %v1445 = vunpack.c.h.b16 %v1396
        %v1446 = vunpack.c.l.b16 %v1397
        %v1447 = vunpack.c.h.b16 %v1397
        %v1448 = vunpack.c.l.b16 %v1398
        %v1449 = vunpack.c.h.b16 %v1398
        %v1450 = vunpack.c.l.b16 %v1399
        %v1451 = vunpack.c.h.b16 %v1399
        %v1452 = vpack.c.b16 %v1422, %v1420
        %v1453 = vpack.c.b16 %v1423, %v1421
        %v1454 = vpack.c.b16 %v1426, %v1424
        %v1455 = vpack.c.b16 %v1427, %v1425
        %v1456 = vpack.c.b16 %v1430, %v1428
        %v1457 = vpack.c.b16 %v1431, %v1429
        %v1458 = vpack.c.b16 %v1434, %v1432
        %v1459 = vpack.c.b16 %v1435, %v1433
        %v1460 = vpack.c.b16 %v1438, %v1436
        %v1461 = vpack.c.b16 %v1439, %v1437
        %v1462 = vpack.c.b16 %v1442, %v1440
        %v1463 = vpack.c.b16 %v1443, %v1441
        %v1464 = vpack.c.b16 %v1446, %v1444
        %v1465 = vpack.c.b16 %v1447, %v1445
        %v1466 = vpack.c.b16 %v1450, %v1448
        %v1467 = vpack.c.b16 %v1451, %v1449
        %1484 = vmatpush.bf16.msra.mxu0 %v1466
        %1485 = vmatpush.bf16.msra.mxu0 %v1464
        %1486 = vmatpush.bf16.msra.mxu0 %v1462
        %1487 = vmatpush.bf16.msra.mxu0 %v1460
        %1488 = vmatpush.bf16.msra.mxu0 %v1458
        %1489 = vmatpush.bf16.msra.mxu0 %v1456
        %1490 = vmatpush.bf16.msra.mxu0 %v1454
        %1491 = vmatpush.bf16.msra.mxu0 %v1452
        %1492 = vmatmul.bf16.gmra.mxu0 %v1400
        %v1493 = vpop.f32.mrf.mxu0
        %v1494 = vadd.f32 0.0, %v1493
        %v1495 = vpop.f32.mrf.mxu0
        %v1496 = vadd.f32 0.0, %v1495
        %1497 = vmatmul.bf16.gmra.mxu0 %v1401
        %v1498 = vpop.f32.mrf.mxu0
        %v1499 = vadd.f32 0.0, %v1498
        %v1500 = vpop.f32.mrf.mxu0
        %v1501 = vadd.f32 0.0, %v1500
        %1502 = vmatmul.bf16.gmra.mxu0 %v1402
        %v1503 = vpop.f32.mrf.mxu0
        %v1504 = vadd.f32 0.0, %v1503
        %v1505 = vpop.f32.mrf.mxu0
        %v1506 = vadd.f32 0.0, %v1505
        %1507 = vmatmul.bf16.gmra.mxu0 %v1403
        %v1508 = vpop.f32.mrf.mxu0
        %v1509 = vadd.f32 0.0, %v1508
        %v1510 = vpop.f32.mrf.mxu0
        %v1511 = vadd.f32 0.0, %v1510
        %1512 = vdwg.mxu0
        %1513 = vmatpush.bf16.msra.mxu0 %v1467
        %1514 = vmatpush.bf16.msra.mxu0 %v1465
        %1515 = vmatpush.bf16.msra.mxu0 %v1463
        %1516 = vmatpush.bf16.msra.mxu0 %v1461
        %1517 = vmatpush.bf16.msra.mxu0 %v1459
        %1518 = vmatpush.bf16.msra.mxu0 %v1457
        %1519 = vmatpush.bf16.msra.mxu0 %v1455
        %1520 = vmatpush.bf16.msra.mxu0 %v1453
        %1521 = vmatmul.bf16.gmra.mxu0 %v1400
        %v1522 = vpop.f32.mrf.mxu0
        %v1523 = vadd.f32 0.0, %v1522
        %v1524 = vpop.f32.mrf.mxu0
        %v1525 = vadd.f32 0.0, %v1524
        %1526 = vmatmul.bf16.gmra.mxu0 %v1401
        %v1527 = vpop.f32.mrf.mxu0
        %v1528 = vadd.f32 0.0, %v1527
        %v1529 = vpop.f32.mrf.mxu0
        %v1530 = vadd.f32 0.0, %v1529
        %1531 = vmatmul.bf16.gmra.mxu0 %v1402
        %v1532 = vpop.f32.mrf.mxu0
        %v1533 = vadd.f32 0.0, %v1532
        %v1534 = vpop.f32.mrf.mxu0
        %v1535 = vadd.f32 0.0, %v1534
        %1536 = vmatmul.bf16.gmra.mxu0 %v1403
        %v1537 = vpop.f32.mrf.mxu0
        %v1538 = vadd.f32 0.0, %v1537
        %v1539 = vpop.f32.mrf.mxu0
        %v1540 = vadd.f32 0.0, %v1539
        %1541 = vdwg.mxu0
        %v1542 = vadd.f32 %v1327, %v1494
        %v1543 = vadd.f32 %v1328, %v1523
        %v1544 = vadd.f32 %v1329, %v1496
        %v1545 = vadd.f32 %v1330, %v1525
        %v1546 = vadd.f32 %v1331, %v1499
        %v1547 = vadd.f32 %v1332, %v1528
        %v1548 = vadd.f32 %v1333, %v1501
        %v1549 = vadd.f32 %v1334, %v1530
        %v1550 = vadd.f32 %v1335, %v1504
        %v1551 = vadd.f32 %v1336, %v1533
        %v1552 = vadd.f32 %v1337, %v1506
        %v1553 = vadd.f32 %v1338, %v1535
        %v1554 = vadd.f32 %v1339, %v1509
        %v1555 = vadd.f32 %v1340, %v1538
        %v1556 = vadd.f32 %v1341, %v1511
        %v1557 = vadd.f32 %v1342, %v1540
        %v1558 = vmul.f32 %v1543, 0.5
        %v1559 = vmul.f32 %v1545, 0.5
        %v1560 = vmul.f32 %v1547, 0.5
        %v1561 = vmul.f32 %v1549, 0.5
        %v1562 = vmul.f32 %v1551, 0.5
        %v1563 = vmul.f32 %v1553, 0.5
        %v1564 = vmul.f32 %v1555, 0.5
        %v1565 = vmul.f32 %v1557, 0.5
        %v1566 = vtanh.pop %v1558
        %v1567 = vtanh.pop %v1559
        %v1568 = vtanh.pop %v1560
        %v1569 = vtanh.pop %v1561
        %v1570 = vtanh.pop %v1562
        %v1571 = vtanh.pop %v1563
        %v1572 = vtanh.pop %v1564
        %v1573 = vtanh.pop %v1565
        %v1574 = vadd.f32 %v1566, 1.0
        %v1575 = vadd.f32 %v1567, 1.0
        %v1576 = vadd.f32 %v1568, 1.0
        %v1577 = vadd.f32 %v1569, 1.0
        %v1578 = vadd.f32 %v1570, 1.0
        %v1579 = vadd.f32 %v1571, 1.0
        %v1580 = vadd.f32 %v1572, 1.0
        %v1581 = vadd.f32 %v1573, 1.0
        %v1582 = vmul.f32 %v1574, 0.5
        %v1583 = vmul.f32 %v1575, 0.5
        %v1584 = vmul.f32 %v1576, 0.5
        %v1585 = vmul.f32 %v1577, 0.5
        %v1586 = vmul.f32 %v1578, 0.5
        %v1587 = vmul.f32 %v1579, 0.5
        %v1588 = vmul.f32 %v1580, 0.5
        %v1589 = vmul.f32 %v1581, 0.5
        %v1590 = vtanh.pop %v1542
        %v1591 = vtanh.pop %v1544
        %v1592 = vtanh.pop %v1546
        %v1593 = vtanh.pop %v1548
        %v1594 = vtanh.pop %v1550
        %v1595 = vtanh.pop %v1552
        %v1596 = vtanh.pop %v1554
        %v1597 = vtanh.pop %v1556
        %v1598 = vmul.f32 %v1590, %v1582
        %v1599 = vmul.f32 %v1591, %v1583
        %v1600 = vmul.f32 %v1592, %v1584
        %v1601 = vmul.f32 %v1593, %v1585
        %v1602 = vmul.f32 %v1594, %v1586
        %v1603 = vmul.f32 %v1595, %v1587
        %v1604 = vmul.f32 %v1596, %v1588
        %v1605 = vmul.f32 %v1597, %v1589
        %v1606 = vld [vmem:[#allocation13] sm:$0xff]
        %v1607 = vld [vmem:[#allocation13 + $0x8] sm:$0xff]
        %v1608 = vld [vmem:[#allocation13 + $0x10] sm:$0xff]
        %v1609 = vld [vmem:[#allocation13 + $0x18] sm:$0xff]
        %v1610 = vld [vmem:[#allocation13 + $0x20] sm:$0xff]
        %v1611 = vld [vmem:[#allocation13 + $0x28] sm:$0xff]
        %v1612 = vld [vmem:[#allocation13 + $0x30] sm:$0xff]
        %v1613 = vld [vmem:[#allocation13 + $0x38] sm:$0xff]
        %v1614 = vld [vmem:[#allocation13 + $0x40] sm:$0xff]
        %v1615 = vld [vmem:[#allocation13 + $0x48] sm:$0xff]
        %v1616 = vld [vmem:[#allocation13 + $0x50] sm:$0xff]
        %v1617 = vld [vmem:[#allocation13 + $0x58] sm:$0xff]
        %v1618 = vld [vmem:[#allocation13 + $0x60] sm:$0xff]
        %v1619 = vld [vmem:[#allocation13 + $0x68] sm:$0xff]
        %v1620 = vld [vmem:[#allocation13 + $0x70] sm:$0xff]
        %v1621 = vld [vmem:[#allocation13 + $0x78] sm:$0xff]
        %v1622 = vpack.c.bf16 %v1599, %v1598
        %v1623 = vpack.c.bf16 %v1601, %v1600
        %v1624 = vpack.c.bf16 %v1603, %v1602
        %v1625 = vpack.c.bf16 %v1605, %v1604
        %v1626 = vld [vmem:[#allocation14] sm:$0x3]
        %v1628 = vperm.slane %v1626, 0
        %v1629 = vperm.slane %v1626, 1
        %v1648 = vunpack.c.l.b16 %v1606
        %v1649 = vunpack.c.h.b16 %v1606
        %v1650 = vunpack.c.l.b16 %v1607
        %v1651 = vunpack.c.h.b16 %v1607
        %v1652 = vunpack.c.l.b16 %v1608
        %v1653 = vunpack.c.h.b16 %v1608
        %v1654 = vunpack.c.l.b16 %v1609
        %v1655 = vunpack.c.h.b16 %v1609
        %v1656 = vunpack.c.l.b16 %v1610
        %v1657 = vunpack.c.h.b16 %v1610
        %v1658 = vunpack.c.l.b16 %v1611
        %v1659 = vunpack.c.h.b16 %v1611
        %v1660 = vunpack.c.l.b16 %v1612
        %v1661 = vunpack.c.h.b16 %v1612
        %v1662 = vunpack.c.l.b16 %v1613
        %v1663 = vunpack.c.h.b16 %v1613
        %v1664 = vunpack.c.l.b16 %v1614
        %v1665 = vunpack.c.h.b16 %v1614
        %v1666 = vunpack.c.l.b16 %v1615
        %v1667 = vunpack.c.h.b16 %v1615
        %v1668 = vunpack.c.l.b16 %v1616
        %v1669 = vunpack.c.h.b16 %v1616
        %v1670 = vunpack.c.l.b16 %v1617
        %v1671 = vunpack.c.h.b16 %v1617
        %v1672 = vunpack.c.l.b16 %v1618
        %v1673 = vunpack.c.h.b16 %v1618
        %v1674 = vunpack.c.l.b16 %v1619
        %v1675 = vunpack.c.h.b16 %v1619
        %v1676 = vunpack.c.l.b16 %v1620
        %v1677 = vunpack.c.h.b16 %v1620
        %v1678 = vunpack.c.l.b16 %v1621
        %v1679 = vunpack.c.h.b16 %v1621
        %v1680 = vpack.c.b16 %v1650, %v1648
        %v1681 = vpack.c.b16 %v1651, %v1649
        %v1682 = vpack.c.b16 %v1654, %v1652
        %v1683 = vpack.c.b16 %v1655, %v1653
        %v1684 = vpack.c.b16 %v1658, %v1656
        %v1685 = vpack.c.b16 %v1659, %v1657
        %v1686 = vpack.c.b16 %v1662, %v1660
        %v1687 = vpack.c.b16 %v1663, %v1661
        %v1688 = vpack.c.b16 %v1666, %v1664
        %v1689 = vpack.c.b16 %v1667, %v1665
        %v1690 = vpack.c.b16 %v1670, %v1668
        %v1691 = vpack.c.b16 %v1671, %v1669
        %v1692 = vpack.c.b16 %v1674, %v1672
        %v1693 = vpack.c.b16 %v1675, %v1673
        %v1694 = vpack.c.b16 %v1678, %v1676
        %v1695 = vpack.c.b16 %v1679, %v1677
        %1712 = vmatpush.bf16.msra.mxu0 %v1694
        %1713 = vmatpush.bf16.msra.mxu0 %v1692
        %1714 = vmatpush.bf16.msra.mxu0 %v1690
        %1715 = vmatpush.bf16.msra.mxu0 %v1688
        %1716 = vmatpush.bf16.msra.mxu0 %v1686
        %1717 = vmatpush.bf16.msra.mxu0 %v1684
        %1718 = vmatpush.bf16.msra.mxu0 %v1682
        %1719 = vmatpush.bf16.msra.mxu0 %v1680
        %1720 = vmatmul.bf16.gmra.mxu0 %v1622
        %v1721 = vpop.f32.mrf.mxu0
        %v1722 = vadd.f32 %v1628, %v1721
        %v1723 = vpop.f32.mrf.mxu0
        %v1724 = vadd.f32 %v1628, %v1723
        %1725 = vmatmul.bf16.gmra.mxu0 %v1623
        %v1726 = vpop.f32.mrf.mxu0
        %v1727 = vadd.f32 %v1628, %v1726
        %v1728 = vpop.f32.mrf.mxu0
        %v1729 = vadd.f32 %v1628, %v1728
        %1730 = vmatmul.bf16.gmra.mxu0 %v1624
        %v1731 = vpop.f32.mrf.mxu0
        %v1732 = vadd.f32 %v1628, %v1731
        %v1733 = vpop.f32.mrf.mxu0
        %v1734 = vadd.f32 %v1628, %v1733
        %1735 = vmatmul.bf16.gmra.mxu0 %v1625
        %v1736 = vpop.f32.mrf.mxu0
        %v1737 = vadd.f32 %v1628, %v1736
        %v1738 = vpop.f32.mrf.mxu0
        %v1739 = vadd.f32 %v1628, %v1738
        %1740 = vdwg.mxu0
        %1741 = vmatpush.bf16.msra.mxu0 %v1695
        %1742 = vmatpush.bf16.msra.mxu0 %v1693
        %1743 = vmatpush.bf16.msra.mxu0 %v1691
        %1744 = vmatpush.bf16.msra.mxu0 %v1689
        %1745 = vmatpush.bf16.msra.mxu0 %v1687
        %1746 = vmatpush.bf16.msra.mxu0 %v1685
        %1747 = vmatpush.bf16.msra.mxu0 %v1683
        %1748 = vmatpush.bf16.msra.mxu0 %v1681
        %1749 = vmatmul.bf16.gmra.mxu0 %v1622
        %v1750 = vpop.f32.mrf.mxu0
        %v1751 = vadd.f32 %v1629, %v1750
        %v1752 = vpop.f32.mrf.mxu0
        %v1753 = vadd.f32 %v1629, %v1752
        %1754 = vmatmul.bf16.gmra.mxu0 %v1623
        %v1755 = vpop.f32.mrf.mxu0
        %v1756 = vadd.f32 %v1629, %v1755
        %v1757 = vpop.f32.mrf.mxu0
        %v1758 = vadd.f32 %v1629, %v1757
        %1759 = vmatmul.bf16.gmra.mxu0 %v1624
        %v1760 = vpop.f32.mrf.mxu0
        %v1761 = vadd.f32 %v1629, %v1760
        %v1762 = vpop.f32.mrf.mxu0
        %v1763 = vadd.f32 %v1629, %v1762
        %1764 = vmatmul.bf16.gmra.mxu0 %v1625
        %v1765 = vpop.f32.mrf.mxu0
        %v1766 = vadd.f32 %v1629, %v1765
        %v1767 = vpop.f32.mrf.mxu0
        %v1768 = vadd.f32 %v1629, %v1767
        %1769 = vdwg.mxu0
        %v1770 = vadd.f32 %v992, %v1722
        %v1771 = vadd.f32 %v994, %v1724
        %v1772 = vadd.f32 %v997, %v1727
        %v1773 = vadd.f32 %v999, %v1729
        %v1774 = vadd.f32 %v1002, %v1732
        %v1775 = vadd.f32 %v1004, %v1734
        %v1776 = vadd.f32 %v1007, %v1737
        %v1777 = vadd.f32 %v1009, %v1739
        %v1778 = vmul.f32 %v1770, 0.70710677
        %v1779 = vmul.f32 %v1771, 0.70710677
        %v1780 = vmul.f32 %v1772, 0.70710677
        %v1781 = vmul.f32 %v1773, 0.70710677
        %v1782 = vmul.f32 %v1774, 0.70710677
        %v1783 = vmul.f32 %v1775, 0.70710677
        %v1784 = vmul.f32 %v1776, 0.70710677
        %v1785 = vmul.f32 %v1777, 0.70710677
        %s1786 = scalar_lea.vmem [#allocation8], 384
        %v1787 = vld [vmem:[%s1786] sm:$0xff]
        %v1788 = vld [vmem:[%s1786 + $0x8] sm:$0xff]
        %v1789 = vld [vmem:[%s1786 + $0x10] sm:$0xff]
        %v1790 = vld [vmem:[%s1786 + $0x18] sm:$0xff]
        %v1791 = vld [vmem:[%s1786 + $0x20] sm:$0xff]
        %v1792 = vld [vmem:[%s1786 + $0x28] sm:$0xff]
        %v1793 = vld [vmem:[%s1786 + $0x30] sm:$0xff]
        %v1794 = vld [vmem:[%s1786 + $0x38] sm:$0xff]
        %v1795 = vld [vmem:[%s1786 + $0x40] sm:$0xff]
        %v1796 = vld [vmem:[%s1786 + $0x48] sm:$0xff]
        %v1797 = vld [vmem:[%s1786 + $0x50] sm:$0xff]
        %v1798 = vld [vmem:[%s1786 + $0x58] sm:$0xff]
        %v1799 = vld [vmem:[%s1786 + $0x60] sm:$0xff]
        %v1800 = vld [vmem:[%s1786 + $0x68] sm:$0xff]
        %v1801 = vld [vmem:[%s1786 + $0x70] sm:$0xff]
        %v1802 = vld [vmem:[%s1786 + $0x78] sm:$0xff]
        %v1803 = vpack.c.bf16 %v1779, %v1778
        %v1804 = vpack.c.bf16 %v1781, %v1780
        %v1805 = vpack.c.bf16 %v1783, %v1782
        %v1806 = vpack.c.bf16 %v1785, %v1784
        %s1807 = scalar_lea.vmem [#allocation10], 80
        %v1808 = vld [vmem:[%s1807] sm:$0xff]
        %v1809 = vld [vmem:[%s1807 + $0x8] sm:$0xff]
        %v1810 = vld [vmem:[%s1807 + $0x10] sm:$0xff]
        %v1811 = vld [vmem:[%s1807 + $0x18] sm:$0xff]
        %v1812 = vld [vmem:[%s1807 + $0x20] sm:$0xff]
        %v1813 = vld [vmem:[%s1807 + $0x28] sm:$0xff]
        %v1814 = vld [vmem:[%s1807 + $0x30] sm:$0xff]
        %v1815 = vld [vmem:[%s1807 + $0x38] sm:$0xff]
        %v1816 = vld [vmem:[%s1807 + $0x40] sm:$0xff]
        %v1817 = vld [vmem:[%s1807 + $0x48] sm:$0xff]
        %v1828 = vunpack.c.l.b16 %v1808
        %v1829 = vunpack.c.h.b16 %v1808
        %v1830 = vunpack.c.l.b16 %v1809
        %v1831 = vunpack.c.h.b16 %v1809
        %v1832 = vunpack.c.l.b16 %v1810
        %v1833 = vunpack.c.h.b16 %v1810
        %v1834 = vunpack.c.l.b16 %v1811
        %v1835 = vunpack.c.h.b16 %v1811
        %v1836 = vunpack.c.l.b16 %v1812
        %v1837 = vunpack.c.h.b16 %v1812
        %v1838 = vunpack.c.l.b16 %v1813
        %v1839 = vunpack.c.h.b16 %v1813
        %v1840 = vunpack.c.l.b16 %v1814
        %v1841 = vunpack.c.h.b16 %v1814
        %v1842 = vunpack.c.l.b16 %v1815
        %v1843 = vunpack.c.h.b16 %v1815
        %v1844 = vunpack.c.l.b16 %v1816
        %v1845 = vunpack.c.h.b16 %v1816
        %v1846 = vunpack.c.l.b16 %v1817
        %v1847 = vunpack.c.h.b16 %v1817
        %v1848 = vpack.c.b16 %v1830, %v1828
        %v1849 = vpack.c.b16 %v1831, %v1829
        %v1850 = vpack.c.b16 %v1834, %v1832
        %v1851 = vpack.c.b16 %v1835, %v1833
        %v1852 = vpack.c.b16 %v1838, %v1836
        %v1853 = vpack.c.b16 %v1839, %v1837
        %v1854 = vpack.c.b16 %v1842, %v1840
        %v1855 = vpack.c.b16 %v1843, %v1841
        %v1856 = vpack.c.b16 %v1846, %v1844
        %v1857 = vpack.c.b16 %v1847, %v1845
        %1868 = vmatpush.bf16.msra.mxu0 0
        %1869 = vmatpush.bf16.msra.mxu0 0
        %1870 = vmatpush.bf16.msra.mxu0 0
        %1871 = vmatpush.bf16.msra.mxu0 %v1856
        %1872 = vmatpush.bf16.msra.mxu0 %v1854
        %1873 = vmatpush.bf16.msra.mxu0 %v1852
        %1874 = vmatpush.bf16.msra.mxu0 %v1850
        %1875 = vmatpush.bf16.msra.mxu0 %v1848
        %1876 = vmatmul.bf16.gmra.mxu0 %v1114
        %v1877 = vpop.f32.mrf.mxu0
        %v1878 = vadd.f32 0.0, %v1877
        %v1879 = vpop.f32.mrf.mxu0
        %v1880 = vadd.f32 0.0, %v1879
        %1881 = vmatmul.bf16.gmra.mxu0 %v1117
        %v1882 = vpop.f32.mrf.mxu0
        %v1883 = vadd.f32 0.0, %v1882
        %v1884 = vpop.f32.mrf.mxu0
        %v1885 = vadd.f32 0.0, %v1884
        %1886 = vmatmul.bf16.gmra.mxu0 %v1120
        %v1887 = vpop.f32.mrf.mxu0
        %v1888 = vadd.f32 0.0, %v1887
        %v1889 = vpop.f32.mrf.mxu0
        %v1890 = vadd.f32 0.0, %v1889
        %1891 = vmatmul.bf16.gmra.mxu0 %v1123
        %v1892 = vpop.f32.mrf.mxu0
        %v1893 = vadd.f32 0.0, %v1892
        %v1894 = vpop.f32.mrf.mxu0
        %v1895 = vadd.f32 0.0, %v1894
        %1896 = vdwg.mxu0
        %1897 = vmatpush.bf16.msra.mxu0 0
        %1898 = vmatpush.bf16.msra.mxu0 0
        %1899 = vmatpush.bf16.msra.mxu0 0
        %1900 = vmatpush.bf16.msra.mxu0 %v1857
        %1901 = vmatpush.bf16.msra.mxu0 %v1855
        %1902 = vmatpush.bf16.msra.mxu0 %v1853
        %1903 = vmatpush.bf16.msra.mxu0 %v1851
        %1904 = vmatpush.bf16.msra.mxu0 %v1849
        %1905 = vmatmul.bf16.gmra.mxu0 %v1114
        %v1906 = vpop.f32.mrf.mxu0
        %v1907 = vadd.f32 0.0, %v1906
        %v1908 = vpop.f32.mrf.mxu0
        %v1909 = vadd.f32 0.0, %v1908
        %1910 = vmatmul.bf16.gmra.mxu0 %v1117
        %v1911 = vpop.f32.mrf.mxu0
        %v1912 = vadd.f32 0.0, %v1911
        %v1913 = vpop.f32.mrf.mxu0
        %v1914 = vadd.f32 0.0, %v1913
        %1915 = vmatmul.bf16.gmra.mxu0 %v1120
        %v1916 = vpop.f32.mrf.mxu0
        %v1917 = vadd.f32 0.0, %v1916
        %v1918 = vpop.f32.mrf.mxu0
        %v1919 = vadd.f32 0.0, %v1918
        %1920 = vmatmul.bf16.gmra.mxu0 %v1123
        %v1921 = vpop.f32.mrf.mxu0
        %v1922 = vadd.f32 0.0, %v1921
        %v1923 = vpop.f32.mrf.mxu0
        %v1924 = vadd.f32 0.0, %v1923
        %1925 = vdwg.mxu0
        %v1942 = vunpack.c.l.b16 %v1787
        %v1943 = vunpack.c.h.b16 %v1787
        %v1944 = vunpack.c.l.b16 %v1788
        %v1945 = vunpack.c.h.b16 %v1788
        %v1946 = vunpack.c.l.b16 %v1789
        %v1947 = vunpack.c.h.b16 %v1789
        %v1948 = vunpack.c.l.b16 %v1790
        %v1949 = vunpack.c.h.b16 %v1790
        %v1950 = vunpack.c.l.b16 %v1791
        %v1951 = vunpack.c.h.b16 %v1791
        %v1952 = vunpack.c.l.b16 %v1792
        %v1953 = vunpack.c.h.b16 %v1792
        %v1954 = vunpack.c.l.b16 %v1793
        %v1955 = vunpack.c.h.b16 %v1793
        %v1956 = vunpack.c.l.b16 %v1794
        %v1957 = vunpack.c.h.b16 %v1794
        %v1958 = vunpack.c.l.b16 %v1795
        %v1959 = vunpack.c.h.b16 %v1795
        %v1960 = vunpack.c.l.b16 %v1796
        %v1961 = vunpack.c.h.b16 %v1796
        %v1962 = vunpack.c.l.b16 %v1797
        %v1963 = vunpack.c.h.b16 %v1797
        %v1964 = vunpack.c.l.b16 %v1798
        %v1965 = vunpack.c.h.b16 %v1798
        %v1966 = vunpack.c.l.b16 %v1799
        %v1967 = vunpack.c.h.b16 %v1799
        %v1968 = vunpack.c.l.b16 %v1800
        %v1969 = vunpack.c.h.b16 %v1800
        %v1970 = vunpack.c.l.b16 %v1801
        %v1971 = vunpack.c.h.b16 %v1801
        %v1972 = vunpack.c.l.b16 %v1802
        %v1973 = vunpack.c.h.b16 %v1802
        %v1974 = vpack.c.b16 %v1944, %v1942
        %v1975 = vpack.c.b16 %v1945, %v1943
        %v1976 = vpack.c.b16 %v1948, %v1946
        %v1977 = vpack.c.b16 %v1949, %v1947
        %v1978 = vpack.c.b16 %v1952, %v1950
        %v1979 = vpack.c.b16 %v1953, %v1951
        %v1980 = vpack.c.b16 %v1956, %v1954
        %v1981 = vpack.c.b16 %v1957, %v1955
        %v1982 = vpack.c.b16 %v1960, %v1958
        %v1983 = vpack.c.b16 %v1961, %v1959
        %v1984 = vpack.c.b16 %v1964, %v1962
        %v1985 = vpack.c.b16 %v1965, %v1963
        %v1986 = vpack.c.b16 %v1968, %v1966
        %v1987 = vpack.c.b16 %v1969, %v1967
        %v1988 = vpack.c.b16 %v1972, %v1970
        %v1989 = vpack.c.b16 %v1973, %v1971
        %2006 = vmatpush.bf16.msra.mxu0 %v1988
        %2007 = vmatpush.bf16.msra.mxu0 %v1986
        %2008 = vmatpush.bf16.msra.mxu0 %v1984
        %2009 = vmatpush.bf16.msra.mxu0 %v1982
        %2010 = vmatpush.bf16.msra.mxu0 %v1980
        %2011 = vmatpush.bf16.msra.mxu0 %v1978
        %2012 = vmatpush.bf16.msra.mxu0 %v1976
        %2013 = vmatpush.bf16.msra.mxu0 %v1974
        %2014 = vmatmul.bf16.gmra.mxu0 %v1803
        %v2015 = vpop.f32.mrf.mxu0
        %v2016 = vadd.f32 %v1878, %v2015
        %v2017 = vpop.f32.mrf.mxu0
        %v2018 = vadd.f32 %v1880, %v2017
        %2019 = vmatmul.bf16.gmra.mxu0 %v1804
        %v2020 = vpop.f32.mrf.mxu0
        %v2021 = vadd.f32 %v1883, %v2020
        %v2022 = vpop.f32.mrf.mxu0
        %v2023 = vadd.f32 %v1885, %v2022
        %2024 = vmatmul.bf16.gmra.mxu0 %v1805
        %v2025 = vpop.f32.mrf.mxu0
        %v2026 = vadd.f32 %v1888, %v2025
        %v2027 = vpop.f32.mrf.mxu0
        %v2028 = vadd.f32 %v1890, %v2027
        %2029 = vmatmul.bf16.gmra.mxu0 %v1806
        %v2030 = vpop.f32.mrf.mxu0
        %v2031 = vadd.f32 %v1893, %v2030
        %v2032 = vpop.f32.mrf.mxu0
        %v2033 = vadd.f32 %v1895, %v2032
        %2034 = vdwg.mxu0
        %2035 = vmatpush.bf16.msra.mxu0 %v1989
        %2036 = vmatpush.bf16.msra.mxu0 %v1987
        %2037 = vmatpush.bf16.msra.mxu0 %v1985
        %2038 = vmatpush.bf16.msra.mxu0 %v1983
        %2039 = vmatpush.bf16.msra.mxu0 %v1981
        %2040 = vmatpush.bf16.msra.mxu0 %v1979
        %2041 = vmatpush.bf16.msra.mxu0 %v1977
        %2042 = vmatpush.bf16.msra.mxu0 %v1975
        %2043 = vmatmul.bf16.gmra.mxu0 %v1803
        %v2044 = vpop.f32.mrf.mxu0
        %v2045 = vadd.f32 %v1907, %v2044
        %v2046 = vpop.f32.mrf.mxu0
        %v2047 = vadd.f32 %v1909, %v2046
        %2048 = vmatmul.bf16.gmra.mxu0 %v1804
        %v2049 = vpop.f32.mrf.mxu0
        %v2050 = vadd.f32 %v1912, %v2049
        %v2051 = vpop.f32.mrf.mxu0
        %v2052 = vadd.f32 %v1914, %v2051
        %2053 = vmatmul.bf16.gmra.mxu0 %v1805
        %v2054 = vpop.f32.mrf.mxu0
        %v2055 = vadd.f32 %v1917, %v2054
        %v2056 = vpop.f32.mrf.mxu0
        %v2057 = vadd.f32 %v1919, %v2056
        %2058 = vmatmul.bf16.gmra.mxu0 %v1806
        %v2059 = vpop.f32.mrf.mxu0
        %v2060 = vadd.f32 %v1922, %v2059
        %v2061 = vpop.f32.mrf.mxu0
        %v2062 = vadd.f32 %v1924, %v2061
        %2063 = vdwg.mxu0
        %s2064 = scalar_lea.vmem [#allocation11], 2
        %v2065 = vld [vmem:[%s2064] sm:$0x3]
        %v2067 = vperm.slane %v2065, 0
        %v2068 = vperm.slane %v2065, 1
        %v2071 = vadd.f32 %v2016, %v2067
        %v2072 = vadd.f32 %v2045, %v2068
        %v2073 = vadd.f32 %v2018, %v2067
        %v2074 = vadd.f32 %v2047, %v2068
        %v2075 = vadd.f32 %v2021, %v2067
        %v2076 = vadd.f32 %v2050, %v2068
        %v2077 = vadd.f32 %v2023, %v2067
        %v2078 = vadd.f32 %v2052, %v2068
        %v2079 = vadd.f32 %v2026, %v2067
        %v2080 = vadd.f32 %v2055, %v2068
        %v2081 = vadd.f32 %v2028, %v2067
        %v2082 = vadd.f32 %v2057, %v2068
        %v2083 = vadd.f32 %v2031, %v2067
        %v2084 = vadd.f32 %v2060, %v2068
        %v2085 = vadd.f32 %v2033, %v2067
        %v2086 = vadd.f32 %v2062, %v2068
        %v2087 = vrot.slane %v1778, 6
        %v2088 = vrot.slane %v1779, 6
        %v2089 = vrot.slane %v1780, 6
        %v2090 = vrot.slane %v1781, 6
        %v2091 = vrot.slane %v1782, 6
        %v2092 = vrot.slane %v1783, 6
        %v2093 = vrot.slane %v1784, 6
        %v2094 = vrot.slane %v1785, 6
        %vm2095 = vcmp.lt.s32.totalorder %v653, 2
        %v2096 = vsel %vm2095, %v2093, %v2094
        %v2097 = vsel %vm2095, %v2092, %v2093
        %v2098 = vsel %vm2095, %v2091, %v2092
        %v2099 = vsel %vm2095, %v2090, %v2091
        %v2100 = vsel %vm2095, %v2089, %v2090
        %v2101 = vsel %vm2095, %v2088, %v2089
        %v2102 = vsel %vm2095, %v2087, %v2088
        %v2103 = vsel %vm2095, %v2094, %v2087
        %v2104 = vsel %vm765, 1, 0
        %v2105 = vsel %vm766, 1, 0
        %v2106 = vsel %vm767, 1, 0
        %v2107 = vsel %vm768, 1, 0
        %v2108 = vsel %vm769, 1, 0
        %v2109 = vsel %vm770, 1, 0
        %v2110 = vsel %vm771, 1, 0
        %v2111 = vsel %vm772, 1, 0
        %vm2112 = vcmp.eq.s32.totalorder %v2104, 1
        %vm2113 = vcmp.eq.s32.totalorder %v2105, 1
        %vm2114 = vcmp.eq.s32.totalorder %v2106, 1
        %vm2115 = vcmp.eq.s32.totalorder %v2107, 1
        %vm2116 = vcmp.eq.s32.totalorder %v2108, 1
        %vm2117 = vcmp.eq.s32.totalorder %v2109, 1
        %vm2118 = vcmp.eq.s32.totalorder %v2110, 1
        %vm2119 = vcmp.eq.s32.totalorder %v2111, 1
        %v2120 = vsel %vm2112, %v2103, 0.0
        %v2121 = vsel %vm2113, %v2102, 0.0
        %v2122 = vsel %vm2114, %v2101, 0.0
        %v2123 = vsel %vm2115, %v2100, 0.0
        %v2124 = vsel %vm2116, %v2099, 0.0
        %v2125 = vsel %vm2117, %v2098, 0.0
        %v2126 = vsel %vm2118, %v2097, 0.0
        %v2127 = vsel %vm2119, %v2096, 0.0
        %s2128 = scalar_lea.vmem [#allocation8], 256
        %v2129 = vld [vmem:[%s2128] sm:$0xff]
        %v2130 = vld [vmem:[%s2128 + $0x8] sm:$0xff]
        %v2131 = vld [vmem:[%s2128 + $0x10] sm:$0xff]
        %v2132 = vld [vmem:[%s2128 + $0x18] sm:$0xff]
        %v2133 = vld [vmem:[%s2128 + $0x20] sm:$0xff]
        %v2134 = vld [vmem:[%s2128 + $0x28] sm:$0xff]
        %v2135 = vld [vmem:[%s2128 + $0x30] sm:$0xff]
        %v2136 = vld [vmem:[%s2128 + $0x38] sm:$0xff]
        %v2137 = vld [vmem:[%s2128 + $0x40] sm:$0xff]
        %v2138 = vld [vmem:[%s2128 + $0x48] sm:$0xff]
        %v2139 = vld [vmem:[%s2128 + $0x50] sm:$0xff]
        %v2140 = vld [vmem:[%s2128 + $0x58] sm:$0xff]
        %v2141 = vld [vmem:[%s2128 + $0x60] sm:$0xff]
        %v2142 = vld [vmem:[%s2128 + $0x68] sm:$0xff]
        %v2143 = vld [vmem:[%s2128 + $0x70] sm:$0xff]
        %v2144 = vld [vmem:[%s2128 + $0x78] sm:$0xff]
        %v2145 = vpack.c.bf16 %v2121, %v2120
        %v2146 = vpack.c.bf16 %v2123, %v2122
        %v2147 = vpack.c.bf16 %v2125, %v2124
        %v2148 = vpack.c.bf16 %v2127, %v2126
        %v2165 = vunpack.c.l.b16 %v2129
        %v2166 = vunpack.c.h.b16 %v2129
        %v2167 = vunpack.c.l.b16 %v2130
        %v2168 = vunpack.c.h.b16 %v2130
        %v2169 = vunpack.c.l.b16 %v2131
        %v2170 = vunpack.c.h.b16 %v2131
        %v2171 = vunpack.c.l.b16 %v2132
        %v2172 = vunpack.c.h.b16 %v2132
        %v2173 = vunpack.c.l.b16 %v2133
        %v2174 = vunpack.c.h.b16 %v2133
        %v2175 = vunpack.c.l.b16 %v2134
        %v2176 = vunpack.c.h.b16 %v2134
        %v2177 = vunpack.c.l.b16 %v2135
        %v2178 = vunpack.c.h.b16 %v2135
        %v2179 = vunpack.c.l.b16 %v2136
        %v2180 = vunpack.c.h.b16 %v2136
        %v2181 = vunpack.c.l.b16 %v2137
        %v2182 = vunpack.c.h.b16 %v2137
        %v2183 = vunpack.c.l.b16 %v2138
        %v2184 = vunpack.c.h.b16 %v2138
        %v2185 = vunpack.c.l.b16 %v2139
        %v2186 = vunpack.c.h.b16 %v2139
        %v2187 = vunpack.c.l.b16 %v2140
        %v2188 = vunpack.c.h.b16 %v2140
        %v2189 = vunpack.c.l.b16 %v2141
        %v2190 = vunpack.c.h.b16 %v2141
        %v2191 = vunpack.c.l.b16 %v2142
        %v2192 = vunpack.c.h.b16 %v2142
        %v2193 = vunpack.c.l.b16 %v2143
        %v2194 = vunpack.c.h.b16 %v2143
        %v2195 = vunpack.c.l.b16 %v2144
        %v2196 = vunpack.c.h.b16 %v2144
        %v2197 = vpack.c.b16 %v2167, %v2165
        %v2198 = vpack.c.b16 %v2168, %v2166
        %v2199 = vpack.c.b16 %v2171, %v2169
        %v2200 = vpack.c.b16 %v2172, %v2170
        %v2201 = vpack.c.b16 %v2175, %v2173
        %v2202 = vpack.c.b16 %v2176, %v2174
        %v2203 = vpack.c.b16 %v2179, %v2177
        %v2204 = vpack.c.b16 %v2180, %v2178
        %v2205 = vpack.c.b16 %v2183, %v2181
        %v2206 = vpack.c.b16 %v2184, %v2182
        %v2207 = vpack.c.b16 %v2187, %v2185
        %v2208 = vpack.c.b16 %v2188, %v2186
        %v2209 = vpack.c.b16 %v2191, %v2189
        %v2210 = vpack.c.b16 %v2192, %v2190
        %v2211 = vpack.c.b16 %v2195, %v2193
        %v2212 = vpack.c.b16 %v2196, %v2194
        %2229 = vmatpush.bf16.msra.mxu0 %v2211
        %2230 = vmatpush.bf16.msra.mxu0 %v2209
        %2231 = vmatpush.bf16.msra.mxu0 %v2207
        %2232 = vmatpush.bf16.msra.mxu0 %v2205
        %2233 = vmatpush.bf16.msra.mxu0 %v2203
        %2234 = vmatpush.bf16.msra.mxu0 %v2201
        %2235 = vmatpush.bf16.msra.mxu0 %v2199
        %2236 = vmatpush.bf16.msra.mxu0 %v2197
        %2237 = vmatmul.bf16.gmra.mxu0 %v2145
        %v2238 = vpop.f32.mrf.mxu0
        %v2239 = vadd.f32 0.0, %v2238
        %v2240 = vpop.f32.mrf.mxu0
        %v2241 = vadd.f32 0.0, %v2240
        %2242 = vmatmul.bf16.gmra.mxu0 %v2146
        %v2243 = vpop.f32.mrf.mxu0
        %v2244 = vadd.f32 0.0, %v2243
        %v2245 = vpop.f32.mrf.mxu0
        %v2246 = vadd.f32 0.0, %v2245
        %2247 = vmatmul.bf16.gmra.mxu0 %v2147
        %v2248 = vpop.f32.mrf.mxu0
        %v2249 = vadd.f32 0.0, %v2248
        %v2250 = vpop.f32.mrf.mxu0
        %v2251 = vadd.f32 0.0, %v2250
        %2252 = vmatmul.bf16.gmra.mxu0 %v2148
        %v2253 = vpop.f32.mrf.mxu0
        %v2254 = vadd.f32 0.0, %v2253
        %v2255 = vpop.f32.mrf.mxu0
        %v2256 = vadd.f32 0.0, %v2255
        %2257 = vdwg.mxu0
        %2258 = vmatpush.bf16.msra.mxu0 %v2212
        %2259 = vmatpush.bf16.msra.mxu0 %v2210
        %2260 = vmatpush.bf16.msra.mxu0 %v2208
        %2261 = vmatpush.bf16.msra.mxu0 %v2206
        %2262 = vmatpush.bf16.msra.mxu0 %v2204
        %2263 = vmatpush.bf16.msra.mxu0 %v2202
        %2264 = vmatpush.bf16.msra.mxu0 %v2200
        %2265 = vmatpush.bf16.msra.mxu0 %v2198
        %2266 = vmatmul.bf16.gmra.mxu0 %v2145
        %v2267 = vpop.f32.mrf.mxu0
        %v2268 = vadd.f32 0.0, %v2267
        %v2269 = vpop.f32.mrf.mxu0
        %v2270 = vadd.f32 0.0, %v2269
        %2271 = vmatmul.bf16.gmra.mxu0 %v2146
        %v2272 = vpop.f32.mrf.mxu0
        %v2273 = vadd.f32 0.0, %v2272
        %v2274 = vpop.f32.mrf.mxu0
        %v2275 = vadd.f32 0.0, %v2274
        %2276 = vmatmul.bf16.gmra.mxu0 %v2147
        %v2277 = vpop.f32.mrf.mxu0
        %v2278 = vadd.f32 0.0, %v2277
        %v2279 = vpop.f32.mrf.mxu0
        %v2280 = vadd.f32 0.0, %v2279
        %2281 = vmatmul.bf16.gmra.mxu0 %v2148
        %v2282 = vpop.f32.mrf.mxu0
        %v2283 = vadd.f32 0.0, %v2282
        %v2284 = vpop.f32.mrf.mxu0
        %v2285 = vadd.f32 0.0, %v2284
        %2286 = vdwg.mxu0
        %v2287 = vadd.f32 %v2071, %v2239
        %v2288 = vadd.f32 %v2072, %v2268
        %v2289 = vadd.f32 %v2073, %v2241
        %v2290 = vadd.f32 %v2074, %v2270
        %v2291 = vadd.f32 %v2075, %v2244
        %v2292 = vadd.f32 %v2076, %v2273
        %v2293 = vadd.f32 %v2077, %v2246
        %v2294 = vadd.f32 %v2078, %v2275
        %v2295 = vadd.f32 %v2079, %v2249
        %v2296 = vadd.f32 %v2080, %v2278
        %v2297 = vadd.f32 %v2081, %v2251
        %v2298 = vadd.f32 %v2082, %v2280
        %v2299 = vadd.f32 %v2083, %v2254
        %v2300 = vadd.f32 %v2084, %v2283
        %v2301 = vadd.f32 %v2085, %v2256
        %v2302 = vadd.f32 %v2086, %v2285
        %v2303 = vmul.f32 %v2288, 0.5
        %v2304 = vmul.f32 %v2290, 0.5
        %v2305 = vmul.f32 %v2292, 0.5
        %v2306 = vmul.f32 %v2294, 0.5
        %v2307 = vmul.f32 %v2296, 0.5
        %v2308 = vmul.f32 %v2298, 0.5
        %v2309 = vmul.f32 %v2300, 0.5
        %v2310 = vmul.f32 %v2302, 0.5
        %v2311 = vtanh.pop %v2303
        %v2312 = vtanh.pop %v2304
        %v2313 = vtanh.pop %v2305
        %v2314 = vtanh.pop %v2306
        %v2315 = vtanh.pop %v2307
        %v2316 = vtanh.pop %v2308
        %v2317 = vtanh.pop %v2309
        %v2318 = vtanh.pop %v2310
        %v2319 = vadd.f32 %v2311, 1.0
        %v2320 = vadd.f32 %v2312, 1.0
        %v2321 = vadd.f32 %v2313, 1.0
        %v2322 = vadd.f32 %v2314, 1.0
        %v2323 = vadd.f32 %v2315, 1.0
        %v2324 = vadd.f32 %v2316, 1.0
        %v2325 = vadd.f32 %v2317, 1.0
        %v2326 = vadd.f32 %v2318, 1.0
        %v2327 = vmul.f32 %v2319, 0.5
        %v2328 = vmul.f32 %v2320, 0.5
        %v2329 = vmul.f32 %v2321, 0.5
        %v2330 = vmul.f32 %v2322, 0.5
        %v2331 = vmul.f32 %v2323, 0.5
        %v2332 = vmul.f32 %v2324, 0.5
        %v2333 = vmul.f32 %v2325, 0.5
        %v2334 = vmul.f32 %v2326, 0.5
        %v2335 = vtanh.pop %v2287
        %v2336 = vtanh.pop %v2289
        %v2337 = vtanh.pop %v2291
        %v2338 = vtanh.pop %v2293
        %v2339 = vtanh.pop %v2295
        %v2340 = vtanh.pop %v2297
        %v2341 = vtanh.pop %v2299
        %v2342 = vtanh.pop %v2301
        %v2343 = vmul.f32 %v2335, %v2327
        %v2344 = vmul.f32 %v2336, %v2328
        %v2345 = vmul.f32 %v2337, %v2329
        %v2346 = vmul.f32 %v2338, %v2330
        %v2347 = vmul.f32 %v2339, %v2331
        %v2348 = vmul.f32 %v2340, %v2332
        %v2349 = vmul.f32 %v2341, %v2333
        %v2350 = vmul.f32 %v2342, %v2334
        %s2351 = scalar_lea.vmem [#allocation13], 128
        %v2352 = vld [vmem:[%s2351] sm:$0xff]
        %v2353 = vld [vmem:[%s2351 + $0x8] sm:$0xff]
        %v2354 = vld [vmem:[%s2351 + $0x10] sm:$0xff]
        %v2355 = vld [vmem:[%s2351 + $0x18] sm:$0xff]
        %v2356 = vld [vmem:[%s2351 + $0x20] sm:$0xff]
        %v2357 = vld [vmem:[%s2351 + $0x28] sm:$0xff]
        %v2358 = vld [vmem:[%s2351 + $0x30] sm:$0xff]
        %v2359 = vld [vmem:[%s2351 + $0x38] sm:$0xff]
        %v2360 = vld [vmem:[%s2351 + $0x40] sm:$0xff]
        %v2361 = vld [vmem:[%s2351 + $0x48] sm:$0xff]
        %v2362 = vld [vmem:[%s2351 + $0x50] sm:$0xff]
        %v2363 = vld [vmem:[%s2351 + $0x58] sm:$0xff]
        %v2364 = vld [vmem:[%s2351 + $0x60] sm:$0xff]
        %v2365 = vld [vmem:[%s2351 + $0x68] sm:$0xff]
        %v2366 = vld [vmem:[%s2351 + $0x70] sm:$0xff]
        %v2367 = vld [vmem:[%s2351 + $0x78] sm:$0xff]
        %v2368 = vpack.c.bf16 %v2344, %v2343
        %v2369 = vpack.c.bf16 %v2346, %v2345
        %v2370 = vpack.c.bf16 %v2348, %v2347
        %v2371 = vpack.c.bf16 %v2350, %v2349
        %s2372 = scalar_lea.vmem [#allocation14], 2
        %v2373 = vld [vmem:[%s2372] sm:$0x3]
        %v2375 = vperm.slane %v2373, 0
        %v2376 = vperm.slane %v2373, 1
        %v2395 = vunpack.c.l.b16 %v2352
        %v2396 = vunpack.c.h.b16 %v2352
        %v2397 = vunpack.c.l.b16 %v2353
        %v2398 = vunpack.c.h.b16 %v2353
        %v2399 = vunpack.c.l.b16 %v2354
        %v2400 = vunpack.c.h.b16 %v2354
        %v2401 = vunpack.c.l.b16 %v2355
        %v2402 = vunpack.c.h.b16 %v2355
        %v2403 = vunpack.c.l.b16 %v2356
        %v2404 = vunpack.c.h.b16 %v2356
        %v2405 = vunpack.c.l.b16 %v2357
        %v2406 = vunpack.c.h.b16 %v2357
        %v2407 = vunpack.c.l.b16 %v2358
        %v2408 = vunpack.c.h.b16 %v2358
        %v2409 = vunpack.c.l.b16 %v2359
        %v2410 = vunpack.c.h.b16 %v2359
        %v2411 = vunpack.c.l.b16 %v2360
        %v2412 = vunpack.c.h.b16 %v2360
        %v2413 = vunpack.c.l.b16 %v2361
        %v2414 = vunpack.c.h.b16 %v2361
        %v2415 = vunpack.c.l.b16 %v2362
        %v2416 = vunpack.c.h.b16 %v2362
        %v2417 = vunpack.c.l.b16 %v2363
        %v2418 = vunpack.c.h.b16 %v2363
        %v2419 = vunpack.c.l.b16 %v2364
        %v2420 = vunpack.c.h.b16 %v2364
        %v2421 = vunpack.c.l.b16 %v2365
        %v2422 = vunpack.c.h.b16 %v2365
        %v2423 = vunpack.c.l.b16 %v2366
        %v2424 = vunpack.c.h.b16 %v2366
        %v2425 = vunpack.c.l.b16 %v2367
        %v2426 = vunpack.c.h.b16 %v2367
        %v2427 = vpack.c.b16 %v2397, %v2395
        %v2428 = vpack.c.b16 %v2398, %v2396
        %v2429 = vpack.c.b16 %v2401, %v2399
        %v2430 = vpack.c.b16 %v2402, %v2400
        %v2431 = vpack.c.b16 %v2405, %v2403
        %v2432 = vpack.c.b16 %v2406, %v2404
        %v2433 = vpack.c.b16 %v2409, %v2407
        %v2434 = vpack.c.b16 %v2410, %v2408
        %v2435 = vpack.c.b16 %v2413, %v2411
        %v2436 = vpack.c.b16 %v2414, %v2412
        %v2437 = vpack.c.b16 %v2417, %v2415
        %v2438 = vpack.c.b16 %v2418, %v2416
        %v2439 = vpack.c.b16 %v2421, %v2419
        %v2440 = vpack.c.b16 %v2422, %v2420
        %v2441 = vpack.c.b16 %v2425, %v2423
        %v2442 = vpack.c.b16 %v2426, %v2424
        %2459 = vmatpush.bf16.msra.mxu0 %v2441
        %2460 = vmatpush.bf16.msra.mxu0 %v2439
        %2461 = vmatpush.bf16.msra.mxu0 %v2437
        %2462 = vmatpush.bf16.msra.mxu0 %v2435
        %2463 = vmatpush.bf16.msra.mxu0 %v2433
        %2464 = vmatpush.bf16.msra.mxu0 %v2431
        %2465 = vmatpush.bf16.msra.mxu0 %v2429
        %2466 = vmatpush.bf16.msra.mxu0 %v2427
        %2467 = vmatmul.bf16.gmra.mxu0 %v2368
        %v2468 = vpop.f32.mrf.mxu0
        %v2469 = vadd.f32 %v2375, %v2468
        %v2470 = vpop.f32.mrf.mxu0
        %v2471 = vadd.f32 %v2375, %v2470
        %2472 = vmatmul.bf16.gmra.mxu0 %v2369
        %v2473 = vpop.f32.mrf.mxu0
        %v2474 = vadd.f32 %v2375, %v2473
        %v2475 = vpop.f32.mrf.mxu0
        %v2476 = vadd.f32 %v2375, %v2475
        %2477 = vmatmul.bf16.gmra.mxu0 %v2370
        %v2478 = vpop.f32.mrf.mxu0
        %v2479 = vadd.f32 %v2375, %v2478
        %v2480 = vpop.f32.mrf.mxu0
        %v2481 = vadd.f32 %v2375, %v2480
        %2482 = vmatmul.bf16.gmra.mxu0 %v2371
        %v2483 = vpop.f32.mrf.mxu0
        %v2484 = vadd.f32 %v2375, %v2483
        %v2485 = vpop.f32.mrf.mxu0
        %v2486 = vadd.f32 %v2375, %v2485
        %2487 = vdwg.mxu0
        %2488 = vmatpush.bf16.msra.mxu0 %v2442
        %2489 = vmatpush.bf16.msra.mxu0 %v2440
        %2490 = vmatpush.bf16.msra.mxu0 %v2438
        %2491 = vmatpush.bf16.msra.mxu0 %v2436
        %2492 = vmatpush.bf16.msra.mxu0 %v2434
        %2493 = vmatpush.bf16.msra.mxu0 %v2432
        %2494 = vmatpush.bf16.msra.mxu0 %v2430
        %2495 = vmatpush.bf16.msra.mxu0 %v2428
        %2496 = vmatmul.bf16.gmra.mxu0 %v2368
        %v2497 = vpop.f32.mrf.mxu0
        %v2498 = vadd.f32 %v2376, %v2497
        %v2499 = vpop.f32.mrf.mxu0
        %v2500 = vadd.f32 %v2376, %v2499
        %2501 = vmatmul.bf16.gmra.mxu0 %v2369
        %v2502 = vpop.f32.mrf.mxu0
        %v2503 = vadd.f32 %v2376, %v2502
        %v2504 = vpop.f32.mrf.mxu0
        %v2505 = vadd.f32 %v2376, %v2504
        %2506 = vmatmul.bf16.gmra.mxu0 %v2370
        %v2507 = vpop.f32.mrf.mxu0
        %v2508 = vadd.f32 %v2376, %v2507
        %v2509 = vpop.f32.mrf.mxu0
        %v2510 = vadd.f32 %v2376, %v2509
        %2511 = vmatmul.bf16.gmra.mxu0 %v2371
        %v2512 = vpop.f32.mrf.mxu0
        %v2513 = vadd.f32 %v2376, %v2512
        %v2514 = vpop.f32.mrf.mxu0
        %v2515 = vadd.f32 %v2376, %v2514
        %2516 = vdwg.mxu0
        %v2517 = vadd.f32 %v1778, %v2469
        %v2518 = vadd.f32 %v1779, %v2471
        %v2519 = vadd.f32 %v1780, %v2474
        %v2520 = vadd.f32 %v1781, %v2476
        %v2521 = vadd.f32 %v1782, %v2479
        %v2522 = vadd.f32 %v1783, %v2481
        %v2523 = vadd.f32 %v1784, %v2484
        %v2524 = vadd.f32 %v1785, %v2486
        %v2525 = vmul.f32 %v2517, 0.70710677
        %v2526 = vmul.f32 %v2518, 0.70710677
        %v2527 = vmul.f32 %v2519, 0.70710677
        %v2528 = vmul.f32 %v2520, 0.70710677
        %v2529 = vmul.f32 %v2521, 0.70710677
        %v2530 = vmul.f32 %v2522, 0.70710677
        %v2531 = vmul.f32 %v2523, 0.70710677
        %v2532 = vmul.f32 %v2524, 0.70710677
        %v2533 = vadd.f32 %v1751, %v2498
        %v2534 = vadd.f32 %v1753, %v2500
        %v2535 = vadd.f32 %v1756, %v2503
        %v2536 = vadd.f32 %v1758, %v2505
        %v2537 = vadd.f32 %v1761, %v2508
        %v2538 = vadd.f32 %v1763, %v2510
        %v2539 = vadd.f32 %v1766, %v2513
        %v2540 = vadd.f32 %v1768, %v2515
        %s2541 = scalar_lea.vmem [#allocation8], 640
        %v2542 = vld [vmem:[%s2541] sm:$0xff]
        %v2543 = vld [vmem:[%s2541 + $0x8] sm:$0xff]
        %v2544 = vld [vmem:[%s2541 + $0x10] sm:$0xff]
        %v2545 = vld [vmem:[%s2541 + $0x18] sm:$0xff]
        %v2546 = vld [vmem:[%s2541 + $0x20] sm:$0xff]
        %v2547 = vld [vmem:[%s2541 + $0x28] sm:$0xff]
        %v2548 = vld [vmem:[%s2541 + $0x30] sm:$0xff]
        %v2549 = vld [vmem:[%s2541 + $0x38] sm:$0xff]
        %v2550 = vld [vmem:[%s2541 + $0x40] sm:$0xff]
        %v2551 = vld [vmem:[%s2541 + $0x48] sm:$0xff]
        %v2552 = vld [vmem:[%s2541 + $0x50] sm:$0xff]
        %v2553 = vld [vmem:[%s2541 + $0x58] sm:$0xff]
        %v2554 = vld [vmem:[%s2541 + $0x60] sm:$0xff]
        %v2555 = vld [vmem:[%s2541 + $0x68] sm:$0xff]
        %v2556 = vld [vmem:[%s2541 + $0x70] sm:$0xff]
        %v2557 = vld [vmem:[%s2541 + $0x78] sm:$0xff]
        %v2558 = vpack.c.bf16 %v2526, %v2525
        %v2559 = vpack.c.bf16 %v2528, %v2527
        %v2560 = vpack.c.bf16 %v2530, %v2529
        %v2561 = vpack.c.bf16 %v2532, %v2531
        %s2562 = scalar_lea.vmem [#allocation10], 160
        %v2563 = vld [vmem:[%s2562] sm:$0xff]
        %v2564 = vld [vmem:[%s2562 + $0x8] sm:$0xff]
        %v2565 = vld [vmem:[%s2562 + $0x10] sm:$0xff]
        %v2566 = vld [vmem:[%s2562 + $0x18] sm:$0xff]
        %v2567 = vld [vmem:[%s2562 + $0x20] sm:$0xff]
        %v2568 = vld [vmem:[%s2562 + $0x28] sm:$0xff]
        %v2569 = vld [vmem:[%s2562 + $0x30] sm:$0xff]
        %v2570 = vld [vmem:[%s2562 + $0x38] sm:$0xff]
        %v2571 = vld [vmem:[%s2562 + $0x40] sm:$0xff]
        %v2572 = vld [vmem:[%s2562 + $0x48] sm:$0xff]
        %v2583 = vunpack.c.l.b16 %v2563
        %v2584 = vunpack.c.h.b16 %v2563
        %v2585 = vunpack.c.l.b16 %v2564
        %v2586 = vunpack.c.h.b16 %v2564
        %v2587 = vunpack.c.l.b16 %v2565
        %v2588 = vunpack.c.h.b16 %v2565
        %v2589 = vunpack.c.l.b16 %v2566
        %v2590 = vunpack.c.h.b16 %v2566
        %v2591 = vunpack.c.l.b16 %v2567
        %v2592 = vunpack.c.h.b16 %v2567
        %v2593 = vunpack.c.l.b16 %v2568
        %v2594 = vunpack.c.h.b16 %v2568
        %v2595 = vunpack.c.l.b16 %v2569
        %v2596 = vunpack.c.h.b16 %v2569
        %v2597 = vunpack.c.l.b16 %v2570
        %v2598 = vunpack.c.h.b16 %v2570
        %v2599 = vunpack.c.l.b16 %v2571
        %v2600 = vunpack.c.h.b16 %v2571
        %v2601 = vunpack.c.l.b16 %v2572
        %v2602 = vunpack.c.h.b16 %v2572
        %v2603 = vpack.c.b16 %v2585, %v2583
        %v2604 = vpack.c.b16 %v2586, %v2584
        %v2605 = vpack.c.b16 %v2589, %v2587
        %v2606 = vpack.c.b16 %v2590, %v2588
        %v2607 = vpack.c.b16 %v2593, %v2591
        %v2608 = vpack.c.b16 %v2594, %v2592
        %v2609 = vpack.c.b16 %v2597, %v2595
        %v2610 = vpack.c.b16 %v2598, %v2596
        %v2611 = vpack.c.b16 %v2601, %v2599
        %v2612 = vpack.c.b16 %v2602, %v2600
        %2623 = vmatpush.bf16.msra.mxu0 0
        %2624 = vmatpush.bf16.msra.mxu0 0
        %2625 = vmatpush.bf16.msra.mxu0 0
        %2626 = vmatpush.bf16.msra.mxu0 %v2611
        %2627 = vmatpush.bf16.msra.mxu0 %v2609
        %2628 = vmatpush.bf16.msra.mxu0 %v2607
        %2629 = vmatpush.bf16.msra.mxu0 %v2605
        %2630 = vmatpush.bf16.msra.mxu0 %v2603
        %2631 = vmatmul.bf16.gmra.mxu0 %v1114
        %v2632 = vpop.f32.mrf.mxu0
        %v2633 = vadd.f32 0.0, %v2632
        %v2634 = vpop.f32.mrf.mxu0
        %v2635 = vadd.f32 0.0, %v2634
        %2636 = vmatmul.bf16.gmra.mxu0 %v1117
        %v2637 = vpop.f32.mrf.mxu0
        %v2638 = vadd.f32 0.0, %v2637
        %v2639 = vpop.f32.mrf.mxu0
        %v2640 = vadd.f32 0.0, %v2639
        %2641 = vmatmul.bf16.gmra.mxu0 %v1120
        %v2642 = vpop.f32.mrf.mxu0
        %v2643 = vadd.f32 0.0, %v2642
        %v2644 = vpop.f32.mrf.mxu0
        %v2645 = vadd.f32 0.0, %v2644
        %2646 = vmatmul.bf16.gmra.mxu0 %v1123
        %v2647 = vpop.f32.mrf.mxu0
        %v2648 = vadd.f32 0.0, %v2647
        %v2649 = vpop.f32.mrf.mxu0
        %v2650 = vadd.f32 0.0, %v2649
        %2651 = vdwg.mxu0
        %2652 = vmatpush.bf16.msra.mxu0 0
        %2653 = vmatpush.bf16.msra.mxu0 0
        %2654 = vmatpush.bf16.msra.mxu0 0
        %2655 = vmatpush.bf16.msra.mxu0 %v2612
        %2656 = vmatpush.bf16.msra.mxu0 %v2610
        %2657 = vmatpush.bf16.msra.mxu0 %v2608
        %2658 = vmatpush.bf16.msra.mxu0 %v2606
        %2659 = vmatpush.bf16.msra.mxu0 %v2604
        %2660 = vmatmul.bf16.gmra.mxu0 %v1114
        %v2661 = vpop.f32.mrf.mxu0
        %v2662 = vadd.f32 0.0, %v2661
        %v2663 = vpop.f32.mrf.mxu0
        %v2664 = vadd.f32 0.0, %v2663
        %2665 = vmatmul.bf16.gmra.mxu0 %v1117
        %v2666 = vpop.f32.mrf.mxu0
        %v2667 = vadd.f32 0.0, %v2666
        %v2668 = vpop.f32.mrf.mxu0
        %v2669 = vadd.f32 0.0, %v2668
        %2670 = vmatmul.bf16.gmra.mxu0 %v1120
        %v2671 = vpop.f32.mrf.mxu0
        %v2672 = vadd.f32 0.0, %v2671
        %v2673 = vpop.f32.mrf.mxu0
        %v2674 = vadd.f32 0.0, %v2673
        %2675 = vmatmul.bf16.gmra.mxu0 %v1123
        %v2676 = vpop.f32.mrf.mxu0
        %v2677 = vadd.f32 0.0, %v2676
        %v2678 = vpop.f32.mrf.mxu0
        %v2679 = vadd.f32 0.0, %v2678
        %2680 = vdwg.mxu0
        %v2697 = vunpack.c.l.b16 %v2542
        %v2698 = vunpack.c.h.b16 %v2542
        %v2699 = vunpack.c.l.b16 %v2543
        %v2700 = vunpack.c.h.b16 %v2543
        %v2701 = vunpack.c.l.b16 %v2544
        %v2702 = vunpack.c.h.b16 %v2544
        %v2703 = vunpack.c.l.b16 %v2545
        %v2704 = vunpack.c.h.b16 %v2545
        %v2705 = vunpack.c.l.b16 %v2546
        %v2706 = vunpack.c.h.b16 %v2546
        %v2707 = vunpack.c.l.b16 %v2547
        %v2708 = vunpack.c.h.b16 %v2547
        %v2709 = vunpack.c.l.b16 %v2548
        %v2710 = vunpack.c.h.b16 %v2548
        %v2711 = vunpack.c.l.b16 %v2549
        %v2712 = vunpack.c.h.b16 %v2549
        %v2713 = vunpack.c.l.b16 %v2550
        %v2714 = vunpack.c.h.b16 %v2550
        %v2715 = vunpack.c.l.b16 %v2551
        %v2716 = vunpack.c.h.b16 %v2551
        %v2717 = vunpack.c.l.b16 %v2552
        %v2718 = vunpack.c.h.b16 %v2552
        %v2719 = vunpack.c.l.b16 %v2553
        %v2720 = vunpack.c.h.b16 %v2553
        %v2721 = vunpack.c.l.b16 %v2554
        %v2722 = vunpack.c.h.b16 %v2554
        %v2723 = vunpack.c.l.b16 %v2555
        %v2724 = vunpack.c.h.b16 %v2555
        %v2725 = vunpack.c.l.b16 %v2556
        %v2726 = vunpack.c.h.b16 %v2556
        %v2727 = vunpack.c.l.b16 %v2557
        %v2728 = vunpack.c.h.b16 %v2557
        %v2729 = vpack.c.b16 %v2699, %v2697
        %v2730 = vpack.c.b16 %v2700, %v2698
        %v2731 = vpack.c.b16 %v2703, %v2701
        %v2732 = vpack.c.b16 %v2704, %v2702
        %v2733 = vpack.c.b16 %v2707, %v2705
        %v2734 = vpack.c.b16 %v2708, %v2706
        %v2735 = vpack.c.b16 %v2711, %v2709
        %v2736 = vpack.c.b16 %v2712, %v2710
        %v2737 = vpack.c.b16 %v2715, %v2713
        %v2738 = vpack.c.b16 %v2716, %v2714
        %v2739 = vpack.c.b16 %v2719, %v2717
        %v2740 = vpack.c.b16 %v2720, %v2718
        %v2741 = vpack.c.b16 %v2723, %v2721
        %v2742 = vpack.c.b16 %v2724, %v2722
        %v2743 = vpack.c.b16 %v2727, %v2725
        %v2744 = vpack.c.b16 %v2728, %v2726
        %2761 = vmatpush.bf16.msra.mxu0 %v2743
        %2762 = vmatpush.bf16.msra.mxu0 %v2741
        %2763 = vmatpush.bf16.msra.mxu0 %v2739
        %2764 = vmatpush.bf16.msra.mxu0 %v2737
        %2765 = vmatpush.bf16.msra.mxu0 %v2735
        %2766 = vmatpush.bf16.msra.mxu0 %v2733
        %2767 = vmatpush.bf16.msra.mxu0 %v2731
        %2768 = vmatpush.bf16.msra.mxu0 %v2729
        %2769 = vmatmul.bf16.gmra.mxu0 %v2558
        %v2770 = vpop.f32.mrf.mxu0
        %v2771 = vadd.f32 %v2633, %v2770
        %v2772 = vpop.f32.mrf.mxu0
        %v2773 = vadd.f32 %v2635, %v2772
        %2774 = vmatmul.bf16.gmra.mxu0 %v2559
        %v2775 = vpop.f32.mrf.mxu0
        %v2776 = vadd.f32 %v2638, %v2775
        %v2777 = vpop.f32.mrf.mxu0
        %v2778 = vadd.f32 %v2640, %v2777
        %2779 = vmatmul.bf16.gmra.mxu0 %v2560
        %v2780 = vpop.f32.mrf.mxu0
        %v2781 = vadd.f32 %v2643, %v2780
        %v2782 = vpop.f32.mrf.mxu0
        %v2783 = vadd.f32 %v2645, %v2782
        %2784 = vmatmul.bf16.gmra.mxu0 %v2561
        %v2785 = vpop.f32.mrf.mxu0
        %v2786 = vadd.f32 %v2648, %v2785
        %v2787 = vpop.f32.mrf.mxu0
        %v2788 = vadd.f32 %v2650, %v2787
        %2789 = vdwg.mxu0
        %2790 = vmatpush.bf16.msra.mxu0 %v2744
        %2791 = vmatpush.bf16.msra.mxu0 %v2742
        %2792 = vmatpush.bf16.msra.mxu0 %v2740
        %2793 = vmatpush.bf16.msra.mxu0 %v2738
        %2794 = vmatpush.bf16.msra.mxu0 %v2736
        %2795 = vmatpush.bf16.msra.mxu0 %v2734
        %2796 = vmatpush.bf16.msra.mxu0 %v2732
        %2797 = vmatpush.bf16.msra.mxu0 %v2730
        %2798 = vmatmul.bf16.gmra.mxu0 %v2558
        %v2799 = vpop.f32.mrf.mxu0
        %v2800 = vadd.f32 %v2662, %v2799
        %v2801 = vpop.f32.mrf.mxu0
        %v2802 = vadd.f32 %v2664, %v2801
        %2803 = vmatmul.bf16.gmra.mxu0 %v2559
        %v2804 = vpop.f32.mrf.mxu0
        %v2805 = vadd.f32 %v2667, %v2804
        %v2806 = vpop.f32.mrf.mxu0
        %v2807 = vadd.f32 %v2669, %v2806
        %2808 = vmatmul.bf16.gmra.mxu0 %v2560
        %v2809 = vpop.f32.mrf.mxu0
        %v2810 = vadd.f32 %v2672, %v2809
        %v2811 = vpop.f32.mrf.mxu0
        %v2812 = vadd.f32 %v2674, %v2811
        %2813 = vmatmul.bf16.gmra.mxu0 %v2561
        %v2814 = vpop.f32.mrf.mxu0
        %v2815 = vadd.f32 %v2677, %v2814
        %v2816 = vpop.f32.mrf.mxu0
        %v2817 = vadd.f32 %v2679, %v2816
        %2818 = vdwg.mxu0
        %s2819 = scalar_lea.vmem [#allocation11], 4
        %v2820 = vld [vmem:[%s2819] sm:$0x3]
        %v2822 = vperm.slane %v2820, 0
        %v2823 = vperm.slane %v2820, 1
        %v2826 = vadd.f32 %v2771, %v2822
        %v2827 = vadd.f32 %v2800, %v2823
        %v2828 = vadd.f32 %v2773, %v2822
        %v2829 = vadd.f32 %v2802, %v2823
        %v2830 = vadd.f32 %v2776, %v2822
        %v2831 = vadd.f32 %v2805, %v2823
        %v2832 = vadd.f32 %v2778, %v2822
        %v2833 = vadd.f32 %v2807, %v2823
        %v2834 = vadd.f32 %v2781, %v2822
        %v2835 = vadd.f32 %v2810, %v2823
        %v2836 = vadd.f32 %v2783, %v2822
        %v2837 = vadd.f32 %v2812, %v2823
        %v2838 = vadd.f32 %v2786, %v2822
        %v2839 = vadd.f32 %v2815, %v2823
        %v2840 = vadd.f32 %v2788, %v2822
        %v2841 = vadd.f32 %v2817, %v2823
        %v2842 = vrot.slane %v2525, 4
        %v2843 = vrot.slane %v2526, 4
        %v2844 = vrot.slane %v2527, 4
        %v2845 = vrot.slane %v2528, 4
        %v2846 = vrot.slane %v2529, 4
        %v2847 = vrot.slane %v2530, 4
        %v2848 = vrot.slane %v2531, 4
        %v2849 = vrot.slane %v2532, 4
        %vm2850 = vcmp.lt.s32.totalorder %v653, 4
        %v2851 = vsel %vm2850, %v2848, %v2849
        %v2852 = vsel %vm2850, %v2847, %v2848
        %v2853 = vsel %vm2850, %v2846, %v2847
        %v2854 = vsel %vm2850, %v2845, %v2846
        %v2855 = vsel %vm2850, %v2844, %v2845
        %v2856 = vsel %vm2850, %v2843, %v2844
        %v2857 = vsel %vm2850, %v2842, %v2843
        %v2858 = vsel %vm2850, %v2849, %v2842
        %v2859 = vsel %vm773, 1, 0
        %v2860 = vsel %vm774, 1, 0
        %v2861 = vsel %vm775, 1, 0
        %v2862 = vsel %vm776, 1, 0
        %v2863 = vsel %vm777, 1, 0
        %v2864 = vsel %vm778, 1, 0
        %v2865 = vsel %vm779, 1, 0
        %v2866 = vsel %vm780, 1, 0
        %vm2867 = vcmp.eq.s32.totalorder %v2859, 1
        %vm2868 = vcmp.eq.s32.totalorder %v2860, 1
        %vm2869 = vcmp.eq.s32.totalorder %v2861, 1
        %vm2870 = vcmp.eq.s32.totalorder %v2862, 1
        %vm2871 = vcmp.eq.s32.totalorder %v2863, 1
        %vm2872 = vcmp.eq.s32.totalorder %v2864, 1
        %vm2873 = vcmp.eq.s32.totalorder %v2865, 1
        %vm2874 = vcmp.eq.s32.totalorder %v2866, 1
        %v2875 = vsel %vm2867, %v2858, 0.0
        %v2876 = vsel %vm2868, %v2857, 0.0
        %v2877 = vsel %vm2869, %v2856, 0.0
        %v2878 = vsel %vm2870, %v2855, 0.0
        %v2879 = vsel %vm2871, %v2854, 0.0
        %v2880 = vsel %vm2872, %v2853, 0.0
        %v2881 = vsel %vm2873, %v2852, 0.0
        %v2882 = vsel %vm2874, %v2851, 0.0
        %s2883 = scalar_lea.vmem [#allocation8], 512
        %v2884 = vld [vmem:[%s2883] sm:$0xff]
        %v2885 = vld [vmem:[%s2883 + $0x8] sm:$0xff]
        %v2886 = vld [vmem:[%s2883 + $0x10] sm:$0xff]
        %v2887 = vld [vmem:[%s2883 + $0x18] sm:$0xff]
        %v2888 = vld [vmem:[%s2883 + $0x20] sm:$0xff]
        %v2889 = vld [vmem:[%s2883 + $0x28] sm:$0xff]
        %v2890 = vld [vmem:[%s2883 + $0x30] sm:$0xff]
        %v2891 = vld [vmem:[%s2883 + $0x38] sm:$0xff]
        %v2892 = vld [vmem:[%s2883 + $0x40] sm:$0xff]
        %v2893 = vld [vmem:[%s2883 + $0x48] sm:$0xff]
        %v2894 = vld [vmem:[%s2883 + $0x50] sm:$0xff]
        %v2895 = vld [vmem:[%s2883 + $0x58] sm:$0xff]
        %v2896 = vld [vmem:[%s2883 + $0x60] sm:$0xff]
        %v2897 = vld [vmem:[%s2883 + $0x68] sm:$0xff]
        %v2898 = vld [vmem:[%s2883 + $0x70] sm:$0xff]
        %v2899 = vld [vmem:[%s2883 + $0x78] sm:$0xff]
        %v2900 = vpack.c.bf16 %v2876, %v2875
        %v2901 = vpack.c.bf16 %v2878, %v2877
        %v2902 = vpack.c.bf16 %v2880, %v2879
        %v2903 = vpack.c.bf16 %v2882, %v2881
        %v2920 = vunpack.c.l.b16 %v2884
        %v2921 = vunpack.c.h.b16 %v2884
        %v2922 = vunpack.c.l.b16 %v2885
        %v2923 = vunpack.c.h.b16 %v2885
        %v2924 = vunpack.c.l.b16 %v2886
        %v2925 = vunpack.c.h.b16 %v2886
        %v2926 = vunpack.c.l.b16 %v2887
        %v2927 = vunpack.c.h.b16 %v2887
        %v2928 = vunpack.c.l.b16 %v2888
        %v2929 = vunpack.c.h.b16 %v2888
        %v2930 = vunpack.c.l.b16 %v2889
        %v2931 = vunpack.c.h.b16 %v2889
        %v2932 = vunpack.c.l.b16 %v2890
        %v2933 = vunpack.c.h.b16 %v2890
        %v2934 = vunpack.c.l.b16 %v2891
        %v2935 = vunpack.c.h.b16 %v2891
        %v2936 = vunpack.c.l.b16 %v2892
        %v2937 = vunpack.c.h.b16 %v2892
        %v2938 = vunpack.c.l.b16 %v2893
        %v2939 = vunpack.c.h.b16 %v2893
        %v2940 = vunpack.c.l.b16 %v2894
        %v2941 = vunpack.c.h.b16 %v2894
        %v2942 = vunpack.c.l.b16 %v2895
        %v2943 = vunpack.c.h.b16 %v2895
        %v2944 = vunpack.c.l.b16 %v2896
        %v2945 = vunpack.c.h.b16 %v2896
        %v2946 = vunpack.c.l.b16 %v2897
        %v2947 = vunpack.c.h.b16 %v2897
        %v2948 = vunpack.c.l.b16 %v2898
        %v2949 = vunpack.c.h.b16 %v2898
        %v2950 = vunpack.c.l.b16 %v2899
        %v2951 = vunpack.c.h.b16 %v2899
        %v2952 = vpack.c.b16 %v2922, %v2920
        %v2953 = vpack.c.b16 %v2923, %v2921
        %v2954 = vpack.c.b16 %v2926, %v2924
        %v2955 = vpack.c.b16 %v2927, %v2925
        %v2956 = vpack.c.b16 %v2930, %v2928
        %v2957 = vpack.c.b16 %v2931, %v2929
        %v2958 = vpack.c.b16 %v2934, %v2932
        %v2959 = vpack.c.b16 %v2935, %v2933
        %v2960 = vpack.c.b16 %v2938, %v2936
        %v2961 = vpack.c.b16 %v2939, %v2937
        %v2962 = vpack.c.b16 %v2942, %v2940
        %v2963 = vpack.c.b16 %v2943, %v2941
        %v2964 = vpack.c.b16 %v2946, %v2944
        %v2965 = vpack.c.b16 %v2947, %v2945
        %v2966 = vpack.c.b16 %v2950, %v2948
        %v2967 = vpack.c.b16 %v2951, %v2949
        %2984 = vmatpush.bf16.msra.mxu0 %v2966
        %2985 = vmatpush.bf16.msra.mxu0 %v2964
        %2986 = vmatpush.bf16.msra.mxu0 %v2962
        %2987 = vmatpush.bf16.msra.mxu0 %v2960
        %2988 = vmatpush.bf16.msra.mxu0 %v2958
        %2989 = vmatpush.bf16.msra.mxu0 %v2956
        %2990 = vmatpush.bf16.msra.mxu0 %v2954
        %2991 = vmatpush.bf16.msra.mxu0 %v2952
        %2992 = vmatmul.bf16.gmra.mxu0 %v2900
        %v2993 = vpop.f32.mrf.mxu0
        %v2994 = vadd.f32 0.0, %v2993
        %v2995 = vpop.f32.mrf.mxu0
        %v2996 = vadd.f32 0.0, %v2995
        %2997 = vmatmul.bf16.gmra.mxu0 %v2901
        %v2998 = vpop.f32.mrf.mxu0
        %v2999 = vadd.f32 0.0, %v2998
        %v3000 = vpop.f32.mrf.mxu0
        %v3001 = vadd.f32 0.0, %v3000
        %3002 = vmatmul.bf16.gmra.mxu0 %v2902
        %v3003 = vpop.f32.mrf.mxu0
        %v3004 = vadd.f32 0.0, %v3003
        %v3005 = vpop.f32.mrf.mxu0
        %v3006 = vadd.f32 0.0, %v3005
        %3007 = vmatmul.bf16.gmra.mxu0 %v2903
        %v3008 = vpop.f32.mrf.mxu0
        %v3009 = vadd.f32 0.0, %v3008
        %v3010 = vpop.f32.mrf.mxu0
        %v3011 = vadd.f32 0.0, %v3010
        %3012 = vdwg.mxu0
        %3013 = vmatpush.bf16.msra.mxu0 %v2967
        %3014 = vmatpush.bf16.msra.mxu0 %v2965
        %3015 = vmatpush.bf16.msra.mxu0 %v2963
        %3016 = vmatpush.bf16.msra.mxu0 %v2961
        %3017 = vmatpush.bf16.msra.mxu0 %v2959
        %3018 = vmatpush.bf16.msra.mxu0 %v2957
        %3019 = vmatpush.bf16.msra.mxu0 %v2955
        %3020 = vmatpush.bf16.msra.mxu0 %v2953
        %3021 = vmatmul.bf16.gmra.mxu0 %v2900
        %v3022 = vpop.f32.mrf.mxu0
        %v3023 = vadd.f32 0.0, %v3022
        %v3024 = vpop.f32.mrf.mxu0
        %v3025 = vadd.f32 0.0, %v3024
        %3026 = vmatmul.bf16.gmra.mxu0 %v2901
        %v3027 = vpop.f32.mrf.mxu0
        %v3028 = vadd.f32 0.0, %v3027
        %v3029 = vpop.f32.mrf.mxu0
        %v3030 = vadd.f32 0.0, %v3029
        %3031 = vmatmul.bf16.gmra.mxu0 %v2902
        %v3032 = vpop.f32.mrf.mxu0
        %v3033 = vadd.f32 0.0, %v3032
        %v3034 = vpop.f32.mrf.mxu0
        %v3035 = vadd.f32 0.0, %v3034
        %3036 = vmatmul.bf16.gmra.mxu0 %v2903
        %v3037 = vpop.f32.mrf.mxu0
        %v3038 = vadd.f32 0.0, %v3037
        %v3039 = vpop.f32.mrf.mxu0
        %v3040 = vadd.f32 0.0, %v3039
        %3041 = vdwg.mxu0
        %v3042 = vadd.f32 %v2826, %v2994
        %v3043 = vadd.f32 %v2827, %v3023
        %v3044 = vadd.f32 %v2828, %v2996
        %v3045 = vadd.f32 %v2829, %v3025
        %v3046 = vadd.f32 %v2830, %v2999
        %v3047 = vadd.f32 %v2831, %v3028
        %v3048 = vadd.f32 %v2832, %v3001
        %v3049 = vadd.f32 %v2833, %v3030
        %v3050 = vadd.f32 %v2834, %v3004
        %v3051 = vadd.f32 %v2835, %v3033
        %v3052 = vadd.f32 %v2836, %v3006
        %v3053 = vadd.f32 %v2837, %v3035
        %v3054 = vadd.f32 %v2838, %v3009
        %v3055 = vadd.f32 %v2839, %v3038
        %v3056 = vadd.f32 %v2840, %v3011
        %v3057 = vadd.f32 %v2841, %v3040
        %v3058 = vmul.f32 %v3043, 0.5
        %v3059 = vmul.f32 %v3045, 0.5
        %v3060 = vmul.f32 %v3047, 0.5
        %v3061 = vmul.f32 %v3049, 0.5
        %v3062 = vmul.f32 %v3051, 0.5
        %v3063 = vmul.f32 %v3053, 0.5
        %v3064 = vmul.f32 %v3055, 0.5
        %v3065 = vmul.f32 %v3057, 0.5
        %v3066 = vtanh.pop %v3058
        %v3067 = vtanh.pop %v3059
        %v3068 = vtanh.pop %v3060
        %v3069 = vtanh.pop %v3061
        %v3070 = vtanh.pop %v3062
        %v3071 = vtanh.pop %v3063
        %v3072 = vtanh.pop %v3064
        %v3073 = vtanh.pop %v3065
        %v3074 = vadd.f32 %v3066, 1.0
        %v3075 = vadd.f32 %v3067, 1.0
        %v3076 = vadd.f32 %v3068, 1.0
        %v3077 = vadd.f32 %v3069, 1.0
        %v3078 = vadd.f32 %v3070, 1.0
        %v3079 = vadd.f32 %v3071, 1.0
        %v3080 = vadd.f32 %v3072, 1.0
        %v3081 = vadd.f32 %v3073, 1.0
        %v3082 = vmul.f32 %v3074, 0.5
        %v3083 = vmul.f32 %v3075, 0.5
        %v3084 = vmul.f32 %v3076, 0.5
        %v3085 = vmul.f32 %v3077, 0.5
        %v3086 = vmul.f32 %v3078, 0.5
        %v3087 = vmul.f32 %v3079, 0.5
        %v3088 = vmul.f32 %v3080, 0.5
        %v3089 = vmul.f32 %v3081, 0.5
        %v3090 = vtanh.pop %v3042
        %v3091 = vtanh.pop %v3044
        %v3092 = vtanh.pop %v3046
        %v3093 = vtanh.pop %v3048
        %v3094 = vtanh.pop %v3050
        %v3095 = vtanh.pop %v3052
        %v3096 = vtanh.pop %v3054
        %v3097 = vtanh.pop %v3056
        %v3098 = vmul.f32 %v3090, %v3082
        %v3099 = vmul.f32 %v3091, %v3083
        %v3100 = vmul.f32 %v3092, %v3084
        %v3101 = vmul.f32 %v3093, %v3085
        %v3102 = vmul.f32 %v3094, %v3086
        %v3103 = vmul.f32 %v3095, %v3087
        %v3104 = vmul.f32 %v3096, %v3088
        %v3105 = vmul.f32 %v3097, %v3089
        %s3106 = scalar_lea.vmem [#allocation13], 256
        %v3107 = vld [vmem:[%s3106] sm:$0xff]
        %v3108 = vld [vmem:[%s3106 + $0x8] sm:$0xff]
        %v3109 = vld [vmem:[%s3106 + $0x10] sm:$0xff]
        %v3110 = vld [vmem:[%s3106 + $0x18] sm:$0xff]
        %v3111 = vld [vmem:[%s3106 + $0x20] sm:$0xff]
        %v3112 = vld [vmem:[%s3106 + $0x28] sm:$0xff]
        %v3113 = vld [vmem:[%s3106 + $0x30] sm:$0xff]
        %v3114 = vld [vmem:[%s3106 + $0x38] sm:$0xff]
        %v3115 = vld [vmem:[%s3106 + $0x40] sm:$0xff]
        %v3116 = vld [vmem:[%s3106 + $0x48] sm:$0xff]
        %v3117 = vld [vmem:[%s3106 + $0x50] sm:$0xff]
        %v3118 = vld [vmem:[%s3106 + $0x58] sm:$0xff]
        %v3119 = vld [vmem:[%s3106 + $0x60] sm:$0xff]
        %v3120 = vld [vmem:[%s3106 + $0x68] sm:$0xff]
        %v3121 = vld [vmem:[%s3106 + $0x70] sm:$0xff]
        %v3122 = vld [vmem:[%s3106 + $0x78] sm:$0xff]
        %v3123 = vpack.c.bf16 %v3099, %v3098
        %v3124 = vpack.c.bf16 %v3101, %v3100
        %v3125 = vpack.c.bf16 %v3103, %v3102
        %v3126 = vpack.c.bf16 %v3105, %v3104
        %s3127 = scalar_lea.vmem [#allocation14], 4
        %v3128 = vld [vmem:[%s3127] sm:$0x3]
        %v3130 = vperm.slane %v3128, 0
        %v3131 = vperm.slane %v3128, 1
        %v3150 = vunpack.c.l.b16 %v3107
        %v3151 = vunpack.c.h.b16 %v3107
        %v3152 = vunpack.c.l.b16 %v3108
        %v3153 = vunpack.c.h.b16 %v3108
        %v3154 = vunpack.c.l.b16 %v3109
        %v3155 = vunpack.c.h.b16 %v3109
        %v3156 = vunpack.c.l.b16 %v3110
        %v3157 = vunpack.c.h.b16 %v3110
        %v3158 = vunpack.c.l.b16 %v3111
        %v3159 = vunpack.c.h.b16 %v3111
        %v3160 = vunpack.c.l.b16 %v3112
        %v3161 = vunpack.c.h.b16 %v3112
        %v3162 = vunpack.c.l.b16 %v3113
        %v3163 = vunpack.c.h.b16 %v3113
        %v3164 = vunpack.c.l.b16 %v3114
        %v3165 = vunpack.c.h.b16 %v3114
        %v3166 = vunpack.c.l.b16 %v3115
        %v3167 = vunpack.c.h.b16 %v3115
        %v3168 = vunpack.c.l.b16 %v3116
        %v3169 = vunpack.c.h.b16 %v3116
        %v3170 = vunpack.c.l.b16 %v3117
        %v3171 = vunpack.c.h.b16 %v3117
        %v3172 = vunpack.c.l.b16 %v3118
        %v3173 = vunpack.c.h.b16 %v3118
        %v3174 = vunpack.c.l.b16 %v3119
        %v3175 = vunpack.c.h.b16 %v3119
        %v3176 = vunpack.c.l.b16 %v3120
        %v3177 = vunpack.c.h.b16 %v3120
        %v3178 = vunpack.c.l.b16 %v3121
        %v3179 = vunpack.c.h.b16 %v3121
        %v3180 = vunpack.c.l.b16 %v3122
        %v3181 = vunpack.c.h.b16 %v3122
        %v3182 = vpack.c.b16 %v3152, %v3150
        %v3183 = vpack.c.b16 %v3153, %v3151
        %v3184 = vpack.c.b16 %v3156, %v3154
        %v3185 = vpack.c.b16 %v3157, %v3155
        %v3186 = vpack.c.b16 %v3160, %v3158
        %v3187 = vpack.c.b16 %v3161, %v3159
        %v3188 = vpack.c.b16 %v3164, %v3162
        %v3189 = vpack.c.b16 %v3165, %v3163
        %v3190 = vpack.c.b16 %v3168, %v3166
        %v3191 = vpack.c.b16 %v3169, %v3167
        %v3192 = vpack.c.b16 %v3172, %v3170
        %v3193 = vpack.c.b16 %v3173, %v3171
        %v3194 = vpack.c.b16 %v3176, %v3174
        %v3195 = vpack.c.b16 %v3177, %v3175
        %v3196 = vpack.c.b16 %v3180, %v3178
        %v3197 = vpack.c.b16 %v3181, %v3179
        %3214 = vmatpush.bf16.msra.mxu0 %v3196
        %3215 = vmatpush.bf16.msra.mxu0 %v3194
        %3216 = vmatpush.bf16.msra.mxu0 %v3192
        %3217 = vmatpush.bf16.msra.mxu0 %v3190
        %3218 = vmatpush.bf16.msra.mxu0 %v3188
        %3219 = vmatpush.bf16.msra.mxu0 %v3186
        %3220 = vmatpush.bf16.msra.mxu0 %v3184
        %3221 = vmatpush.bf16.msra.mxu0 %v3182
        %3222 = vmatmul.bf16.gmra.mxu0 %v3123
        %v3223 = vpop.f32.mrf.mxu0
        %v3224 = vadd.f32 %v3130, %v3223
        %v3225 = vpop.f32.mrf.mxu0
        %v3226 = vadd.f32 %v3130, %v3225
        %3227 = vmatmul.bf16.gmra.mxu0 %v3124
        %v3228 = vpop.f32.mrf.mxu0
        %v3229 = vadd.f32 %v3130, %v3228
        %v3230 = vpop.f32.mrf.mxu0
        %v3231 = vadd.f32 %v3130, %v3230
        %3232 = vmatmul.bf16.gmra.mxu0 %v3125
        %v3233 = vpop.f32.mrf.mxu0
        %v3234 = vadd.f32 %v3130, %v3233
        %v3235 = vpop.f32.mrf.mxu0
        %v3236 = vadd.f32 %v3130, %v3235
        %3237 = vmatmul.bf16.gmra.mxu0 %v3126
        %v3238 = vpop.f32.mrf.mxu0
        %v3239 = vadd.f32 %v3130, %v3238
        %v3240 = vpop.f32.mrf.mxu0
        %v3241 = vadd.f32 %v3130, %v3240
        %3242 = vdwg.mxu0
        %3243 = vmatpush.bf16.msra.mxu0 %v3197
        %3244 = vmatpush.bf16.msra.mxu0 %v3195
        %3245 = vmatpush.bf16.msra.mxu0 %v3193
        %3246 = vmatpush.bf16.msra.mxu0 %v3191
        %3247 = vmatpush.bf16.msra.mxu0 %v3189
        %3248 = vmatpush.bf16.msra.mxu0 %v3187
        %3249 = vmatpush.bf16.msra.mxu0 %v3185
        %3250 = vmatpush.bf16.msra.mxu0 %v3183
        %3251 = vmatmul.bf16.gmra.mxu0 %v3123
        %v3252 = vpop.f32.mrf.mxu0
        %v3253 = vadd.f32 %v3131, %v3252
        %v3254 = vpop.f32.mrf.mxu0
        %v3255 = vadd.f32 %v3131, %v3254
        %3256 = vmatmul.bf16.gmra.mxu0 %v3124
        %v3257 = vpop.f32.mrf.mxu0
        %v3258 = vadd.f32 %v3131, %v3257
        %v3259 = vpop.f32.mrf.mxu0
        %v3260 = vadd.f32 %v3131, %v3259
        %3261 = vmatmul.bf16.gmra.mxu0 %v3125
        %v3262 = vpop.f32.mrf.mxu0
        %v3263 = vadd.f32 %v3131, %v3262
        %v3264 = vpop.f32.mrf.mxu0
        %v3265 = vadd.f32 %v3131, %v3264
        %3266 = vmatmul.bf16.gmra.mxu0 %v3126
        %v3267 = vpop.f32.mrf.mxu0
        %v3268 = vadd.f32 %v3131, %v3267
        %v3269 = vpop.f32.mrf.mxu0
        %v3270 = vadd.f32 %v3131, %v3269
        %3271 = vdwg.mxu0
        %v3272 = vadd.f32 %v2525, %v3224
        %v3273 = vadd.f32 %v2526, %v3226
        %v3274 = vadd.f32 %v2527, %v3229
        %v3275 = vadd.f32 %v2528, %v3231
        %v3276 = vadd.f32 %v2529, %v3234
        %v3277 = vadd.f32 %v2530, %v3236
        %v3278 = vadd.f32 %v2531, %v3239
        %v3279 = vadd.f32 %v2532, %v3241
        %v3280 = vmul.f32 %v3272, 0.70710677
        %v3281 = vmul.f32 %v3273, 0.70710677
        %v3282 = vmul.f32 %v3274, 0.70710677
        %v3283 = vmul.f32 %v3275, 0.70710677
        %v3284 = vmul.f32 %v3276, 0.70710677
        %v3285 = vmul.f32 %v3277, 0.70710677
        %v3286 = vmul.f32 %v3278, 0.70710677
        %v3287 = vmul.f32 %v3279, 0.70710677
        %v3288 = vadd.f32 %v2533, %v3253
        %v3289 = vadd.f32 %v2534, %v3255
        %v3290 = vadd.f32 %v2535, %v3258
        %v3291 = vadd.f32 %v2536, %v3260
        %v3292 = vadd.f32 %v2537, %v3263
        %v3293 = vadd.f32 %v2538, %v3265
        %v3294 = vadd.f32 %v2539, %v3268
        %v3295 = vadd.f32 %v2540, %v3270
        %s3296 = scalar_lea.vmem [#allocation8], 896
        %v3297 = vld [vmem:[%s3296] sm:$0xff]
        %v3298 = vld [vmem:[%s3296 + $0x8] sm:$0xff]
        %v3299 = vld [vmem:[%s3296 + $0x10] sm:$0xff]
        %v3300 = vld [vmem:[%s3296 + $0x18] sm:$0xff]
        %v3301 = vld [vmem:[%s3296 + $0x20] sm:$0xff]
        %v3302 = vld [vmem:[%s3296 + $0x28] sm:$0xff]
        %v3303 = vld [vmem:[%s3296 + $0x30] sm:$0xff]
        %v3304 = vld [vmem:[%s3296 + $0x38] sm:$0xff]
        %v3305 = vld [vmem:[%s3296 + $0x40] sm:$0xff]
        %v3306 = vld [vmem:[%s3296 + $0x48] sm:$0xff]
        %v3307 = vld [vmem:[%s3296 + $0x50] sm:$0xff]
        %v3308 = vld [vmem:[%s3296 + $0x58] sm:$0xff]
        %v3309 = vld [vmem:[%s3296 + $0x60] sm:$0xff]
        %v3310 = vld [vmem:[%s3296 + $0x68] sm:$0xff]
        %v3311 = vld [vmem:[%s3296 + $0x70] sm:$0xff]
        %v3312 = vld [vmem:[%s3296 + $0x78] sm:$0xff]
        %v3313 = vpack.c.bf16 %v3281, %v3280
        %v3314 = vpack.c.bf16 %v3283, %v3282
        %v3315 = vpack.c.bf16 %v3285, %v3284
        %v3316 = vpack.c.bf16 %v3287, %v3286
        %s3317 = scalar_lea.vmem [#allocation10], 240
        %v3318 = vld [vmem:[%s3317] sm:$0xff]
        %v3319 = vld [vmem:[%s3317 + $0x8] sm:$0xff]
        %v3320 = vld [vmem:[%s3317 + $0x10] sm:$0xff]
        %v3321 = vld [vmem:[%s3317 + $0x18] sm:$0xff]
        %v3322 = vld [vmem:[%s3317 + $0x20] sm:$0xff]
        %v3323 = vld [vmem:[%s3317 + $0x28] sm:$0xff]
        %v3324 = vld [vmem:[%s3317 + $0x30] sm:$0xff]
        %v3325 = vld [vmem:[%s3317 + $0x38] sm:$0xff]
        %v3326 = vld [vmem:[%s3317 + $0x40] sm:$0xff]
        %v3327 = vld [vmem:[%s3317 + $0x48] sm:$0xff]
        %v3338 = vunpack.c.l.b16 %v3318
        %v3339 = vunpack.c.h.b16 %v3318
        %v3340 = vunpack.c.l.b16 %v3319
        %v3341 = vunpack.c.h.b16 %v3319
        %v3342 = vunpack.c.l.b16 %v3320
        %v3343 = vunpack.c.h.b16 %v3320
        %v3344 = vunpack.c.l.b16 %v3321
        %v3345 = vunpack.c.h.b16 %v3321
        %v3346 = vunpack.c.l.b16 %v3322
        %v3347 = vunpack.c.h.b16 %v3322
        %v3348 = vunpack.c.l.b16 %v3323
        %v3349 = vunpack.c.h.b16 %v3323
        %v3350 = vunpack.c.l.b16 %v3324
        %v3351 = vunpack.c.h.b16 %v3324
        %v3352 = vunpack.c.l.b16 %v3325
        %v3353 = vunpack.c.h.b16 %v3325
        %v3354 = vunpack.c.l.b16 %v3326
        %v3355 = vunpack.c.h.b16 %v3326
        %v3356 = vunpack.c.l.b16 %v3327
        %v3357 = vunpack.c.h.b16 %v3327
        %v3358 = vpack.c.b16 %v3340, %v3338
        %v3359 = vpack.c.b16 %v3341, %v3339
        %v3360 = vpack.c.b16 %v3344, %v3342
        %v3361 = vpack.c.b16 %v3345, %v3343
        %v3362 = vpack.c.b16 %v3348, %v3346
        %v3363 = vpack.c.b16 %v3349, %v3347
        %v3364 = vpack.c.b16 %v3352, %v3350
        %v3365 = vpack.c.b16 %v3353, %v3351
        %v3366 = vpack.c.b16 %v3356, %v3354
        %v3367 = vpack.c.b16 %v3357, %v3355
        %3378 = vmatpush.bf16.msra.mxu0 0
        %3379 = vmatpush.bf16.msra.mxu0 0
        %3380 = vmatpush.bf16.msra.mxu0 0
        %3381 = vmatpush.bf16.msra.mxu0 %v3366
        %3382 = vmatpush.bf16.msra.mxu0 %v3364
        %3383 = vmatpush.bf16.msra.mxu0 %v3362
        %3384 = vmatpush.bf16.msra.mxu0 %v3360
        %3385 = vmatpush.bf16.msra.mxu0 %v3358
        %3386 = vmatmul.bf16.gmra.mxu0 %v1114
        %v3387 = vpop.f32.mrf.mxu0
        %v3388 = vadd.f32 0.0, %v3387
        %v3389 = vpop.f32.mrf.mxu0
        %v3390 = vadd.f32 0.0, %v3389
        %3391 = vmatmul.bf16.gmra.mxu0 %v1117
        %v3392 = vpop.f32.mrf.mxu0
        %v3393 = vadd.f32 0.0, %v3392
        %v3394 = vpop.f32.mrf.mxu0
        %v3395 = vadd.f32 0.0, %v3394
        %3396 = vmatmul.bf16.gmra.mxu0 %v1120
        %v3397 = vpop.f32.mrf.mxu0
        %v3398 = vadd.f32 0.0, %v3397
        %v3399 = vpop.f32.mrf.mxu0
        %v3400 = vadd.f32 0.0, %v3399
        %3401 = vmatmul.bf16.gmra.mxu0 %v1123
        %v3402 = vpop.f32.mrf.mxu0
        %v3403 = vadd.f32 0.0, %v3402
        %v3404 = vpop.f32.mrf.mxu0
        %v3405 = vadd.f32 0.0, %v3404
        %3406 = vdwg.mxu0
        %3407 = vmatpush.bf16.msra.mxu0 0
        %3408 = vmatpush.bf16.msra.mxu0 0
        %3409 = vmatpush.bf16.msra.mxu0 0
        %3410 = vmatpush.bf16.msra.mxu0 %v3367
        %3411 = vmatpush.bf16.msra.mxu0 %v3365
        %3412 = vmatpush.bf16.msra.mxu0 %v3363
        %3413 = vmatpush.bf16.msra.mxu0 %v3361
        %3414 = vmatpush.bf16.msra.mxu0 %v3359
        %3415 = vmatmul.bf16.gmra.mxu0 %v1114
        %v3416 = vpop.f32.mrf.mxu0
        %v3417 = vadd.f32 0.0, %v3416
        %v3418 = vpop.f32.mrf.mxu0
        %v3419 = vadd.f32 0.0, %v3418
        %3420 = vmatmul.bf16.gmra.mxu0 %v1117
        %v3421 = vpop.f32.mrf.mxu0
        %v3422 = vadd.f32 0.0, %v3421
        %v3423 = vpop.f32.mrf.mxu0
        %v3424 = vadd.f32 0.0, %v3423
        %3425 = vmatmul.bf16.gmra.mxu0 %v1120
        %v3426 = vpop.f32.mrf.mxu0
        %v3427 = vadd.f32 0.0, %v3426
        %v3428 = vpop.f32.mrf.mxu0
        %v3429 = vadd.f32 0.0, %v3428
        %3430 = vmatmul.bf16.gmra.mxu0 %v1123
        %v3431 = vpop.f32.mrf.mxu0
        %v3432 = vadd.f32 0.0, %v3431
        %v3433 = vpop.f32.mrf.mxu0
        %v3434 = vadd.f32 0.0, %v3433
        %3435 = vdwg.mxu0
        %v3452 = vunpack.c.l.b16 %v3297
        %v3453 = vunpack.c.h.b16 %v3297
        %v3454 = vunpack.c.l.b16 %v3298
        %v3455 = vunpack.c.h.b16 %v3298
        %v3456 = vunpack.c.l.b16 %v3299
        %v3457 = vunpack.c.h.b16 %v3299
        %v3458 = vunpack.c.l.b16 %v3300
        %v3459 = vunpack.c.h.b16 %v3300
        %v3460 = vunpack.c.l.b16 %v3301
        %v3461 = vunpack.c.h.b16 %v3301
        %v3462 = vunpack.c.l.b16 %v3302
        %v3463 = vunpack.c.h.b16 %v3302
        %v3464 = vunpack.c.l.b16 %v3303
        %v3465 = vunpack.c.h.b16 %v3303
        %v3466 = vunpack.c.l.b16 %v3304
        %v3467 = vunpack.c.h.b16 %v3304
        %v3468 = vunpack.c.l.b16 %v3305
        %v3469 = vunpack.c.h.b16 %v3305
        %v3470 = vunpack.c.l.b16 %v3306
        %v3471 = vunpack.c.h.b16 %v3306
        %v3472 = vunpack.c.l.b16 %v3307
        %v3473 = vunpack.c.h.b16 %v3307
        %v3474 = vunpack.c.l.b16 %v3308
        %v3475 = vunpack.c.h.b16 %v3308
        %v3476 = vunpack.c.l.b16 %v3309
        %v3477 = vunpack.c.h.b16 %v3309
        %v3478 = vunpack.c.l.b16 %v3310
        %v3479 = vunpack.c.h.b16 %v3310
        %v3480 = vunpack.c.l.b16 %v3311
        %v3481 = vunpack.c.h.b16 %v3311
        %v3482 = vunpack.c.l.b16 %v3312
        %v3483 = vunpack.c.h.b16 %v3312
        %v3484 = vpack.c.b16 %v3454, %v3452
        %v3485 = vpack.c.b16 %v3455, %v3453
        %v3486 = vpack.c.b16 %v3458, %v3456
        %v3487 = vpack.c.b16 %v3459, %v3457
        %v3488 = vpack.c.b16 %v3462, %v3460
        %v3489 = vpack.c.b16 %v3463, %v3461
        %v3490 = vpack.c.b16 %v3466, %v3464
        %v3491 = vpack.c.b16 %v3467, %v3465
        %v3492 = vpack.c.b16 %v3470, %v3468
        %v3493 = vpack.c.b16 %v3471, %v3469
        %v3494 = vpack.c.b16 %v3474, %v3472
        %v3495 = vpack.c.b16 %v3475, %v3473
        %v3496 = vpack.c.b16 %v3478, %v3476
        %v3497 = vpack.c.b16 %v3479, %v3477
        %v3498 = vpack.c.b16 %v3482, %v3480
        %v3499 = vpack.c.b16 %v3483, %v3481
        %3516 = vmatpush.bf16.msra.mxu0 %v3498
        %3517 = vmatpush.bf16.msra.mxu0 %v3496
        %3518 = vmatpush.bf16.msra.mxu0 %v3494
        %3519 = vmatpush.bf16.msra.mxu0 %v3492
        %3520 = vmatpush.bf16.msra.mxu0 %v3490
        %3521 = vmatpush.bf16.msra.mxu0 %v3488
        %3522 = vmatpush.bf16.msra.mxu0 %v3486
        %3523 = vmatpush.bf16.msra.mxu0 %v3484
        %3524 = vmatmul.bf16.gmra.mxu0 %v3313
        %v3525 = vpop.f32.mrf.mxu0
        %v3526 = vadd.f32 %v3388, %v3525
        %v3527 = vpop.f32.mrf.mxu0
        %v3528 = vadd.f32 %v3390, %v3527
        %3529 = vmatmul.bf16.gmra.mxu0 %v3314
        %v3530 = vpop.f32.mrf.mxu0
        %v3531 = vadd.f32 %v3393, %v3530
        %v3532 = vpop.f32.mrf.mxu0
        %v3533 = vadd.f32 %v3395, %v3532
        %3534 = vmatmul.bf16.gmra.mxu0 %v3315
        %v3535 = vpop.f32.mrf.mxu0
        %v3536 = vadd.f32 %v3398, %v3535
        %v3537 = vpop.f32.mrf.mxu0
        %v3538 = vadd.f32 %v3400, %v3537
        %3539 = vmatmul.bf16.gmra.mxu0 %v3316
        %v3540 = vpop.f32.mrf.mxu0
        %v3541 = vadd.f32 %v3403, %v3540
        %v3542 = vpop.f32.mrf.mxu0
        %v3543 = vadd.f32 %v3405, %v3542
        %3544 = vdwg.mxu0
        %3545 = vmatpush.bf16.msra.mxu0 %v3499
        %3546 = vmatpush.bf16.msra.mxu0 %v3497
        %3547 = vmatpush.bf16.msra.mxu0 %v3495
        %3548 = vmatpush.bf16.msra.mxu0 %v3493
        %3549 = vmatpush.bf16.msra.mxu0 %v3491
        %3550 = vmatpush.bf16.msra.mxu0 %v3489
        %3551 = vmatpush.bf16.msra.mxu0 %v3487
        %3552 = vmatpush.bf16.msra.mxu0 %v3485
        %3553 = vmatmul.bf16.gmra.mxu0 %v3313
        %v3554 = vpop.f32.mrf.mxu0
        %v3555 = vadd.f32 %v3417, %v3554
        %v3556 = vpop.f32.mrf.mxu0
        %v3557 = vadd.f32 %v3419, %v3556
        %3558 = vmatmul.bf16.gmra.mxu0 %v3314
        %v3559 = vpop.f32.mrf.mxu0
        %v3560 = vadd.f32 %v3422, %v3559
        %v3561 = vpop.f32.mrf.mxu0
        %v3562 = vadd.f32 %v3424, %v3561
        %3563 = vmatmul.bf16.gmra.mxu0 %v3315
        %v3564 = vpop.f32.mrf.mxu0
        %v3565 = vadd.f32 %v3427, %v3564
        %v3566 = vpop.f32.mrf.mxu0
        %v3567 = vadd.f32 %v3429, %v3566
        %3568 = vmatmul.bf16.gmra.mxu0 %v3316
        %v3569 = vpop.f32.mrf.mxu0
        %v3570 = vadd.f32 %v3432, %v3569
        %v3571 = vpop.f32.mrf.mxu0
        %v3572 = vadd.f32 %v3434, %v3571
        %3573 = vdwg.mxu0
        %s3574 = scalar_lea.vmem [#allocation11], 6
        %v3575 = vld [vmem:[%s3574] sm:$0x3]
        %v3577 = vperm.slane %v3575, 0
        %v3578 = vperm.slane %v3575, 1
        %v3581 = vadd.f32 %v3526, %v3577
        %v3582 = vadd.f32 %v3555, %v3578
        %v3583 = vadd.f32 %v3528, %v3577
        %v3584 = vadd.f32 %v3557, %v3578
        %v3585 = vadd.f32 %v3531, %v3577
        %v3586 = vadd.f32 %v3560, %v3578
        %v3587 = vadd.f32 %v3533, %v3577
        %v3588 = vadd.f32 %v3562, %v3578
        %v3589 = vadd.f32 %v3536, %v3577
        %v3590 = vadd.f32 %v3565, %v3578
        %v3591 = vadd.f32 %v3538, %v3577
        %v3592 = vadd.f32 %v3567, %v3578
        %v3593 = vadd.f32 %v3541, %v3577
        %v3594 = vadd.f32 %v3570, %v3578
        %v3595 = vadd.f32 %v3543, %v3577
        %v3596 = vadd.f32 %v3572, %v3578
        %v3597 = vrot.slane %v3280, 7
        %v3598 = vrot.slane %v3281, 7
        %v3599 = vrot.slane %v3282, 7
        %v3600 = vrot.slane %v3283, 7
        %v3601 = vrot.slane %v3284, 7
        %v3602 = vrot.slane %v3285, 7
        %v3603 = vrot.slane %v3286, 7
        %v3604 = vrot.slane %v3287, 7
        %v3605 = vsel %vm1351, %v3603, %v3604
        %v3606 = vsel %vm1351, %v3602, %v3603
        %v3607 = vsel %vm1351, %v3601, %v3602
        %v3608 = vsel %vm1351, %v3600, %v3601
        %v3609 = vsel %vm1351, %v3599, %v3600
        %v3610 = vsel %vm1351, %v3598, %v3599
        %v3611 = vsel %vm1351, %v3597, %v3598
        %v3612 = vsel %vm1351, %v3604, %v3597
        %v3613 = vsel %vm1368, %v3612, 0.0
        %v3614 = vsel %vm1369, %v3611, 0.0
        %v3615 = vsel %vm1370, %v3610, 0.0
        %v3616 = vsel %vm1371, %v3609, 0.0
        %v3617 = vsel %vm1372, %v3608, 0.0
        %v3618 = vsel %vm1373, %v3607, 0.0
        %v3619 = vsel %vm1374, %v3606, 0.0
        %v3620 = vsel %vm1375, %v3605, 0.0
        %s3621 = scalar_lea.vmem [#allocation8], 768
        %v3622 = vld [vmem:[%s3621] sm:$0xff]
        %v3623 = vld [vmem:[%s3621 + $0x8] sm:$0xff]
        %v3624 = vld [vmem:[%s3621 + $0x10] sm:$0xff]
        %v3625 = vld [vmem:[%s3621 + $0x18] sm:$0xff]
        %v3626 = vld [vmem:[%s3621 + $0x20] sm:$0xff]
        %v3627 = vld [vmem:[%s3621 + $0x28] sm:$0xff]
        %v3628 = vld [vmem:[%s3621 + $0x30] sm:$0xff]
        %v3629 = vld [vmem:[%s3621 + $0x38] sm:$0xff]
        %v3630 = vld [vmem:[%s3621 + $0x40] sm:$0xff]
        %v3631 = vld [vmem:[%s3621 + $0x48] sm:$0xff]
        %v3632 = vld [vmem:[%s3621 + $0x50] sm:$0xff]
        %v3633 = vld [vmem:[%s3621 + $0x58] sm:$0xff]
        %v3634 = vld [vmem:[%s3621 + $0x60] sm:$0xff]
        %v3635 = vld [vmem:[%s3621 + $0x68] sm:$0xff]
        %v3636 = vld [vmem:[%s3621 + $0x70] sm:$0xff]
        %v3637 = vld [vmem:[%s3621 + $0x78] sm:$0xff]
        %v3638 = vpack.c.bf16 %v3614, %v3613
        %v3639 = vpack.c.bf16 %v3616, %v3615
        %v3640 = vpack.c.bf16 %v3618, %v3617
        %v3641 = vpack.c.bf16 %v3620, %v3619
        %v3658 = vunpack.c.l.b16 %v3622
        %v3659 = vunpack.c.h.b16 %v3622
        %v3660 = vunpack.c.l.b16 %v3623
        %v3661 = vunpack.c.h.b16 %v3623
        %v3662 = vunpack.c.l.b16 %v3624
        %v3663 = vunpack.c.h.b16 %v3624
        %v3664 = vunpack.c.l.b16 %v3625
        %v3665 = vunpack.c.h.b16 %v3625
        %v3666 = vunpack.c.l.b16 %v3626
        %v3667 = vunpack.c.h.b16 %v3626
        %v3668 = vunpack.c.l.b16 %v3627
        %v3669 = vunpack.c.h.b16 %v3627
        %v3670 = vunpack.c.l.b16 %v3628
        %v3671 = vunpack.c.h.b16 %v3628
        %v3672 = vunpack.c.l.b16 %v3629
        %v3673 = vunpack.c.h.b16 %v3629
        %v3674 = vunpack.c.l.b16 %v3630
        %v3675 = vunpack.c.h.b16 %v3630
        %v3676 = vunpack.c.l.b16 %v3631
        %v3677 = vunpack.c.h.b16 %v3631
        %v3678 = vunpack.c.l.b16 %v3632
        %v3679 = vunpack.c.h.b16 %v3632
        %v3680 = vunpack.c.l.b16 %v3633
        %v3681 = vunpack.c.h.b16 %v3633
        %v3682 = vunpack.c.l.b16 %v3634
        %v3683 = vunpack.c.h.b16 %v3634
        %v3684 = vunpack.c.l.b16 %v3635
        %v3685 = vunpack.c.h.b16 %v3635
        %v3686 = vunpack.c.l.b16 %v3636
        %v3687 = vunpack.c.h.b16 %v3636
        %v3688 = vunpack.c.l.b16 %v3637
        %v3689 = vunpack.c.h.b16 %v3637
        %v3690 = vpack.c.b16 %v3660, %v3658
        %v3691 = vpack.c.b16 %v3661, %v3659
        %v3692 = vpack.c.b16 %v3664, %v3662
        %v3693 = vpack.c.b16 %v3665, %v3663
        %v3694 = vpack.c.b16 %v3668, %v3666
        %v3695 = vpack.c.b16 %v3669, %v3667
        %v3696 = vpack.c.b16 %v3672, %v3670
        %v3697 = vpack.c.b16 %v3673, %v3671
        %v3698 = vpack.c.b16 %v3676, %v3674
        %v3699 = vpack.c.b16 %v3677, %v3675
        %v3700 = vpack.c.b16 %v3680, %v3678
        %v3701 = vpack.c.b16 %v3681, %v3679
        %v3702 = vpack.c.b16 %v3684, %v3682
        %v3703 = vpack.c.b16 %v3685, %v3683
        %v3704 = vpack.c.b16 %v3688, %v3686
        %v3705 = vpack.c.b16 %v3689, %v3687
        %3722 = vmatpush.bf16.msra.mxu0 %v3704
        %3723 = vmatpush.bf16.msra.mxu0 %v3702
        %3724 = vmatpush.bf16.msra.mxu0 %v3700
        %3725 = vmatpush.bf16.msra.mxu0 %v3698
        %3726 = vmatpush.bf16.msra.mxu0 %v3696
        %3727 = vmatpush.bf16.msra.mxu0 %v3694
        %3728 = vmatpush.bf16.msra.mxu0 %v3692
        %3729 = vmatpush.bf16.msra.mxu0 %v3690
        %3730 = vmatmul.bf16.gmra.mxu0 %v3638
        %v3731 = vpop.f32.mrf.mxu0
        %v3732 = vadd.f32 0.0, %v3731
        %v3733 = vpop.f32.mrf.mxu0
        %v3734 = vadd.f32 0.0, %v3733
        %3735 = vmatmul.bf16.gmra.mxu0 %v3639
        %v3736 = vpop.f32.mrf.mxu0
        %v3737 = vadd.f32 0.0, %v3736
        %v3738 = vpop.f32.mrf.mxu0
        %v3739 = vadd.f32 0.0, %v3738
        %3740 = vmatmul.bf16.gmra.mxu0 %v3640
        %v3741 = vpop.f32.mrf.mxu0
        %v3742 = vadd.f32 0.0, %v3741
        %v3743 = vpop.f32.mrf.mxu0
        %v3744 = vadd.f32 0.0, %v3743
        %3745 = vmatmul.bf16.gmra.mxu0 %v3641
        %v3746 = vpop.f32.mrf.mxu0
        %v3747 = vadd.f32 0.0, %v3746
        %v3748 = vpop.f32.mrf.mxu0
        %v3749 = vadd.f32 0.0, %v3748
        %3750 = vdwg.mxu0
        %3751 = vmatpush.bf16.msra.mxu0 %v3705
        %3752 = vmatpush.bf16.msra.mxu0 %v3703
        %3753 = vmatpush.bf16.msra.mxu0 %v3701
        %3754 = vmatpush.bf16.msra.mxu0 %v3699
        %3755 = vmatpush.bf16.msra.mxu0 %v3697
        %3756 = vmatpush.bf16.msra.mxu0 %v3695
        %3757 = vmatpush.bf16.msra.mxu0 %v3693
        %3758 = vmatpush.bf16.msra.mxu0 %v3691
        %3759 = vmatmul.bf16.gmra.mxu0 %v3638
        %v3760 = vpop.f32.mrf.mxu0
        %v3761 = vadd.f32 0.0, %v3760
        %v3762 = vpop.f32.mrf.mxu0
        %v3763 = vadd.f32 0.0, %v3762
        %3764 = vmatmul.bf16.gmra.mxu0 %v3639
        %v3765 = vpop.f32.mrf.mxu0
        %v3766 = vadd.f32 0.0, %v3765
        %v3767 = vpop.f32.mrf.mxu0
        %v3768 = vadd.f32 0.0, %v3767
        %3769 = vmatmul.bf16.gmra.mxu0 %v3640
        %v3770 = vpop.f32.mrf.mxu0
        %v3771 = vadd.f32 0.0, %v3770
        %v3772 = vpop.f32.mrf.mxu0
        %v3773 = vadd.f32 0.0, %v3772
        %3774 = vmatmul.bf16.gmra.mxu0 %v3641
        %v3775 = vpop.f32.mrf.mxu0
        %v3776 = vadd.f32 0.0, %v3775
        %v3777 = vpop.f32.mrf.mxu0
        %v3778 = vadd.f32 0.0, %v3777
        %3779 = vdwg.mxu0
        %v3780 = vadd.f32 %v3581, %v3732
        %v3781 = vadd.f32 %v3582, %v3761
        %v3782 = vadd.f32 %v3583, %v3734
        %v3783 = vadd.f32 %v3584, %v3763
        %v3784 = vadd.f32 %v3585, %v3737
        %v3785 = vadd.f32 %v3586, %v3766
        %v3786 = vadd.f32 %v3587, %v3739
        %v3787 = vadd.f32 %v3588, %v3768
        %v3788 = vadd.f32 %v3589, %v3742
        %v3789 = vadd.f32 %v3590, %v3771
        %v3790 = vadd.f32 %v3591, %v3744
        %v3791 = vadd.f32 %v3592, %v3773
        %v3792 = vadd.f32 %v3593, %v3747
        %v3793 = vadd.f32 %v3594, %v3776
        %v3794 = vadd.f32 %v3595, %v3749
        %v3795 = vadd.f32 %v3596, %v3778
        %v3796 = vmul.f32 %v3781, 0.5
        %v3797 = vmul.f32 %v3783, 0.5
        %v3798 = vmul.f32 %v3785, 0.5
        %v3799 = vmul.f32 %v3787, 0.5
        %v3800 = vmul.f32 %v3789, 0.5
        %v3801 = vmul.f32 %v3791, 0.5
        %v3802 = vmul.f32 %v3793, 0.5
        %v3803 = vmul.f32 %v3795, 0.5
        %v3804 = vtanh.pop %v3796
        %v3805 = vtanh.pop %v3797
        %v3806 = vtanh.pop %v3798
        %v3807 = vtanh.pop %v3799
        %v3808 = vtanh.pop %v3800
        %v3809 = vtanh.pop %v3801
        %v3810 = vtanh.pop %v3802
        %v3811 = vtanh.pop %v3803
        %v3812 = vadd.f32 %v3804, 1.0
        %v3813 = vadd.f32 %v3805, 1.0
        %v3814 = vadd.f32 %v3806, 1.0
        %v3815 = vadd.f32 %v3807, 1.0
        %v3816 = vadd.f32 %v3808, 1.0
        %v3817 = vadd.f32 %v3809, 1.0
        %v3818 = vadd.f32 %v3810, 1.0
        %v3819 = vadd.f32 %v3811, 1.0
        %v3820 = vmul.f32 %v3812, 0.5
        %v3821 = vmul.f32 %v3813, 0.5
        %v3822 = vmul.f32 %v3814, 0.5
        %v3823 = vmul.f32 %v3815, 0.5
        %v3824 = vmul.f32 %v3816, 0.5
        %v3825 = vmul.f32 %v3817, 0.5
        %v3826 = vmul.f32 %v3818, 0.5
        %v3827 = vmul.f32 %v3819, 0.5
        %v3828 = vtanh.pop %v3780
        %v3829 = vtanh.pop %v3782
        %v3830 = vtanh.pop %v3784
        %v3831 = vtanh.pop %v3786
        %v3832 = vtanh.pop %v3788
        %v3833 = vtanh.pop %v3790
        %v3834 = vtanh.pop %v3792
        %v3835 = vtanh.pop %v3794
        %v3836 = vmul.f32 %v3828, %v3820
        %v3837 = vmul.f32 %v3829, %v3821
        %v3838 = vmul.f32 %v3830, %v3822
        %v3839 = vmul.f32 %v3831, %v3823
        %v3840 = vmul.f32 %v3832, %v3824
        %v3841 = vmul.f32 %v3833, %v3825
        %v3842 = vmul.f32 %v3834, %v3826
        %v3843 = vmul.f32 %v3835, %v3827
        %s3844 = scalar_lea.vmem [#allocation13], 384
        %v3845 = vld [vmem:[%s3844] sm:$0xff]
        %v3846 = vld [vmem:[%s3844 + $0x8] sm:$0xff]
        %v3847 = vld [vmem:[%s3844 + $0x10] sm:$0xff]
        %v3848 = vld [vmem:[%s3844 + $0x18] sm:$0xff]
        %v3849 = vld [vmem:[%s3844 + $0x20] sm:$0xff]
        %v3850 = vld [vmem:[%s3844 + $0x28] sm:$0xff]
        %v3851 = vld [vmem:[%s3844 + $0x30] sm:$0xff]
        %v3852 = vld [vmem:[%s3844 + $0x38] sm:$0xff]
        %v3853 = vld [vmem:[%s3844 + $0x40] sm:$0xff]
        %v3854 = vld [vmem:[%s3844 + $0x48] sm:$0xff]
        %v3855 = vld [vmem:[%s3844 + $0x50] sm:$0xff]
        %v3856 = vld [vmem:[%s3844 + $0x58] sm:$0xff]
        %v3857 = vld [vmem:[%s3844 + $0x60] sm:$0xff]
        %v3858 = vld [vmem:[%s3844 + $0x68] sm:$0xff]
        %v3859 = vld [vmem:[%s3844 + $0x70] sm:$0xff]
        %v3860 = vld [vmem:[%s3844 + $0x78] sm:$0xff]
        %v3861 = vpack.c.bf16 %v3837, %v3836
        %v3862 = vpack.c.bf16 %v3839, %v3838
        %v3863 = vpack.c.bf16 %v3841, %v3840
        %v3864 = vpack.c.bf16 %v3843, %v3842
        %s3865 = scalar_lea.vmem [#allocation14], 6
        %v3866 = vld [vmem:[%s3865] sm:$0x3]
        %v3868 = vperm.slane %v3866, 0
        %v3869 = vperm.slane %v3866, 1
        %v3888 = vunpack.c.l.b16 %v3845
        %v3889 = vunpack.c.h.b16 %v3845
        %v3890 = vunpack.c.l.b16 %v3846
        %v3891 = vunpack.c.h.b16 %v3846
        %v3892 = vunpack.c.l.b16 %v3847
        %v3893 = vunpack.c.h.b16 %v3847
        %v3894 = vunpack.c.l.b16 %v3848
        %v3895 = vunpack.c.h.b16 %v3848
        %v3896 = vunpack.c.l.b16 %v3849
        %v3897 = vunpack.c.h.b16 %v3849
        %v3898 = vunpack.c.l.b16 %v3850
        %v3899 = vunpack.c.h.b16 %v3850
        %v3900 = vunpack.c.l.b16 %v3851
        %v3901 = vunpack.c.h.b16 %v3851
        %v3902 = vunpack.c.l.b16 %v3852
        %v3903 = vunpack.c.h.b16 %v3852
        %v3904 = vunpack.c.l.b16 %v3853
        %v3905 = vunpack.c.h.b16 %v3853
        %v3906 = vunpack.c.l.b16 %v3854
        %v3907 = vunpack.c.h.b16 %v3854
        %v3908 = vunpack.c.l.b16 %v3855
        %v3909 = vunpack.c.h.b16 %v3855
        %v3910 = vunpack.c.l.b16 %v3856
        %v3911 = vunpack.c.h.b16 %v3856
        %v3912 = vunpack.c.l.b16 %v3857
        %v3913 = vunpack.c.h.b16 %v3857
        %v3914 = vunpack.c.l.b16 %v3858
        %v3915 = vunpack.c.h.b16 %v3858
        %v3916 = vunpack.c.l.b16 %v3859
        %v3917 = vunpack.c.h.b16 %v3859
        %v3918 = vunpack.c.l.b16 %v3860
        %v3919 = vunpack.c.h.b16 %v3860
        %v3920 = vpack.c.b16 %v3890, %v3888
        %v3921 = vpack.c.b16 %v3891, %v3889
        %v3922 = vpack.c.b16 %v3894, %v3892
        %v3923 = vpack.c.b16 %v3895, %v3893
        %v3924 = vpack.c.b16 %v3898, %v3896
        %v3925 = vpack.c.b16 %v3899, %v3897
        %v3926 = vpack.c.b16 %v3902, %v3900
        %v3927 = vpack.c.b16 %v3903, %v3901
        %v3928 = vpack.c.b16 %v3906, %v3904
        %v3929 = vpack.c.b16 %v3907, %v3905
        %v3930 = vpack.c.b16 %v3910, %v3908
        %v3931 = vpack.c.b16 %v3911, %v3909
        %v3932 = vpack.c.b16 %v3914, %v3912
        %v3933 = vpack.c.b16 %v3915, %v3913
        %v3934 = vpack.c.b16 %v3918, %v3916
        %v3935 = vpack.c.b16 %v3919, %v3917
        %3952 = vmatpush.bf16.msra.mxu0 %v3934
        %3953 = vmatpush.bf16.msra.mxu0 %v3932
        %3954 = vmatpush.bf16.msra.mxu0 %v3930
        %3955 = vmatpush.bf16.msra.mxu0 %v3928
        %3956 = vmatpush.bf16.msra.mxu0 %v3926
        %3957 = vmatpush.bf16.msra.mxu0 %v3924
        %3958 = vmatpush.bf16.msra.mxu0 %v3922
        %3959 = vmatpush.bf16.msra.mxu0 %v3920
        %3960 = vmatmul.bf16.gmra.mxu0 %v3861
        %v3961 = vpop.f32.mrf.mxu0
        %v3962 = vadd.f32 %v3868, %v3961
        %v3963 = vpop.f32.mrf.mxu0
        %v3964 = vadd.f32 %v3868, %v3963
        %3965 = vmatmul.bf16.gmra.mxu0 %v3862
        %v3966 = vpop.f32.mrf.mxu0
        %v3967 = vadd.f32 %v3868, %v3966
        %v3968 = vpop.f32.mrf.mxu0
        %v3969 = vadd.f32 %v3868, %v3968
        %3970 = vmatmul.bf16.gmra.mxu0 %v3863
        %v3971 = vpop.f32.mrf.mxu0
        %v3972 = vadd.f32 %v3868, %v3971
        %v3973 = vpop.f32.mrf.mxu0
        %v3974 = vadd.f32 %v3868, %v3973
        %3975 = vmatmul.bf16.gmra.mxu0 %v3864
        %v3976 = vpop.f32.mrf.mxu0
        %v3977 = vadd.f32 %v3868, %v3976
        %v3978 = vpop.f32.mrf.mxu0
        %v3979 = vadd.f32 %v3868, %v3978
        %3980 = vdwg.mxu0
        %3981 = vmatpush.bf16.msra.mxu0 %v3935
        %3982 = vmatpush.bf16.msra.mxu0 %v3933
        %3983 = vmatpush.bf16.msra.mxu0 %v3931
        %3984 = vmatpush.bf16.msra.mxu0 %v3929
        %3985 = vmatpush.bf16.msra.mxu0 %v3927
        %3986 = vmatpush.bf16.msra.mxu0 %v3925
        %3987 = vmatpush.bf16.msra.mxu0 %v3923
        %3988 = vmatpush.bf16.msra.mxu0 %v3921
        %3989 = vmatmul.bf16.gmra.mxu0 %v3861
        %v3990 = vpop.f32.mrf.mxu0
        %v3991 = vadd.f32 %v3869, %v3990
        %v3992 = vpop.f32.mrf.mxu0
        %v3993 = vadd.f32 %v3869, %v3992
        %3994 = vmatmul.bf16.gmra.mxu0 %v3862
        %v3995 = vpop.f32.mrf.mxu0
        %v3996 = vadd.f32 %v3869, %v3995
        %v3997 = vpop.f32.mrf.mxu0
        %v3998 = vadd.f32 %v3869, %v3997
        %3999 = vmatmul.bf16.gmra.mxu0 %v3863
        %v4000 = vpop.f32.mrf.mxu0
        %v4001 = vadd.f32 %v3869, %v4000
        %v4002 = vpop.f32.mrf.mxu0
        %v4003 = vadd.f32 %v3869, %v4002
        %4004 = vmatmul.bf16.gmra.mxu0 %v3864
        %v4005 = vpop.f32.mrf.mxu0
        %v4006 = vadd.f32 %v3869, %v4005
        %v4007 = vpop.f32.mrf.mxu0
        %v4008 = vadd.f32 %v3869, %v4007
        %4009 = vdwg.mxu0
        %v4010 = vadd.f32 %v3280, %v3962
        %v4011 = vadd.f32 %v3281, %v3964
        %v4012 = vadd.f32 %v3282, %v3967
        %v4013 = vadd.f32 %v3283, %v3969
        %v4014 = vadd.f32 %v3284, %v3972
        %v4015 = vadd.f32 %v3285, %v3974
        %v4016 = vadd.f32 %v3286, %v3977
        %v4017 = vadd.f32 %v3287, %v3979
        %v4018 = vmul.f32 %v4010, 0.70710677
        %v4019 = vmul.f32 %v4011, 0.70710677
        %v4020 = vmul.f32 %v4012, 0.70710677
        %v4021 = vmul.f32 %v4013, 0.70710677
        %v4022 = vmul.f32 %v4014, 0.70710677
        %v4023 = vmul.f32 %v4015, 0.70710677
        %v4024 = vmul.f32 %v4016, 0.70710677
        %v4025 = vmul.f32 %v4017, 0.70710677
        %v4026 = vadd.f32 %v3288, %v3991
        %v4027 = vadd.f32 %v3289, %v3993
        %v4028 = vadd.f32 %v3290, %v3996
        %v4029 = vadd.f32 %v3291, %v3998
        %v4030 = vadd.f32 %v3292, %v4001
        %v4031 = vadd.f32 %v3293, %v4003
        %v4032 = vadd.f32 %v3294, %v4006
        %v4033 = vadd.f32 %v3295, %v4008
        %s4034 = scalar_lea.vmem [#allocation8], 1152
        %v4035 = vld [vmem:[%s4034] sm:$0xff]
        %v4036 = vld [vmem:[%s4034 + $0x8] sm:$0xff]
        %v4037 = vld [vmem:[%s4034 + $0x10] sm:$0xff]
        %v4038 = vld [vmem:[%s4034 + $0x18] sm:$0xff]
        %v4039 = vld [vmem:[%s4034 + $0x20] sm:$0xff]
        %v4040 = vld [vmem:[%s4034 + $0x28] sm:$0xff]
        %v4041 = vld [vmem:[%s4034 + $0x30] sm:$0xff]
        %v4042 = vld [vmem:[%s4034 + $0x38] sm:$0xff]
        %v4043 = vld [vmem:[%s4034 + $0x40] sm:$0xff]
        %v4044 = vld [vmem:[%s4034 + $0x48] sm:$0xff]
        %v4045 = vld [vmem:[%s4034 + $0x50] sm:$0xff]
        %v4046 = vld [vmem:[%s4034 + $0x58] sm:$0xff]
        %v4047 = vld [vmem:[%s4034 + $0x60] sm:$0xff]
        %v4048 = vld [vmem:[%s4034 + $0x68] sm:$0xff]
        %v4049 = vld [vmem:[%s4034 + $0x70] sm:$0xff]
        %v4050 = vld [vmem:[%s4034 + $0x78] sm:$0xff]
        %v4051 = vpack.c.bf16 %v4019, %v4018
        %v4052 = vpack.c.bf16 %v4021, %v4020
        %v4053 = vpack.c.bf16 %v4023, %v4022
        %v4054 = vpack.c.bf16 %v4025, %v4024
        %s4055 = scalar_lea.vmem [#allocation10], 320
        %v4056 = vld [vmem:[%s4055] sm:$0xff]
        %v4057 = vld [vmem:[%s4055 + $0x8] sm:$0xff]
        %v4058 = vld [vmem:[%s4055 + $0x10] sm:$0xff]
        %v4059 = vld [vmem:[%s4055 + $0x18] sm:$0xff]
        %v4060 = vld [vmem:[%s4055 + $0x20] sm:$0xff]
        %v4061 = vld [vmem:[%s4055 + $0x28] sm:$0xff]
        %v4062 = vld [vmem:[%s4055 + $0x30] sm:$0xff]
        %v4063 = vld [vmem:[%s4055 + $0x38] sm:$0xff]
        %v4064 = vld [vmem:[%s4055 + $0x40] sm:$0xff]
        %v4065 = vld [vmem:[%s4055 + $0x48] sm:$0xff]
        %v4076 = vunpack.c.l.b16 %v4056
        %v4077 = vunpack.c.h.b16 %v4056
        %v4078 = vunpack.c.l.b16 %v4057
        %v4079 = vunpack.c.h.b16 %v4057
        %v4080 = vunpack.c.l.b16 %v4058
        %v4081 = vunpack.c.h.b16 %v4058
        %v4082 = vunpack.c.l.b16 %v4059
        %v4083 = vunpack.c.h.b16 %v4059
        %v4084 = vunpack.c.l.b16 %v4060
        %v4085 = vunpack.c.h.b16 %v4060
        %v4086 = vunpack.c.l.b16 %v4061
        %v4087 = vunpack.c.h.b16 %v4061
        %v4088 = vunpack.c.l.b16 %v4062
        %v4089 = vunpack.c.h.b16 %v4062
        %v4090 = vunpack.c.l.b16 %v4063
        %v4091 = vunpack.c.h.b16 %v4063
        %v4092 = vunpack.c.l.b16 %v4064
        %v4093 = vunpack.c.h.b16 %v4064
        %v4094 = vunpack.c.l.b16 %v4065
        %v4095 = vunpack.c.h.b16 %v4065
        %v4096 = vpack.c.b16 %v4078, %v4076
        %v4097 = vpack.c.b16 %v4079, %v4077
        %v4098 = vpack.c.b16 %v4082, %v4080
        %v4099 = vpack.c.b16 %v4083, %v4081
        %v4100 = vpack.c.b16 %v4086, %v4084
        %v4101 = vpack.c.b16 %v4087, %v4085
        %v4102 = vpack.c.b16 %v4090, %v4088
        %v4103 = vpack.c.b16 %v4091, %v4089
        %v4104 = vpack.c.b16 %v4094, %v4092
        %v4105 = vpack.c.b16 %v4095, %v4093
        %4116 = vmatpush.bf16.msra.mxu0 0
        %4117 = vmatpush.bf16.msra.mxu0 0
        %4118 = vmatpush.bf16.msra.mxu0 0
        %4119 = vmatpush.bf16.msra.mxu0 %v4104
        %4120 = vmatpush.bf16.msra.mxu0 %v4102
        %4121 = vmatpush.bf16.msra.mxu0 %v4100
        %4122 = vmatpush.bf16.msra.mxu0 %v4098
        %4123 = vmatpush.bf16.msra.mxu0 %v4096
        %4124 = vmatmul.bf16.gmra.mxu0 %v1114
        %v4125 = vpop.f32.mrf.mxu0
        %v4126 = vadd.f32 0.0, %v4125
        %v4127 = vpop.f32.mrf.mxu0
        %v4128 = vadd.f32 0.0, %v4127
        %4129 = vmatmul.bf16.gmra.mxu0 %v1117
        %v4130 = vpop.f32.mrf.mxu0
        %v4131 = vadd.f32 0.0, %v4130
        %v4132 = vpop.f32.mrf.mxu0
        %v4133 = vadd.f32 0.0, %v4132
        %4134 = vmatmul.bf16.gmra.mxu0 %v1120
        %v4135 = vpop.f32.mrf.mxu0
        %v4136 = vadd.f32 0.0, %v4135
        %v4137 = vpop.f32.mrf.mxu0
        %v4138 = vadd.f32 0.0, %v4137
        %4139 = vmatmul.bf16.gmra.mxu0 %v1123
        %v4140 = vpop.f32.mrf.mxu0
        %v4141 = vadd.f32 0.0, %v4140
        %v4142 = vpop.f32.mrf.mxu0
        %v4143 = vadd.f32 0.0, %v4142
        %4144 = vdwg.mxu0
        %4145 = vmatpush.bf16.msra.mxu0 0
        %4146 = vmatpush.bf16.msra.mxu0 0
        %4147 = vmatpush.bf16.msra.mxu0 0
        %4148 = vmatpush.bf16.msra.mxu0 %v4105
        %4149 = vmatpush.bf16.msra.mxu0 %v4103
        %4150 = vmatpush.bf16.msra.mxu0 %v4101
        %4151 = vmatpush.bf16.msra.mxu0 %v4099
        %4152 = vmatpush.bf16.msra.mxu0 %v4097
        %4153 = vmatmul.bf16.gmra.mxu0 %v1114
        %v4154 = vpop.f32.mrf.mxu0
        %v4155 = vadd.f32 0.0, %v4154
        %v4156 = vpop.f32.mrf.mxu0
        %v4157 = vadd.f32 0.0, %v4156
        %4158 = vmatmul.bf16.gmra.mxu0 %v1117
        %v4159 = vpop.f32.mrf.mxu0
        %v4160 = vadd.f32 0.0, %v4159
        %v4161 = vpop.f32.mrf.mxu0
        %v4162 = vadd.f32 0.0, %v4161
        %4163 = vmatmul.bf16.gmra.mxu0 %v1120
        %v4164 = vpop.f32.mrf.mxu0
        %v4165 = vadd.f32 0.0, %v4164
        %v4166 = vpop.f32.mrf.mxu0
        %v4167 = vadd.f32 0.0, %v4166
        %4168 = vmatmul.bf16.gmra.mxu0 %v1123
        %v4169 = vpop.f32.mrf.mxu0
        %v4170 = vadd.f32 0.0, %v4169
        %v4171 = vpop.f32.mrf.mxu0
        %v4172 = vadd.f32 0.0, %v4171
        %4173 = vdwg.mxu0
        %v4190 = vunpack.c.l.b16 %v4035
        %v4191 = vunpack.c.h.b16 %v4035
        %v4192 = vunpack.c.l.b16 %v4036
        %v4193 = vunpack.c.h.b16 %v4036
        %v4194 = vunpack.c.l.b16 %v4037
        %v4195 = vunpack.c.h.b16 %v4037
        %v4196 = vunpack.c.l.b16 %v4038
        %v4197 = vunpack.c.h.b16 %v4038
        %v4198 = vunpack.c.l.b16 %v4039
        %v4199 = vunpack.c.h.b16 %v4039
        %v4200 = vunpack.c.l.b16 %v4040
        %v4201 = vunpack.c.h.b16 %v4040
        %v4202 = vunpack.c.l.b16 %v4041
        %v4203 = vunpack.c.h.b16 %v4041
        %v4204 = vunpack.c.l.b16 %v4042
        %v4205 = vunpack.c.h.b16 %v4042
        %v4206 = vunpack.c.l.b16 %v4043
        %v4207 = vunpack.c.h.b16 %v4043
        %v4208 = vunpack.c.l.b16 %v4044
        %v4209 = vunpack.c.h.b16 %v4044
        %v4210 = vunpack.c.l.b16 %v4045
        %v4211 = vunpack.c.h.b16 %v4045
        %v4212 = vunpack.c.l.b16 %v4046
        %v4213 = vunpack.c.h.b16 %v4046
        %v4214 = vunpack.c.l.b16 %v4047
        %v4215 = vunpack.c.h.b16 %v4047
        %v4216 = vunpack.c.l.b16 %v4048
        %v4217 = vunpack.c.h.b16 %v4048
        %v4218 = vunpack.c.l.b16 %v4049
        %v4219 = vunpack.c.h.b16 %v4049
        %v4220 = vunpack.c.l.b16 %v4050
        %v4221 = vunpack.c.h.b16 %v4050
        %v4222 = vpack.c.b16 %v4192, %v4190
        %v4223 = vpack.c.b16 %v4193, %v4191
        %v4224 = vpack.c.b16 %v4196, %v4194
        %v4225 = vpack.c.b16 %v4197, %v4195
        %v4226 = vpack.c.b16 %v4200, %v4198
        %v4227 = vpack.c.b16 %v4201, %v4199
        %v4228 = vpack.c.b16 %v4204, %v4202
        %v4229 = vpack.c.b16 %v4205, %v4203
        %v4230 = vpack.c.b16 %v4208, %v4206
        %v4231 = vpack.c.b16 %v4209, %v4207
        %v4232 = vpack.c.b16 %v4212, %v4210
        %v4233 = vpack.c.b16 %v4213, %v4211
        %v4234 = vpack.c.b16 %v4216, %v4214
        %v4235 = vpack.c.b16 %v4217, %v4215
        %v4236 = vpack.c.b16 %v4220, %v4218
        %v4237 = vpack.c.b16 %v4221, %v4219
        %4254 = vmatpush.bf16.msra.mxu0 %v4236
        %4255 = vmatpush.bf16.msra.mxu0 %v4234
        %4256 = vmatpush.bf16.msra.mxu0 %v4232
        %4257 = vmatpush.bf16.msra.mxu0 %v4230
        %4258 = vmatpush.bf16.msra.mxu0 %v4228
        %4259 = vmatpush.bf16.msra.mxu0 %v4226
        %4260 = vmatpush.bf16.msra.mxu0 %v4224
        %4261 = vmatpush.bf16.msra.mxu0 %v4222
        %4262 = vmatmul.bf16.gmra.mxu0 %v4051
        %v4263 = vpop.f32.mrf.mxu0
        %v4264 = vadd.f32 %v4126, %v4263
        %v4265 = vpop.f32.mrf.mxu0
        %v4266 = vadd.f32 %v4128, %v4265
        %4267 = vmatmul.bf16.gmra.mxu0 %v4052
        %v4268 = vpop.f32.mrf.mxu0
        %v4269 = vadd.f32 %v4131, %v4268
        %v4270 = vpop.f32.mrf.mxu0
        %v4271 = vadd.f32 %v4133, %v4270
        %4272 = vmatmul.bf16.gmra.mxu0 %v4053
        %v4273 = vpop.f32.mrf.mxu0
        %v4274 = vadd.f32 %v4136, %v4273
        %v4275 = vpop.f32.mrf.mxu0
        %v4276 = vadd.f32 %v4138, %v4275
        %4277 = vmatmul.bf16.gmra.mxu0 %v4054
        %v4278 = vpop.f32.mrf.mxu0
        %v4279 = vadd.f32 %v4141, %v4278
        %v4280 = vpop.f32.mrf.mxu0
        %v4281 = vadd.f32 %v4143, %v4280
        %4282 = vdwg.mxu0
        %4283 = vmatpush.bf16.msra.mxu0 %v4237
        %4284 = vmatpush.bf16.msra.mxu0 %v4235
        %4285 = vmatpush.bf16.msra.mxu0 %v4233
        %4286 = vmatpush.bf16.msra.mxu0 %v4231
        %4287 = vmatpush.bf16.msra.mxu0 %v4229
        %4288 = vmatpush.bf16.msra.mxu0 %v4227
        %4289 = vmatpush.bf16.msra.mxu0 %v4225
        %4290 = vmatpush.bf16.msra.mxu0 %v4223
        %4291 = vmatmul.bf16.gmra.mxu0 %v4051
        %v4292 = vpop.f32.mrf.mxu0
        %v4293 = vadd.f32 %v4155, %v4292
        %v4294 = vpop.f32.mrf.mxu0
        %v4295 = vadd.f32 %v4157, %v4294
        %4296 = vmatmul.bf16.gmra.mxu0 %v4052
        %v4297 = vpop.f32.mrf.mxu0
        %v4298 = vadd.f32 %v4160, %v4297
        %v4299 = vpop.f32.mrf.mxu0
        %v4300 = vadd.f32 %v4162, %v4299
        %4301 = vmatmul.bf16.gmra.mxu0 %v4053
        %v4302 = vpop.f32.mrf.mxu0
        %v4303 = vadd.f32 %v4165, %v4302
        %v4304 = vpop.f32.mrf.mxu0
        %v4305 = vadd.f32 %v4167, %v4304
        %4306 = vmatmul.bf16.gmra.mxu0 %v4054
        %v4307 = vpop.f32.mrf.mxu0
        %v4308 = vadd.f32 %v4170, %v4307
        %v4309 = vpop.f32.mrf.mxu0
        %v4310 = vadd.f32 %v4172, %v4309
        %4311 = vdwg.mxu0
        %s4312 = scalar_lea.vmem [#allocation11], 8
        %v4313 = vld [vmem:[%s4312] sm:$0x3]
        %v4315 = vperm.slane %v4313, 0
        %v4316 = vperm.slane %v4313, 1
        %v4319 = vadd.f32 %v4264, %v4315
        %v4320 = vadd.f32 %v4293, %v4316
        %v4321 = vadd.f32 %v4266, %v4315
        %v4322 = vadd.f32 %v4295, %v4316
        %v4323 = vadd.f32 %v4269, %v4315
        %v4324 = vadd.f32 %v4298, %v4316
        %v4325 = vadd.f32 %v4271, %v4315
        %v4326 = vadd.f32 %v4300, %v4316
        %v4327 = vadd.f32 %v4274, %v4315
        %v4328 = vadd.f32 %v4303, %v4316
        %v4329 = vadd.f32 %v4276, %v4315
        %v4330 = vadd.f32 %v4305, %v4316
        %v4331 = vadd.f32 %v4279, %v4315
        %v4332 = vadd.f32 %v4308, %v4316
        %v4333 = vadd.f32 %v4281, %v4315
        %v4334 = vadd.f32 %v4310, %v4316
        %v4335 = vrot.slane %v4018, 6
        %v4336 = vrot.slane %v4019, 6
        %v4337 = vrot.slane %v4020, 6
        %v4338 = vrot.slane %v4021, 6
        %v4339 = vrot.slane %v4022, 6
        %v4340 = vrot.slane %v4023, 6
        %v4341 = vrot.slane %v4024, 6
        %v4342 = vrot.slane %v4025, 6
        %v4343 = vsel %vm2095, %v4341, %v4342
        %v4344 = vsel %vm2095, %v4340, %v4341
        %v4345 = vsel %vm2095, %v4339, %v4340
        %v4346 = vsel %vm2095, %v4338, %v4339
        %v4347 = vsel %vm2095, %v4337, %v4338
        %v4348 = vsel %vm2095, %v4336, %v4337
        %v4349 = vsel %vm2095, %v4335, %v4336
        %v4350 = vsel %vm2095, %v4342, %v4335
        %v4351 = vsel %vm2112, %v4350, 0.0
        %v4352 = vsel %vm2113, %v4349, 0.0
        %v4353 = vsel %vm2114, %v4348, 0.0
        %v4354 = vsel %vm2115, %v4347, 0.0
        %v4355 = vsel %vm2116, %v4346, 0.0
        %v4356 = vsel %vm2117, %v4345, 0.0
        %v4357 = vsel %vm2118, %v4344, 0.0
        %v4358 = vsel %vm2119, %v4343, 0.0
        %s4359 = scalar_lea.vmem [#allocation8], 1024
        %v4360 = vld [vmem:[%s4359] sm:$0xff]
        %v4361 = vld [vmem:[%s4359 + $0x8] sm:$0xff]
        %v4362 = vld [vmem:[%s4359 + $0x10] sm:$0xff]
        %v4363 = vld [vmem:[%s4359 + $0x18] sm:$0xff]
        %v4364 = vld [vmem:[%s4359 + $0x20] sm:$0xff]
        %v4365 = vld [vmem:[%s4359 + $0x28] sm:$0xff]
        %v4366 = vld [vmem:[%s4359 + $0x30] sm:$0xff]
        %v4367 = vld [vmem:[%s4359 + $0x38] sm:$0xff]
        %v4368 = vld [vmem:[%s4359 + $0x40] sm:$0xff]
        %v4369 = vld [vmem:[%s4359 + $0x48] sm:$0xff]
        %v4370 = vld [vmem:[%s4359 + $0x50] sm:$0xff]
        %v4371 = vld [vmem:[%s4359 + $0x58] sm:$0xff]
        %v4372 = vld [vmem:[%s4359 + $0x60] sm:$0xff]
        %v4373 = vld [vmem:[%s4359 + $0x68] sm:$0xff]
        %v4374 = vld [vmem:[%s4359 + $0x70] sm:$0xff]
        %v4375 = vld [vmem:[%s4359 + $0x78] sm:$0xff]
        %v4376 = vpack.c.bf16 %v4352, %v4351
        %v4377 = vpack.c.bf16 %v4354, %v4353
        %v4378 = vpack.c.bf16 %v4356, %v4355
        %v4379 = vpack.c.bf16 %v4358, %v4357
        %v4396 = vunpack.c.l.b16 %v4360
        %v4397 = vunpack.c.h.b16 %v4360
        %v4398 = vunpack.c.l.b16 %v4361
        %v4399 = vunpack.c.h.b16 %v4361
        %v4400 = vunpack.c.l.b16 %v4362
        %v4401 = vunpack.c.h.b16 %v4362
        %v4402 = vunpack.c.l.b16 %v4363
        %v4403 = vunpack.c.h.b16 %v4363
        %v4404 = vunpack.c.l.b16 %v4364
        %v4405 = vunpack.c.h.b16 %v4364
        %v4406 = vunpack.c.l.b16 %v4365
        %v4407 = vunpack.c.h.b16 %v4365
        %v4408 = vunpack.c.l.b16 %v4366
        %v4409 = vunpack.c.h.b16 %v4366
        %v4410 = vunpack.c.l.b16 %v4367
        %v4411 = vunpack.c.h.b16 %v4367
        %v4412 = vunpack.c.l.b16 %v4368
        %v4413 = vunpack.c.h.b16 %v4368
        %v4414 = vunpack.c.l.b16 %v4369
        %v4415 = vunpack.c.h.b16 %v4369
        %v4416 = vunpack.c.l.b16 %v4370
        %v4417 = vunpack.c.h.b16 %v4370
        %v4418 = vunpack.c.l.b16 %v4371
        %v4419 = vunpack.c.h.b16 %v4371
        %v4420 = vunpack.c.l.b16 %v4372
        %v4421 = vunpack.c.h.b16 %v4372
        %v4422 = vunpack.c.l.b16 %v4373
        %v4423 = vunpack.c.h.b16 %v4373
        %v4424 = vunpack.c.l.b16 %v4374
        %v4425 = vunpack.c.h.b16 %v4374
        %v4426 = vunpack.c.l.b16 %v4375
        %v4427 = vunpack.c.h.b16 %v4375
        %v4428 = vpack.c.b16 %v4398, %v4396
        %v4429 = vpack.c.b16 %v4399, %v4397
        %v4430 = vpack.c.b16 %v4402, %v4400
        %v4431 = vpack.c.b16 %v4403, %v4401
        %v4432 = vpack.c.b16 %v4406, %v4404
        %v4433 = vpack.c.b16 %v4407, %v4405
        %v4434 = vpack.c.b16 %v4410, %v4408
        %v4435 = vpack.c.b16 %v4411, %v4409
        %v4436 = vpack.c.b16 %v4414, %v4412
        %v4437 = vpack.c.b16 %v4415, %v4413
        %v4438 = vpack.c.b16 %v4418, %v4416
        %v4439 = vpack.c.b16 %v4419, %v4417
        %v4440 = vpack.c.b16 %v4422, %v4420
        %v4441 = vpack.c.b16 %v4423, %v4421
        %v4442 = vpack.c.b16 %v4426, %v4424
        %v4443 = vpack.c.b16 %v4427, %v4425
        %4460 = vmatpush.bf16.msra.mxu0 %v4442
        %4461 = vmatpush.bf16.msra.mxu0 %v4440
        %4462 = vmatpush.bf16.msra.mxu0 %v4438
        %4463 = vmatpush.bf16.msra.mxu0 %v4436
        %4464 = vmatpush.bf16.msra.mxu0 %v4434
        %4465 = vmatpush.bf16.msra.mxu0 %v4432
        %4466 = vmatpush.bf16.msra.mxu0 %v4430
        %4467 = vmatpush.bf16.msra.mxu0 %v4428
        %4468 = vmatmul.bf16.gmra.mxu0 %v4376
        %v4469 = vpop.f32.mrf.mxu0
        %v4470 = vadd.f32 0.0, %v4469
        %v4471 = vpop.f32.mrf.mxu0
        %v4472 = vadd.f32 0.0, %v4471
        %4473 = vmatmul.bf16.gmra.mxu0 %v4377
        %v4474 = vpop.f32.mrf.mxu0
        %v4475 = vadd.f32 0.0, %v4474
        %v4476 = vpop.f32.mrf.mxu0
        %v4477 = vadd.f32 0.0, %v4476
        %4478 = vmatmul.bf16.gmra.mxu0 %v4378
        %v4479 = vpop.f32.mrf.mxu0
        %v4480 = vadd.f32 0.0, %v4479
        %v4481 = vpop.f32.mrf.mxu0
        %v4482 = vadd.f32 0.0, %v4481
        %4483 = vmatmul.bf16.gmra.mxu0 %v4379
        %v4484 = vpop.f32.mrf.mxu0
        %v4485 = vadd.f32 0.0, %v4484
        %v4486 = vpop.f32.mrf.mxu0
        %v4487 = vadd.f32 0.0, %v4486
        %4488 = vdwg.mxu0
        %4489 = vmatpush.bf16.msra.mxu0 %v4443
        %4490 = vmatpush.bf16.msra.mxu0 %v4441
        %4491 = vmatpush.bf16.msra.mxu0 %v4439
        %4492 = vmatpush.bf16.msra.mxu0 %v4437
        %4493 = vmatpush.bf16.msra.mxu0 %v4435
        %4494 = vmatpush.bf16.msra.mxu0 %v4433
        %4495 = vmatpush.bf16.msra.mxu0 %v4431
        %4496 = vmatpush.bf16.msra.mxu0 %v4429
        %4497 = vmatmul.bf16.gmra.mxu0 %v4376
        %v4498 = vpop.f32.mrf.mxu0
        %v4499 = vadd.f32 0.0, %v4498
        %v4500 = vpop.f32.mrf.mxu0
        %v4501 = vadd.f32 0.0, %v4500
        %4502 = vmatmul.bf16.gmra.mxu0 %v4377
        %v4503 = vpop.f32.mrf.mxu0
        %v4504 = vadd.f32 0.0, %v4503
        %v4505 = vpop.f32.mrf.mxu0
        %v4506 = vadd.f32 0.0, %v4505
        %4507 = vmatmul.bf16.gmra.mxu0 %v4378
        %v4508 = vpop.f32.mrf.mxu0
        %v4509 = vadd.f32 0.0, %v4508
        %v4510 = vpop.f32.mrf.mxu0
        %v4511 = vadd.f32 0.0, %v4510
        %4512 = vmatmul.bf16.gmra.mxu0 %v4379
        %v4513 = vpop.f32.mrf.mxu0
        %v4514 = vadd.f32 0.0, %v4513
        %v4515 = vpop.f32.mrf.mxu0
        %v4516 = vadd.f32 0.0, %v4515
        %4517 = vdwg.mxu0
        %v4518 = vadd.f32 %v4319, %v4470
        %v4519 = vadd.f32 %v4320, %v4499
        %v4520 = vadd.f32 %v4321, %v4472
        %v4521 = vadd.f32 %v4322, %v4501
        %v4522 = vadd.f32 %v4323, %v4475
        %v4523 = vadd.f32 %v4324, %v4504
        %v4524 = vadd.f32 %v4325, %v4477
        %v4525 = vadd.f32 %v4326, %v4506
        %v4526 = vadd.f32 %v4327, %v4480
        %v4527 = vadd.f32 %v4328, %v4509
        %v4528 = vadd.f32 %v4329, %v4482
        %v4529 = vadd.f32 %v4330, %v4511
        %v4530 = vadd.f32 %v4331, %v4485
        %v4531 = vadd.f32 %v4332, %v4514
        %v4532 = vadd.f32 %v4333, %v4487
        %v4533 = vadd.f32 %v4334, %v4516
        %v4534 = vmul.f32 %v4519, 0.5
        %v4535 = vmul.f32 %v4521, 0.5
        %v4536 = vmul.f32 %v4523, 0.5
        %v4537 = vmul.f32 %v4525, 0.5
        %v4538 = vmul.f32 %v4527, 0.5
        %v4539 = vmul.f32 %v4529, 0.5
        %v4540 = vmul.f32 %v4531, 0.5
        %v4541 = vmul.f32 %v4533, 0.5
        %v4542 = vtanh.pop %v4534
        %v4543 = vtanh.pop %v4535
        %v4544 = vtanh.pop %v4536
        %v4545 = vtanh.pop %v4537
        %v4546 = vtanh.pop %v4538
        %v4547 = vtanh.pop %v4539
        %v4548 = vtanh.pop %v4540
        %v4549 = vtanh.pop %v4541
        %v4550 = vadd.f32 %v4542, 1.0
        %v4551 = vadd.f32 %v4543, 1.0
        %v4552 = vadd.f32 %v4544, 1.0
        %v4553 = vadd.f32 %v4545, 1.0
        %v4554 = vadd.f32 %v4546, 1.0
        %v4555 = vadd.f32 %v4547, 1.0
        %v4556 = vadd.f32 %v4548, 1.0
        %v4557 = vadd.f32 %v4549, 1.0
        %v4558 = vmul.f32 %v4550, 0.5
        %v4559 = vmul.f32 %v4551, 0.5
        %v4560 = vmul.f32 %v4552, 0.5
        %v4561 = vmul.f32 %v4553, 0.5
        %v4562 = vmul.f32 %v4554, 0.5
        %v4563 = vmul.f32 %v4555, 0.5
        %v4564 = vmul.f32 %v4556, 0.5
        %v4565 = vmul.f32 %v4557, 0.5
        %v4566 = vtanh.pop %v4518
        %v4567 = vtanh.pop %v4520
        %v4568 = vtanh.pop %v4522
        %v4569 = vtanh.pop %v4524
        %v4570 = vtanh.pop %v4526
        %v4571 = vtanh.pop %v4528
        %v4572 = vtanh.pop %v4530
        %v4573 = vtanh.pop %v4532
        %v4574 = vmul.f32 %v4566, %v4558
        %v4575 = vmul.f32 %v4567, %v4559
        %v4576 = vmul.f32 %v4568, %v4560
        %v4577 = vmul.f32 %v4569, %v4561
        %v4578 = vmul.f32 %v4570, %v4562
        %v4579 = vmul.f32 %v4571, %v4563
        %v4580 = vmul.f32 %v4572, %v4564
        %v4581 = vmul.f32 %v4573, %v4565
        %s4582 = scalar_lea.vmem [#allocation13], 512
        %v4583 = vld [vmem:[%s4582] sm:$0xff]
        %v4584 = vld [vmem:[%s4582 + $0x8] sm:$0xff]
        %v4585 = vld [vmem:[%s4582 + $0x10] sm:$0xff]
        %v4586 = vld [vmem:[%s4582 + $0x18] sm:$0xff]
        %v4587 = vld [vmem:[%s4582 + $0x20] sm:$0xff]
        %v4588 = vld [vmem:[%s4582 + $0x28] sm:$0xff]
        %v4589 = vld [vmem:[%s4582 + $0x30] sm:$0xff]
        %v4590 = vld [vmem:[%s4582 + $0x38] sm:$0xff]
        %v4591 = vld [vmem:[%s4582 + $0x40] sm:$0xff]
        %v4592 = vld [vmem:[%s4582 + $0x48] sm:$0xff]
        %v4593 = vld [vmem:[%s4582 + $0x50] sm:$0xff]
        %v4594 = vld [vmem:[%s4582 + $0x58] sm:$0xff]
        %v4595 = vld [vmem:[%s4582 + $0x60] sm:$0xff]
        %v4596 = vld [vmem:[%s4582 + $0x68] sm:$0xff]
        %v4597 = vld [vmem:[%s4582 + $0x70] sm:$0xff]
        %v4598 = vld [vmem:[%s4582 + $0x78] sm:$0xff]
        %v4599 = vpack.c.bf16 %v4575, %v4574
        %v4600 = vpack.c.bf16 %v4577, %v4576
        %v4601 = vpack.c.bf16 %v4579, %v4578
        %v4602 = vpack.c.bf16 %v4581, %v4580
        %s4603 = scalar_lea.vmem [#allocation14], 8
        %v4604 = vld [vmem:[%s4603] sm:$0x3]
        %v4606 = vperm.slane %v4604, 0
        %v4607 = vperm.slane %v4604, 1
        %v4626 = vunpack.c.l.b16 %v4583
        %v4627 = vunpack.c.h.b16 %v4583
        %v4628 = vunpack.c.l.b16 %v4584
        %v4629 = vunpack.c.h.b16 %v4584
        %v4630 = vunpack.c.l.b16 %v4585
        %v4631 = vunpack.c.h.b16 %v4585
        %v4632 = vunpack.c.l.b16 %v4586
        %v4633 = vunpack.c.h.b16 %v4586
        %v4634 = vunpack.c.l.b16 %v4587
        %v4635 = vunpack.c.h.b16 %v4587
        %v4636 = vunpack.c.l.b16 %v4588
        %v4637 = vunpack.c.h.b16 %v4588
        %v4638 = vunpack.c.l.b16 %v4589
        %v4639 = vunpack.c.h.b16 %v4589
        %v4640 = vunpack.c.l.b16 %v4590
        %v4641 = vunpack.c.h.b16 %v4590
        %v4642 = vunpack.c.l.b16 %v4591
        %v4643 = vunpack.c.h.b16 %v4591
        %v4644 = vunpack.c.l.b16 %v4592
        %v4645 = vunpack.c.h.b16 %v4592
        %v4646 = vunpack.c.l.b16 %v4593
        %v4647 = vunpack.c.h.b16 %v4593
        %v4648 = vunpack.c.l.b16 %v4594
        %v4649 = vunpack.c.h.b16 %v4594
        %v4650 = vunpack.c.l.b16 %v4595
        %v4651 = vunpack.c.h.b16 %v4595
        %v4652 = vunpack.c.l.b16 %v4596
        %v4653 = vunpack.c.h.b16 %v4596
        %v4654 = vunpack.c.l.b16 %v4597
        %v4655 = vunpack.c.h.b16 %v4597
        %v4656 = vunpack.c.l.b16 %v4598
        %v4657 = vunpack.c.h.b16 %v4598
        %v4658 = vpack.c.b16 %v4628, %v4626
        %v4659 = vpack.c.b16 %v4629, %v4627
        %v4660 = vpack.c.b16 %v4632, %v4630
        %v4661 = vpack.c.b16 %v4633, %v4631
        %v4662 = vpack.c.b16 %v4636, %v4634
        %v4663 = vpack.c.b16 %v4637, %v4635
        %v4664 = vpack.c.b16 %v4640, %v4638
        %v4665 = vpack.c.b16 %v4641, %v4639
        %v4666 = vpack.c.b16 %v4644, %v4642
        %v4667 = vpack.c.b16 %v4645, %v4643
        %v4668 = vpack.c.b16 %v4648, %v4646
        %v4669 = vpack.c.b16 %v4649, %v4647
        %v4670 = vpack.c.b16 %v4652, %v4650
        %v4671 = vpack.c.b16 %v4653, %v4651
        %v4672 = vpack.c.b16 %v4656, %v4654
        %v4673 = vpack.c.b16 %v4657, %v4655
        %4690 = vmatpush.bf16.msra.mxu0 %v4672
        %4691 = vmatpush.bf16.msra.mxu0 %v4670
        %4692 = vmatpush.bf16.msra.mxu0 %v4668
        %4693 = vmatpush.bf16.msra.mxu0 %v4666
        %4694 = vmatpush.bf16.msra.mxu0 %v4664
        %4695 = vmatpush.bf16.msra.mxu0 %v4662
        %4696 = vmatpush.bf16.msra.mxu0 %v4660
        %4697 = vmatpush.bf16.msra.mxu0 %v4658
        %4698 = vmatmul.bf16.gmra.mxu0 %v4599
        %v4699 = vpop.f32.mrf.mxu0
        %v4700 = vadd.f32 %v4606, %v4699
        %v4701 = vpop.f32.mrf.mxu0
        %v4702 = vadd.f32 %v4606, %v4701
        %4703 = vmatmul.bf16.gmra.mxu0 %v4600
        %v4704 = vpop.f32.mrf.mxu0
        %v4705 = vadd.f32 %v4606, %v4704
        %v4706 = vpop.f32.mrf.mxu0
        %v4707 = vadd.f32 %v4606, %v4706
        %4708 = vmatmul.bf16.gmra.mxu0 %v4601
        %v4709 = vpop.f32.mrf.mxu0
        %v4710 = vadd.f32 %v4606, %v4709
        %v4711 = vpop.f32.mrf.mxu0
        %v4712 = vadd.f32 %v4606, %v4711
        %4713 = vmatmul.bf16.gmra.mxu0 %v4602
        %v4714 = vpop.f32.mrf.mxu0
        %v4715 = vadd.f32 %v4606, %v4714
        %v4716 = vpop.f32.mrf.mxu0
        %v4717 = vadd.f32 %v4606, %v4716
        %4718 = vdwg.mxu0
        %4719 = vmatpush.bf16.msra.mxu0 %v4673
        %4720 = vmatpush.bf16.msra.mxu0 %v4671
        %4721 = vmatpush.bf16.msra.mxu0 %v4669
        %4722 = vmatpush.bf16.msra.mxu0 %v4667
        %4723 = vmatpush.bf16.msra.mxu0 %v4665
        %4724 = vmatpush.bf16.msra.mxu0 %v4663
        %4725 = vmatpush.bf16.msra.mxu0 %v4661
        %4726 = vmatpush.bf16.msra.mxu0 %v4659
        %4727 = vmatmul.bf16.gmra.mxu0 %v4599
        %v4728 = vpop.f32.mrf.mxu0
        %v4729 = vadd.f32 %v4607, %v4728
        %v4730 = vpop.f32.mrf.mxu0
        %v4731 = vadd.f32 %v4607, %v4730
        %4732 = vmatmul.bf16.gmra.mxu0 %v4600
        %v4733 = vpop.f32.mrf.mxu0
        %v4734 = vadd.f32 %v4607, %v4733
        %v4735 = vpop.f32.mrf.mxu0
        %v4736 = vadd.f32 %v4607, %v4735
        %4737 = vmatmul.bf16.gmra.mxu0 %v4601
        %v4738 = vpop.f32.mrf.mxu0
        %v4739 = vadd.f32 %v4607, %v4738
        %v4740 = vpop.f32.mrf.mxu0
        %v4741 = vadd.f32 %v4607, %v4740
        %4742 = vmatmul.bf16.gmra.mxu0 %v4602
        %v4743 = vpop.f32.mrf.mxu0
        %v4744 = vadd.f32 %v4607, %v4743
        %v4745 = vpop.f32.mrf.mxu0
        %v4746 = vadd.f32 %v4607, %v4745
        %4747 = vdwg.mxu0
        %v4748 = vadd.f32 %v4018, %v4700
        %v4749 = vadd.f32 %v4019, %v4702
        %v4750 = vadd.f32 %v4020, %v4705
        %v4751 = vadd.f32 %v4021, %v4707
        %v4752 = vadd.f32 %v4022, %v4710
        %v4753 = vadd.f32 %v4023, %v4712
        %v4754 = vadd.f32 %v4024, %v4715
        %v4755 = vadd.f32 %v4025, %v4717
        %v4756 = vmul.f32 %v4748, 0.70710677
        %v4757 = vmul.f32 %v4749, 0.70710677
        %v4758 = vmul.f32 %v4750, 0.70710677
        %v4759 = vmul.f32 %v4751, 0.70710677
        %v4760 = vmul.f32 %v4752, 0.70710677
        %v4761 = vmul.f32 %v4753, 0.70710677
        %v4762 = vmul.f32 %v4754, 0.70710677
        %v4763 = vmul.f32 %v4755, 0.70710677
        %v4764 = vadd.f32 %v4026, %v4729
        %v4765 = vadd.f32 %v4027, %v4731
        %v4766 = vadd.f32 %v4028, %v4734
        %v4767 = vadd.f32 %v4029, %v4736
        %v4768 = vadd.f32 %v4030, %v4739
        %v4769 = vadd.f32 %v4031, %v4741
        %v4770 = vadd.f32 %v4032, %v4744
        %v4771 = vadd.f32 %v4033, %v4746
        %s4772 = scalar_lea.vmem [#allocation8], 1408
        %v4773 = vld [vmem:[%s4772] sm:$0xff]
        %v4774 = vld [vmem:[%s4772 + $0x8] sm:$0xff]
        %v4775 = vld [vmem:[%s4772 + $0x10] sm:$0xff]
        %v4776 = vld [vmem:[%s4772 + $0x18] sm:$0xff]
        %v4777 = vld [vmem:[%s4772 + $0x20] sm:$0xff]
        %v4778 = vld [vmem:[%s4772 + $0x28] sm:$0xff]
        %v4779 = vld [vmem:[%s4772 + $0x30] sm:$0xff]
        %v4780 = vld [vmem:[%s4772 + $0x38] sm:$0xff]
        %v4781 = vld [vmem:[%s4772 + $0x40] sm:$0xff]
        %v4782 = vld [vmem:[%s4772 + $0x48] sm:$0xff]
        %v4783 = vld [vmem:[%s4772 + $0x50] sm:$0xff]
        %v4784 = vld [vmem:[%s4772 + $0x58] sm:$0xff]
        %v4785 = vld [vmem:[%s4772 + $0x60] sm:$0xff]
        %v4786 = vld [vmem:[%s4772 + $0x68] sm:$0xff]
        %v4787 = vld [vmem:[%s4772 + $0x70] sm:$0xff]
        %v4788 = vld [vmem:[%s4772 + $0x78] sm:$0xff]
        %v4789 = vpack.c.bf16 %v4757, %v4756
        %v4790 = vpack.c.bf16 %v4759, %v4758
        %v4791 = vpack.c.bf16 %v4761, %v4760
        %v4792 = vpack.c.bf16 %v4763, %v4762
        %s4793 = scalar_lea.vmem [#allocation10], 400
        %v4794 = vld [vmem:[%s4793] sm:$0xff]
        %v4795 = vld [vmem:[%s4793 + $0x8] sm:$0xff]
        %v4796 = vld [vmem:[%s4793 + $0x10] sm:$0xff]
        %v4797 = vld [vmem:[%s4793 + $0x18] sm:$0xff]
        %v4798 = vld [vmem:[%s4793 + $0x20] sm:$0xff]
        %v4799 = vld [vmem:[%s4793 + $0x28] sm:$0xff]
        %v4800 = vld [vmem:[%s4793 + $0x30] sm:$0xff]
        %v4801 = vld [vmem:[%s4793 + $0x38] sm:$0xff]
        %v4802 = vld [vmem:[%s4793 + $0x40] sm:$0xff]
        %v4803 = vld [vmem:[%s4793 + $0x48] sm:$0xff]
        %v4814 = vunpack.c.l.b16 %v4794
        %v4815 = vunpack.c.h.b16 %v4794
        %v4816 = vunpack.c.l.b16 %v4795
        %v4817 = vunpack.c.h.b16 %v4795
        %v4818 = vunpack.c.l.b16 %v4796
        %v4819 = vunpack.c.h.b16 %v4796
        %v4820 = vunpack.c.l.b16 %v4797
        %v4821 = vunpack.c.h.b16 %v4797
        %v4822 = vunpack.c.l.b16 %v4798
        %v4823 = vunpack.c.h.b16 %v4798
        %v4824 = vunpack.c.l.b16 %v4799
        %v4825 = vunpack.c.h.b16 %v4799
        %v4826 = vunpack.c.l.b16 %v4800
        %v4827 = vunpack.c.h.b16 %v4800
        %v4828 = vunpack.c.l.b16 %v4801
        %v4829 = vunpack.c.h.b16 %v4801
        %v4830 = vunpack.c.l.b16 %v4802
        %v4831 = vunpack.c.h.b16 %v4802
        %v4832 = vunpack.c.l.b16 %v4803
        %v4833 = vunpack.c.h.b16 %v4803
        %v4834 = vpack.c.b16 %v4816, %v4814
        %v4835 = vpack.c.b16 %v4817, %v4815
        %v4836 = vpack.c.b16 %v4820, %v4818
        %v4837 = vpack.c.b16 %v4821, %v4819
        %v4838 = vpack.c.b16 %v4824, %v4822
        %v4839 = vpack.c.b16 %v4825, %v4823
        %v4840 = vpack.c.b16 %v4828, %v4826
        %v4841 = vpack.c.b16 %v4829, %v4827
        %v4842 = vpack.c.b16 %v4832, %v4830
        %v4843 = vpack.c.b16 %v4833, %v4831
        %4854 = vmatpush.bf16.msra.mxu0 0
        %4855 = vmatpush.bf16.msra.mxu0 0
        %4856 = vmatpush.bf16.msra.mxu0 0
        %4857 = vmatpush.bf16.msra.mxu0 %v4842
        %4858 = vmatpush.bf16.msra.mxu0 %v4840
        %4859 = vmatpush.bf16.msra.mxu0 %v4838
        %4860 = vmatpush.bf16.msra.mxu0 %v4836
        %4861 = vmatpush.bf16.msra.mxu0 %v4834
        %4862 = vmatmul.bf16.gmra.mxu0 %v1114
        %v4863 = vpop.f32.mrf.mxu0
        %v4864 = vadd.f32 0.0, %v4863
        %v4865 = vpop.f32.mrf.mxu0
        %v4866 = vadd.f32 0.0, %v4865
        %4867 = vmatmul.bf16.gmra.mxu0 %v1117
        %v4868 = vpop.f32.mrf.mxu0
        %v4869 = vadd.f32 0.0, %v4868
        %v4870 = vpop.f32.mrf.mxu0
        %v4871 = vadd.f32 0.0, %v4870
        %4872 = vmatmul.bf16.gmra.mxu0 %v1120
        %v4873 = vpop.f32.mrf.mxu0
        %v4874 = vadd.f32 0.0, %v4873
        %v4875 = vpop.f32.mrf.mxu0
        %v4876 = vadd.f32 0.0, %v4875
        %4877 = vmatmul.bf16.gmra.mxu0 %v1123
        %v4878 = vpop.f32.mrf.mxu0
        %v4879 = vadd.f32 0.0, %v4878
        %v4880 = vpop.f32.mrf.mxu0
        %v4881 = vadd.f32 0.0, %v4880
        %4882 = vdwg.mxu0
        %4883 = vmatpush.bf16.msra.mxu0 0
        %4884 = vmatpush.bf16.msra.mxu0 0
        %4885 = vmatpush.bf16.msra.mxu0 0
        %4886 = vmatpush.bf16.msra.mxu0 %v4843
        %4887 = vmatpush.bf16.msra.mxu0 %v4841
        %4888 = vmatpush.bf16.msra.mxu0 %v4839
        %4889 = vmatpush.bf16.msra.mxu0 %v4837
        %4890 = vmatpush.bf16.msra.mxu0 %v4835
        %4891 = vmatmul.bf16.gmra.mxu0 %v1114
        %v4892 = vpop.f32.mrf.mxu0
        %v4893 = vadd.f32 0.0, %v4892
        %v4894 = vpop.f32.mrf.mxu0
        %v4895 = vadd.f32 0.0, %v4894
        %4896 = vmatmul.bf16.gmra.mxu0 %v1117
        %v4897 = vpop.f32.mrf.mxu0
        %v4898 = vadd.f32 0.0, %v4897
        %v4899 = vpop.f32.mrf.mxu0
        %v4900 = vadd.f32 0.0, %v4899
        %4901 = vmatmul.bf16.gmra.mxu0 %v1120
        %v4902 = vpop.f32.mrf.mxu0
        %v4903 = vadd.f32 0.0, %v4902
        %v4904 = vpop.f32.mrf.mxu0
        %v4905 = vadd.f32 0.0, %v4904
        %4906 = vmatmul.bf16.gmra.mxu0 %v1123
        %v4907 = vpop.f32.mrf.mxu0
        %v4908 = vadd.f32 0.0, %v4907
        %v4909 = vpop.f32.mrf.mxu0
        %v4910 = vadd.f32 0.0, %v4909
        %4911 = vdwg.mxu0
        %v4928 = vunpack.c.l.b16 %v4773
        %v4929 = vunpack.c.h.b16 %v4773
        %v4930 = vunpack.c.l.b16 %v4774
        %v4931 = vunpack.c.h.b16 %v4774
        %v4932 = vunpack.c.l.b16 %v4775
        %v4933 = vunpack.c.h.b16 %v4775
        %v4934 = vunpack.c.l.b16 %v4776
        %v4935 = vunpack.c.h.b16 %v4776
        %v4936 = vunpack.c.l.b16 %v4777
        %v4937 = vunpack.c.h.b16 %v4777
        %v4938 = vunpack.c.l.b16 %v4778
        %v4939 = vunpack.c.h.b16 %v4778
        %v4940 = vunpack.c.l.b16 %v4779
        %v4941 = vunpack.c.h.b16 %v4779
        %v4942 = vunpack.c.l.b16 %v4780
        %v4943 = vunpack.c.h.b16 %v4780
        %v4944 = vunpack.c.l.b16 %v4781
        %v4945 = vunpack.c.h.b16 %v4781
        %v4946 = vunpack.c.l.b16 %v4782
        %v4947 = vunpack.c.h.b16 %v4782
        %v4948 = vunpack.c.l.b16 %v4783
        %v4949 = vunpack.c.h.b16 %v4783
        %v4950 = vunpack.c.l.b16 %v4784
        %v4951 = vunpack.c.h.b16 %v4784
        %v4952 = vunpack.c.l.b16 %v4785
        %v4953 = vunpack.c.h.b16 %v4785
        %v4954 = vunpack.c.l.b16 %v4786
        %v4955 = vunpack.c.h.b16 %v4786
        %v4956 = vunpack.c.l.b16 %v4787
        %v4957 = vunpack.c.h.b16 %v4787
        %v4958 = vunpack.c.l.b16 %v4788
        %v4959 = vunpack.c.h.b16 %v4788
        %v4960 = vpack.c.b16 %v4930, %v4928
        %v4961 = vpack.c.b16 %v4931, %v4929
        %v4962 = vpack.c.b16 %v4934, %v4932
        %v4963 = vpack.c.b16 %v4935, %v4933
        %v4964 = vpack.c.b16 %v4938, %v4936
        %v4965 = vpack.c.b16 %v4939, %v4937
        %v4966 = vpack.c.b16 %v4942, %v4940
        %v4967 = vpack.c.b16 %v4943, %v4941
        %v4968 = vpack.c.b16 %v4946, %v4944
        %v4969 = vpack.c.b16 %v4947, %v4945
        %v4970 = vpack.c.b16 %v4950, %v4948
        %v4971 = vpack.c.b16 %v4951, %v4949
        %v4972 = vpack.c.b16 %v4954, %v4952
        %v4973 = vpack.c.b16 %v4955, %v4953
        %v4974 = vpack.c.b16 %v4958, %v4956
        %v4975 = vpack.c.b16 %v4959, %v4957
        %4992 = vmatpush.bf16.msra.mxu0 %v4974
        %4993 = vmatpush.bf16.msra.mxu0 %v4972
        %4994 = vmatpush.bf16.msra.mxu0 %v4970
        %4995 = vmatpush.bf16.msra.mxu0 %v4968
        %4996 = vmatpush.bf16.msra.mxu0 %v4966
        %4997 = vmatpush.bf16.msra.mxu0 %v4964
        %4998 = vmatpush.bf16.msra.mxu0 %v4962
        %4999 = vmatpush.bf16.msra.mxu0 %v4960
        %5000 = vmatmul.bf16.gmra.mxu0 %v4789
        %v5001 = vpop.f32.mrf.mxu0
        %v5002 = vadd.f32 %v4864, %v5001
        %v5003 = vpop.f32.mrf.mxu0
        %v5004 = vadd.f32 %v4866, %v5003
        %5005 = vmatmul.bf16.gmra.mxu0 %v4790
        %v5006 = vpop.f32.mrf.mxu0
        %v5007 = vadd.f32 %v4869, %v5006
        %v5008 = vpop.f32.mrf.mxu0
        %v5009 = vadd.f32 %v4871, %v5008
        %5010 = vmatmul.bf16.gmra.mxu0 %v4791
        %v5011 = vpop.f32.mrf.mxu0
        %v5012 = vadd.f32 %v4874, %v5011
        %v5013 = vpop.f32.mrf.mxu0
        %v5014 = vadd.f32 %v4876, %v5013
        %5015 = vmatmul.bf16.gmra.mxu0 %v4792
        %v5016 = vpop.f32.mrf.mxu0
        %v5017 = vadd.f32 %v4879, %v5016
        %v5018 = vpop.f32.mrf.mxu0
        %v5019 = vadd.f32 %v4881, %v5018
        %5020 = vdwg.mxu0
        %5021 = vmatpush.bf16.msra.mxu0 %v4975
        %5022 = vmatpush.bf16.msra.mxu0 %v4973
        %5023 = vmatpush.bf16.msra.mxu0 %v4971
        %5024 = vmatpush.bf16.msra.mxu0 %v4969
        %5025 = vmatpush.bf16.msra.mxu0 %v4967
        %5026 = vmatpush.bf16.msra.mxu0 %v4965
        %5027 = vmatpush.bf16.msra.mxu0 %v4963
        %5028 = vmatpush.bf16.msra.mxu0 %v4961
        %5029 = vmatmul.bf16.gmra.mxu0 %v4789
        %v5030 = vpop.f32.mrf.mxu0
        %v5031 = vadd.f32 %v4893, %v5030
        %v5032 = vpop.f32.mrf.mxu0
        %v5033 = vadd.f32 %v4895, %v5032
        %5034 = vmatmul.bf16.gmra.mxu0 %v4790
        %v5035 = vpop.f32.mrf.mxu0
        %v5036 = vadd.f32 %v4898, %v5035
        %v5037 = vpop.f32.mrf.mxu0
        %v5038 = vadd.f32 %v4900, %v5037
        %5039 = vmatmul.bf16.gmra.mxu0 %v4791
        %v5040 = vpop.f32.mrf.mxu0
        %v5041 = vadd.f32 %v4903, %v5040
        %v5042 = vpop.f32.mrf.mxu0
        %v5043 = vadd.f32 %v4905, %v5042
        %5044 = vmatmul.bf16.gmra.mxu0 %v4792
        %v5045 = vpop.f32.mrf.mxu0
        %v5046 = vadd.f32 %v4908, %v5045
        %v5047 = vpop.f32.mrf.mxu0
        %v5048 = vadd.f32 %v4910, %v5047
        %5049 = vdwg.mxu0
        %s5050 = scalar_lea.vmem [#allocation11], 10
        %v5051 = vld [vmem:[%s5050] sm:$0x3]
        %v5053 = vperm.slane %v5051, 0
        %v5054 = vperm.slane %v5051, 1
        %v5057 = vadd.f32 %v5002, %v5053
        %v5058 = vadd.f32 %v5031, %v5054
        %v5059 = vadd.f32 %v5004, %v5053
        %v5060 = vadd.f32 %v5033, %v5054
        %v5061 = vadd.f32 %v5007, %v5053
        %v5062 = vadd.f32 %v5036, %v5054
        %v5063 = vadd.f32 %v5009, %v5053
        %v5064 = vadd.f32 %v5038, %v5054
        %v5065 = vadd.f32 %v5012, %v5053
        %v5066 = vadd.f32 %v5041, %v5054
        %v5067 = vadd.f32 %v5014, %v5053
        %v5068 = vadd.f32 %v5043, %v5054
        %v5069 = vadd.f32 %v5017, %v5053
        %v5070 = vadd.f32 %v5046, %v5054
        %v5071 = vadd.f32 %v5019, %v5053
        %v5072 = vadd.f32 %v5048, %v5054
        %v5073 = vrot.slane %v4756, 4
        %v5074 = vrot.slane %v4757, 4
        %v5075 = vrot.slane %v4758, 4
        %v5076 = vrot.slane %v4759, 4
        %v5077 = vrot.slane %v4760, 4
        %v5078 = vrot.slane %v4761, 4
        %v5079 = vrot.slane %v4762, 4
        %v5080 = vrot.slane %v4763, 4
        %v5081 = vsel %vm2850, %v5079, %v5080
        %v5082 = vsel %vm2850, %v5078, %v5079
        %v5083 = vsel %vm2850, %v5077, %v5078
        %v5084 = vsel %vm2850, %v5076, %v5077
        %v5085 = vsel %vm2850, %v5075, %v5076
        %v5086 = vsel %vm2850, %v5074, %v5075
        %v5087 = vsel %vm2850, %v5073, %v5074
        %v5088 = vsel %vm2850, %v5080, %v5073
        %v5089 = vsel %vm2867, %v5088, 0.0
        %v5090 = vsel %vm2868, %v5087, 0.0
        %v5091 = vsel %vm2869, %v5086, 0.0
        %v5092 = vsel %vm2870, %v5085, 0.0
        %v5093 = vsel %vm2871, %v5084, 0.0
        %v5094 = vsel %vm2872, %v5083, 0.0
        %v5095 = vsel %vm2873, %v5082, 0.0
        %v5096 = vsel %vm2874, %v5081, 0.0
        %s5097 = scalar_lea.vmem [#allocation8], 1280
        %v5098 = vld [vmem:[%s5097] sm:$0xff]
        %v5099 = vld [vmem:[%s5097 + $0x8] sm:$0xff]
        %v5100 = vld [vmem:[%s5097 + $0x10] sm:$0xff]
        %v5101 = vld [vmem:[%s5097 + $0x18] sm:$0xff]
        %v5102 = vld [vmem:[%s5097 + $0x20] sm:$0xff]
        %v5103 = vld [vmem:[%s5097 + $0x28] sm:$0xff]
        %v5104 = vld [vmem:[%s5097 + $0x30] sm:$0xff]
        %v5105 = vld [vmem:[%s5097 + $0x38] sm:$0xff]
        %v5106 = vld [vmem:[%s5097 + $0x40] sm:$0xff]
        %v5107 = vld [vmem:[%s5097 + $0x48] sm:$0xff]
        %v5108 = vld [vmem:[%s5097 + $0x50] sm:$0xff]
        %v5109 = vld [vmem:[%s5097 + $0x58] sm:$0xff]
        %v5110 = vld [vmem:[%s5097 + $0x60] sm:$0xff]
        %v5111 = vld [vmem:[%s5097 + $0x68] sm:$0xff]
        %v5112 = vld [vmem:[%s5097 + $0x70] sm:$0xff]
        %v5113 = vld [vmem:[%s5097 + $0x78] sm:$0xff]
        %v5114 = vpack.c.bf16 %v5090, %v5089
        %v5115 = vpack.c.bf16 %v5092, %v5091
        %v5116 = vpack.c.bf16 %v5094, %v5093
        %v5117 = vpack.c.bf16 %v5096, %v5095
        %v5134 = vunpack.c.l.b16 %v5098
        %v5135 = vunpack.c.h.b16 %v5098
        %v5136 = vunpack.c.l.b16 %v5099
        %v5137 = vunpack.c.h.b16 %v5099
        %v5138 = vunpack.c.l.b16 %v5100
        %v5139 = vunpack.c.h.b16 %v5100
        %v5140 = vunpack.c.l.b16 %v5101
        %v5141 = vunpack.c.h.b16 %v5101
        %v5142 = vunpack.c.l.b16 %v5102
        %v5143 = vunpack.c.h.b16 %v5102
        %v5144 = vunpack.c.l.b16 %v5103
        %v5145 = vunpack.c.h.b16 %v5103
        %v5146 = vunpack.c.l.b16 %v5104
        %v5147 = vunpack.c.h.b16 %v5104
        %v5148 = vunpack.c.l.b16 %v5105
        %v5149 = vunpack.c.h.b16 %v5105
        %v5150 = vunpack.c.l.b16 %v5106
        %v5151 = vunpack.c.h.b16 %v5106
        %v5152 = vunpack.c.l.b16 %v5107
        %v5153 = vunpack.c.h.b16 %v5107
        %v5154 = vunpack.c.l.b16 %v5108
        %v5155 = vunpack.c.h.b16 %v5108
        %v5156 = vunpack.c.l.b16 %v5109
        %v5157 = vunpack.c.h.b16 %v5109
        %v5158 = vunpack.c.l.b16 %v5110
        %v5159 = vunpack.c.h.b16 %v5110
        %v5160 = vunpack.c.l.b16 %v5111
        %v5161 = vunpack.c.h.b16 %v5111
        %v5162 = vunpack.c.l.b16 %v5112
        %v5163 = vunpack.c.h.b16 %v5112
        %v5164 = vunpack.c.l.b16 %v5113
        %v5165 = vunpack.c.h.b16 %v5113
        %v5166 = vpack.c.b16 %v5136, %v5134
        %v5167 = vpack.c.b16 %v5137, %v5135
        %v5168 = vpack.c.b16 %v5140, %v5138
        %v5169 = vpack.c.b16 %v5141, %v5139
        %v5170 = vpack.c.b16 %v5144, %v5142
        %v5171 = vpack.c.b16 %v5145, %v5143
        %v5172 = vpack.c.b16 %v5148, %v5146
        %v5173 = vpack.c.b16 %v5149, %v5147
        %v5174 = vpack.c.b16 %v5152, %v5150
        %v5175 = vpack.c.b16 %v5153, %v5151
        %v5176 = vpack.c.b16 %v5156, %v5154
        %v5177 = vpack.c.b16 %v5157, %v5155
        %v5178 = vpack.c.b16 %v5160, %v5158
        %v5179 = vpack.c.b16 %v5161, %v5159
        %v5180 = vpack.c.b16 %v5164, %v5162
        %v5181 = vpack.c.b16 %v5165, %v5163
        %5198 = vmatpush.bf16.msra.mxu0 %v5180
        %5199 = vmatpush.bf16.msra.mxu0 %v5178
        %5200 = vmatpush.bf16.msra.mxu0 %v5176
        %5201 = vmatpush.bf16.msra.mxu0 %v5174
        %5202 = vmatpush.bf16.msra.mxu0 %v5172
        %5203 = vmatpush.bf16.msra.mxu0 %v5170
        %5204 = vmatpush.bf16.msra.mxu0 %v5168
        %5205 = vmatpush.bf16.msra.mxu0 %v5166
        %5206 = vmatmul.bf16.gmra.mxu0 %v5114
        %v5207 = vpop.f32.mrf.mxu0
        %v5208 = vadd.f32 0.0, %v5207
        %v5209 = vpop.f32.mrf.mxu0
        %v5210 = vadd.f32 0.0, %v5209
        %5211 = vmatmul.bf16.gmra.mxu0 %v5115
        %v5212 = vpop.f32.mrf.mxu0
        %v5213 = vadd.f32 0.0, %v5212
        %v5214 = vpop.f32.mrf.mxu0
        %v5215 = vadd.f32 0.0, %v5214
        %5216 = vmatmul.bf16.gmra.mxu0 %v5116
        %v5217 = vpop.f32.mrf.mxu0
        %v5218 = vadd.f32 0.0, %v5217
        %v5219 = vpop.f32.mrf.mxu0
        %v5220 = vadd.f32 0.0, %v5219
        %5221 = vmatmul.bf16.gmra.mxu0 %v5117
        %v5222 = vpop.f32.mrf.mxu0
        %v5223 = vadd.f32 0.0, %v5222
        %v5224 = vpop.f32.mrf.mxu0
        %v5225 = vadd.f32 0.0, %v5224
        %5226 = vdwg.mxu0
        %5227 = vmatpush.bf16.msra.mxu0 %v5181
        %5228 = vmatpush.bf16.msra.mxu0 %v5179
        %5229 = vmatpush.bf16.msra.mxu0 %v5177
        %5230 = vmatpush.bf16.msra.mxu0 %v5175
        %5231 = vmatpush.bf16.msra.mxu0 %v5173
        %5232 = vmatpush.bf16.msra.mxu0 %v5171
        %5233 = vmatpush.bf16.msra.mxu0 %v5169
        %5234 = vmatpush.bf16.msra.mxu0 %v5167
        %5235 = vmatmul.bf16.gmra.mxu0 %v5114
        %v5236 = vpop.f32.mrf.mxu0
        %v5237 = vadd.f32 0.0, %v5236
        %v5238 = vpop.f32.mrf.mxu0
        %v5239 = vadd.f32 0.0, %v5238
        %5240 = vmatmul.bf16.gmra.mxu0 %v5115
        %v5241 = vpop.f32.mrf.mxu0
        %v5242 = vadd.f32 0.0, %v5241
        %v5243 = vpop.f32.mrf.mxu0
        %v5244 = vadd.f32 0.0, %v5243
        %5245 = vmatmul.bf16.gmra.mxu0 %v5116
        %v5246 = vpop.f32.mrf.mxu0
        %v5247 = vadd.f32 0.0, %v5246
        %v5248 = vpop.f32.mrf.mxu0
        %v5249 = vadd.f32 0.0, %v5248
        %5250 = vmatmul.bf16.gmra.mxu0 %v5117
        %v5251 = vpop.f32.mrf.mxu0
        %v5252 = vadd.f32 0.0, %v5251
        %v5253 = vpop.f32.mrf.mxu0
        %v5254 = vadd.f32 0.0, %v5253
        %5255 = vdwg.mxu0
        %v5256 = vadd.f32 %v5057, %v5208
        %v5257 = vadd.f32 %v5058, %v5237
        %v5258 = vadd.f32 %v5059, %v5210
        %v5259 = vadd.f32 %v5060, %v5239
        %v5260 = vadd.f32 %v5061, %v5213
        %v5261 = vadd.f32 %v5062, %v5242
        %v5262 = vadd.f32 %v5063, %v5215
        %v5263 = vadd.f32 %v5064, %v5244
        %v5264 = vadd.f32 %v5065, %v5218
        %v5265 = vadd.f32 %v5066, %v5247
        %v5266 = vadd.f32 %v5067, %v5220
        %v5267 = vadd.f32 %v5068, %v5249
        %v5268 = vadd.f32 %v5069, %v5223
        %v5269 = vadd.f32 %v5070, %v5252
        %v5270 = vadd.f32 %v5071, %v5225
        %v5271 = vadd.f32 %v5072, %v5254
        %v5272 = vmul.f32 %v5257, 0.5
        %v5273 = vmul.f32 %v5259, 0.5
        %v5274 = vmul.f32 %v5261, 0.5
        %v5275 = vmul.f32 %v5263, 0.5
        %v5276 = vmul.f32 %v5265, 0.5
        %v5277 = vmul.f32 %v5267, 0.5
        %v5278 = vmul.f32 %v5269, 0.5
        %v5279 = vmul.f32 %v5271, 0.5
        %v5280 = vtanh.pop %v5272
        %v5281 = vtanh.pop %v5273
        %v5282 = vtanh.pop %v5274
        %v5283 = vtanh.pop %v5275
        %v5284 = vtanh.pop %v5276
        %v5285 = vtanh.pop %v5277
        %v5286 = vtanh.pop %v5278
        %v5287 = vtanh.pop %v5279
        %v5288 = vadd.f32 %v5280, 1.0
        %v5289 = vadd.f32 %v5281, 1.0
        %v5290 = vadd.f32 %v5282, 1.0
        %v5291 = vadd.f32 %v5283, 1.0
        %v5292 = vadd.f32 %v5284, 1.0
        %v5293 = vadd.f32 %v5285, 1.0
        %v5294 = vadd.f32 %v5286, 1.0
        %v5295 = vadd.f32 %v5287, 1.0
        %v5296 = vmul.f32 %v5288, 0.5
        %v5297 = vmul.f32 %v5289, 0.5
        %v5298 = vmul.f32 %v5290, 0.5
        %v5299 = vmul.f32 %v5291, 0.5
        %v5300 = vmul.f32 %v5292, 0.5
        %v5301 = vmul.f32 %v5293, 0.5
        %v5302 = vmul.f32 %v5294, 0.5
        %v5303 = vmul.f32 %v5295, 0.5
        %v5304 = vtanh.pop %v5256
        %v5305 = vtanh.pop %v5258
        %v5306 = vtanh.pop %v5260
        %v5307 = vtanh.pop %v5262
        %v5308 = vtanh.pop %v5264
        %v5309 = vtanh.pop %v5266
        %v5310 = vtanh.pop %v5268
        %v5311 = vtanh.pop %v5270
        %v5312 = vmul.f32 %v5304, %v5296
        %v5313 = vmul.f32 %v5305, %v5297
        %v5314 = vmul.f32 %v5306, %v5298
        %v5315 = vmul.f32 %v5307, %v5299
        %v5316 = vmul.f32 %v5308, %v5300
        %v5317 = vmul.f32 %v5309, %v5301
        %v5318 = vmul.f32 %v5310, %v5302
        %v5319 = vmul.f32 %v5311, %v5303
        %s5320 = scalar_lea.vmem [#allocation13], 640
        %v5321 = vld [vmem:[%s5320] sm:$0xff]
        %v5322 = vld [vmem:[%s5320 + $0x8] sm:$0xff]
        %v5323 = vld [vmem:[%s5320 + $0x10] sm:$0xff]
        %v5324 = vld [vmem:[%s5320 + $0x18] sm:$0xff]
        %v5325 = vld [vmem:[%s5320 + $0x20] sm:$0xff]
        %v5326 = vld [vmem:[%s5320 + $0x28] sm:$0xff]
        %v5327 = vld [vmem:[%s5320 + $0x30] sm:$0xff]
        %v5328 = vld [vmem:[%s5320 + $0x38] sm:$0xff]
        %v5329 = vld [vmem:[%s5320 + $0x40] sm:$0xff]
        %v5330 = vld [vmem:[%s5320 + $0x48] sm:$0xff]
        %v5331 = vld [vmem:[%s5320 + $0x50] sm:$0xff]
        %v5332 = vld [vmem:[%s5320 + $0x58] sm:$0xff]
        %v5333 = vld [vmem:[%s5320 + $0x60] sm:$0xff]
        %v5334 = vld [vmem:[%s5320 + $0x68] sm:$0xff]
        %v5335 = vld [vmem:[%s5320 + $0x70] sm:$0xff]
        %v5336 = vld [vmem:[%s5320 + $0x78] sm:$0xff]
        %v5337 = vpack.c.bf16 %v5313, %v5312
        %v5338 = vpack.c.bf16 %v5315, %v5314
        %v5339 = vpack.c.bf16 %v5317, %v5316
        %v5340 = vpack.c.bf16 %v5319, %v5318
        %s5341 = scalar_lea.vmem [#allocation14], 10
        %v5342 = vld [vmem:[%s5341] sm:$0x3]
        %v5344 = vperm.slane %v5342, 1
        %v5362 = vunpack.c.h.b16 %v5321
        %v5363 = vunpack.c.h.b16 %v5322
        %v5364 = vunpack.c.h.b16 %v5323
        %v5365 = vunpack.c.h.b16 %v5324
        %v5366 = vunpack.c.h.b16 %v5325
        %v5367 = vunpack.c.h.b16 %v5326
        %v5368 = vunpack.c.h.b16 %v5327
        %v5369 = vunpack.c.h.b16 %v5328
        %v5370 = vunpack.c.h.b16 %v5329
        %v5371 = vunpack.c.h.b16 %v5330
        %v5372 = vunpack.c.h.b16 %v5331
        %v5373 = vunpack.c.h.b16 %v5332
        %v5374 = vunpack.c.h.b16 %v5333
        %v5375 = vunpack.c.h.b16 %v5334
        %v5376 = vunpack.c.h.b16 %v5335
        %v5377 = vunpack.c.h.b16 %v5336
        %v5378 = vpack.c.b16 %v5363, %v5362
        %v5379 = vpack.c.b16 %v5365, %v5364
        %v5380 = vpack.c.b16 %v5367, %v5366
        %v5381 = vpack.c.b16 %v5369, %v5368
        %v5382 = vpack.c.b16 %v5371, %v5370
        %v5383 = vpack.c.b16 %v5373, %v5372
        %v5384 = vpack.c.b16 %v5375, %v5374
        %v5385 = vpack.c.b16 %v5377, %v5376
        %5394 = vmatpush.bf16.msra.mxu0 %v5385
        %5395 = vmatpush.bf16.msra.mxu0 %v5384
        %5396 = vmatpush.bf16.msra.mxu0 %v5383
        %5397 = vmatpush.bf16.msra.mxu0 %v5382
        %5398 = vmatpush.bf16.msra.mxu0 %v5381
        %5399 = vmatpush.bf16.msra.mxu0 %v5380
        %5400 = vmatpush.bf16.msra.mxu0 %v5379
        %5401 = vmatpush.bf16.msra.mxu0 %v5378
        %5402 = vmatmul.bf16.gmra.mxu0 %v5337
        %v5403 = vpop.f32.mrf.mxu0
        %v5404 = vadd.f32 %v5344, %v5403
        %v5405 = vpop.f32.mrf.mxu0
        %v5406 = vadd.f32 %v5344, %v5405
        %5407 = vmatmul.bf16.gmra.mxu0 %v5338
        %v5408 = vpop.f32.mrf.mxu0
        %v5409 = vadd.f32 %v5344, %v5408
        %v5410 = vpop.f32.mrf.mxu0
        %v5411 = vadd.f32 %v5344, %v5410
        %5412 = vmatmul.bf16.gmra.mxu0 %v5339
        %v5413 = vpop.f32.mrf.mxu0
        %v5414 = vadd.f32 %v5344, %v5413
        %v5415 = vpop.f32.mrf.mxu0
        %v5416 = vadd.f32 %v5344, %v5415
        %5417 = vmatmul.bf16.gmra.mxu0 %v5340
        %v5418 = vpop.f32.mrf.mxu0
        %v5419 = vadd.f32 %v5344, %v5418
        %v5420 = vpop.f32.mrf.mxu0
        %v5421 = vadd.f32 %v5344, %v5420
        %5422 = vdwg.mxu0
        %v5423 = vadd.f32 %v4764, %v5404
        %v5424 = vadd.f32 %v4765, %v5406
        %v5425 = vadd.f32 %v4766, %v5409
        %v5426 = vadd.f32 %v4767, %v5411
        %v5427 = vadd.f32 %v4768, %v5414
        %v5428 = vadd.f32 %v4769, %v5416
        %v5429 = vadd.f32 %v4770, %v5419
        %v5430 = vadd.f32 %v4771, %v5421
        %v5431 = vld [vmem:[#allocation16] sm:$0xf]
        %v5432 = vld [vmem:[#allocation16 + $0x4] sm:$0xf]
        %v5433 = vld [vmem:[#allocation16 + $0x8] sm:$0xf]
        %v5434 = vld [vmem:[#allocation16 + $0xc] sm:$0xf]
        %v5435 = vld [vmem:[#allocation16 + $0x10] sm:$0xf]
        %v5436 = vld [vmem:[#allocation16 + $0x14] sm:$0xf]
        %v5437 = vld [vmem:[#allocation16 + $0x18] sm:$0xf]
        %v5438 = vld [vmem:[#allocation16 + $0x1c] sm:$0xf]
        %v5439 = vld [vmem:[#allocation16 + $0x20] sm:$0xf]
        %v5440 = vld [vmem:[#allocation16 + $0x24] sm:$0xf]
        %v5441 = vld [vmem:[#allocation16 + $0x28] sm:$0xf]
        %v5442 = vld [vmem:[#allocation16 + $0x2c] sm:$0xf]
        %v5443 = vld [vmem:[#allocation16 + $0x30] sm:$0xf]
        %v5444 = vld [vmem:[#allocation16 + $0x34] sm:$0xf]
        %v5445 = vld [vmem:[#allocation16 + $0x38] sm:$0xf]
        %v5446 = vld [vmem:[#allocation16 + $0x3c] sm:$0xf]
        %v5447 = vpack.c.bf16 %v5424, %v5423
        %v5448 = vpack.c.bf16 %v5426, %v5425
        %v5449 = vpack.c.bf16 %v5428, %v5427
        %v5450 = vpack.c.bf16 %v5430, %v5429
        %v5451 = vld [vmem:[%s10] sm:$0x1]
        %v5453 = vperm.slane %v5451, 0
        %v5471 = vunpack.c.l.b16 %v5431
        %v5472 = vunpack.c.l.b16 %v5432
        %v5473 = vunpack.c.l.b16 %v5433
        %v5474 = vunpack.c.l.b16 %v5434
        %v5475 = vunpack.c.l.b16 %v5435
        %v5476 = vunpack.c.l.b16 %v5436
        %v5477 = vunpack.c.l.b16 %v5437
        %v5478 = vunpack.c.l.b16 %v5438
        %v5479 = vunpack.c.l.b16 %v5439
        %v5480 = vunpack.c.l.b16 %v5440
        %v5481 = vunpack.c.l.b16 %v5441
        %v5482 = vunpack.c.l.b16 %v5442
        %v5483 = vunpack.c.l.b16 %v5443
        %v5484 = vunpack.c.l.b16 %v5444
        %v5485 = vunpack.c.l.b16 %v5445
        %v5486 = vunpack.c.l.b16 %v5446
        %v5487 = vpack.c.b16 %v5472, %v5471
        %v5488 = vpack.c.b16 %v5474, %v5473
        %v5489 = vpack.c.b16 %v5476, %v5475
        %v5490 = vpack.c.b16 %v5478, %v5477
        %v5491 = vpack.c.b16 %v5480, %v5479
        %v5492 = vpack.c.b16 %v5482, %v5481
        %v5493 = vpack.c.b16 %v5484, %v5483
        %v5494 = vpack.c.b16 %v5486, %v5485
        %5503 = vmatpush.bf16.msra.mxu0 %v5494
        %5504 = vmatpush.bf16.msra.mxu0 %v5493
        %5505 = vmatpush.bf16.msra.mxu0 %v5492
        %5506 = vmatpush.bf16.msra.mxu0 %v5491
        %5507 = vmatpush.bf16.msra.mxu0 %v5490
        %5508 = vmatpush.bf16.msra.mxu0 %v5489
        %5509 = vmatpush.bf16.msra.mxu0 %v5488
        %5510 = vmatpush.bf16.msra.mxu0 %v5487
        %5511 = vmatmul.bf16.gmra.mxu0 %v5447
        %v5512 = vpop.f32.mrf.mxu0
        %v5513 = vadd.f32 %v5453, %v5512
        %v5514 = vpop.f32.mrf.mxu0
        %v5515 = vadd.f32 %v5453, %v5514
        %5516 = vmatmul.bf16.gmra.mxu0 %v5448
        %v5517 = vpop.f32.mrf.mxu0
        %v5518 = vadd.f32 %v5453, %v5517
        %v5519 = vpop.f32.mrf.mxu0
        %v5520 = vadd.f32 %v5453, %v5519
        %5521 = vmatmul.bf16.gmra.mxu0 %v5449
        %v5522 = vpop.f32.mrf.mxu0
        %v5523 = vadd.f32 %v5453, %v5522
        %v5524 = vpop.f32.mrf.mxu0
        %v5525 = vadd.f32 %v5453, %v5524
        %5526 = vmatmul.bf16.gmra.mxu0 %v5450
        %v5527 = vpop.f32.mrf.mxu0
        %v5528 = vadd.f32 %v5453, %v5527
        %v5529 = vpop.f32.mrf.mxu0
        %v5530 = vadd.f32 %v5453, %v5529
        %5531 = vdwg.mxu0
        %v5532 = vmax.f32 %v5513, 0.0
        %v5533 = vmax.f32 %v5515, 0.0
        %v5534 = vmax.f32 %v5518, 0.0
        %v5535 = vmax.f32 %v5520, 0.0
        %v5536 = vmax.f32 %v5523, 0.0
        %v5537 = vmax.f32 %v5525, 0.0
        %v5538 = vmax.f32 %v5528, 0.0
        %v5539 = vmax.f32 %v5530, 0.0
        %v5540 = vld [vmem:[#allocation17] sm:$0xff]
        %v5541 = vld [vmem:[#allocation17 + $0x8] sm:$0xff]
        %v5542 = vld [vmem:[#allocation17 + $0x10] sm:$0xff]
        %v5543 = vld [vmem:[#allocation17 + $0x18] sm:$0xff]
        %v5544 = vld [vmem:[#allocation17 + $0x20] sm:$0xff]
        %v5545 = vld [vmem:[#allocation17 + $0x28] sm:$0xff]
        %v5546 = vld [vmem:[#allocation17 + $0x30] sm:$0xff]
        %v5547 = vld [vmem:[#allocation17 + $0x38] sm:$0xff]
        %v5548 = vld [vmem:[#allocation17 + $0x40] sm:$0xff]
        %v5549 = vld [vmem:[#allocation17 + $0x48] sm:$0xff]
        %v5550 = vld [vmem:[#allocation17 + $0x50] sm:$0xff]
        %v5551 = vld [vmem:[#allocation17 + $0x58] sm:$0xff]
        %v5552 = vld [vmem:[#allocation17 + $0x60] sm:$0xff]
        %v5553 = vld [vmem:[#allocation17 + $0x68] sm:$0xff]
        %v5554 = vld [vmem:[#allocation17 + $0x70] sm:$0xff]
        %v5555 = vld [vmem:[#allocation17 + $0x78] sm:$0xff]
        %v5556 = vpack.c.bf16 %v5533, %v5532
        %v5557 = vpack.c.bf16 %v5535, %v5534
        %v5558 = vpack.c.bf16 %v5537, %v5536
        %v5559 = vpack.c.bf16 %v5539, %v5538
        %v5560 = vld [vmem:[%s12] sm:$0x3]
        %v5562 = vperm.slane %v5560, 0
        %v5563 = vperm.slane %v5560, 1
        %v5582 = vunpack.c.l.b16 %v5540
        %v5583 = vunpack.c.h.b16 %v5540
        %v5584 = vunpack.c.l.b16 %v5541
        %v5585 = vunpack.c.h.b16 %v5541
        %v5586 = vunpack.c.l.b16 %v5542
        %v5587 = vunpack.c.h.b16 %v5542
        %v5588 = vunpack.c.l.b16 %v5543
        %v5589 = vunpack.c.h.b16 %v5543
        %v5590 = vunpack.c.l.b16 %v5544
        %v5591 = vunpack.c.h.b16 %v5544
        %v5592 = vunpack.c.l.b16 %v5545
        %v5593 = vunpack.c.h.b16 %v5545
        %v5594 = vunpack.c.l.b16 %v5546
        %v5595 = vunpack.c.h.b16 %v5546
        %v5596 = vunpack.c.l.b16 %v5547
        %v5597 = vunpack.c.h.b16 %v5547
        %v5598 = vunpack.c.l.b16 %v5548
        %v5599 = vunpack.c.h.b16 %v5548
        %v5600 = vunpack.c.l.b16 %v5549
        %v5601 = vunpack.c.h.b16 %v5549
        %v5602 = vunpack.c.l.b16 %v5550
        %v5603 = vunpack.c.h.b16 %v5550
        %v5604 = vunpack.c.l.b16 %v5551
        %v5605 = vunpack.c.h.b16 %v5551
        %v5606 = vunpack.c.l.b16 %v5552
        %v5607 = vunpack.c.h.b16 %v5552
        %v5608 = vunpack.c.l.b16 %v5553
        %v5609 = vunpack.c.h.b16 %v5553
        %v5610 = vunpack.c.l.b16 %v5554
        %v5611 = vunpack.c.h.b16 %v5554
        %v5612 = vunpack.c.l.b16 %v5555
        %v5613 = vunpack.c.h.b16 %v5555
        %v5614 = vpack.c.b16 %v5584, %v5582
        %v5615 = vpack.c.b16 %v5585, %v5583
        %v5616 = vpack.c.b16 %v5588, %v5586
        %v5617 = vpack.c.b16 %v5589, %v5587
        %v5618 = vpack.c.b16 %v5592, %v5590
        %v5619 = vpack.c.b16 %v5593, %v5591
        %v5620 = vpack.c.b16 %v5596, %v5594
        %v5621 = vpack.c.b16 %v5597, %v5595
        %v5622 = vpack.c.b16 %v5600, %v5598
        %v5623 = vpack.c.b16 %v5601, %v5599
        %v5624 = vpack.c.b16 %v5604, %v5602
        %v5625 = vpack.c.b16 %v5605, %v5603
        %v5626 = vpack.c.b16 %v5608, %v5606
        %v5627 = vpack.c.b16 %v5609, %v5607
        %v5628 = vpack.c.b16 %v5612, %v5610
        %v5629 = vpack.c.b16 %v5613, %v5611
        %5646 = vmatpush.bf16.msra.mxu0 %v5628
        %5647 = vmatpush.bf16.msra.mxu0 %v5626
        %5648 = vmatpush.bf16.msra.mxu0 %v5624
        %5649 = vmatpush.bf16.msra.mxu0 %v5622
        %5650 = vmatpush.bf16.msra.mxu0 %v5620
        %5651 = vmatpush.bf16.msra.mxu0 %v5618
        %5652 = vmatpush.bf16.msra.mxu0 %v5616
        %5653 = vmatpush.bf16.msra.mxu0 %v5614
        %5654 = vmatmul.bf16.gmra.mxu0 %v5556
        %v5655 = vpop.f32.mrf.mxu0
        %v5656 = vadd.f32 %v5562, %v5655
        %v5657 = vpop.f32.mrf.mxu0
        %v5658 = vadd.f32 %v5562, %v5657
        %5659 = vmatmul.bf16.gmra.mxu0 %v5557
        %v5660 = vpop.f32.mrf.mxu0
        %v5661 = vadd.f32 %v5562, %v5660
        %v5662 = vpop.f32.mrf.mxu0
        %v5663 = vadd.f32 %v5562, %v5662
        %5664 = vmatmul.bf16.gmra.mxu0 %v5558
        %v5665 = vpop.f32.mrf.mxu0
        %v5666 = vadd.f32 %v5562, %v5665
        %v5667 = vpop.f32.mrf.mxu0
        %v5668 = vadd.f32 %v5562, %v5667
        %5669 = vmatmul.bf16.gmra.mxu0 %v5559
        %v5670 = vpop.f32.mrf.mxu0
        %v5671 = vadd.f32 %v5562, %v5670
        %v5672 = vpop.f32.mrf.mxu0
        %v5673 = vadd.f32 %v5562, %v5672
        %5674 = vdwg.mxu0
        %5675 = vmatpush.bf16.msra.mxu0 %v5629
        %5676 = vmatpush.bf16.msra.mxu0 %v5627
        %5677 = vmatpush.bf16.msra.mxu0 %v5625
        %5678 = vmatpush.bf16.msra.mxu0 %v5623
        %5679 = vmatpush.bf16.msra.mxu0 %v5621
        %5680 = vmatpush.bf16.msra.mxu0 %v5619
        %5681 = vmatpush.bf16.msra.mxu0 %v5617
        %5682 = vmatpush.bf16.msra.mxu0 %v5615
        %5683 = vmatmul.bf16.gmra.mxu0 %v5556
        %v5684 = vpop.f32.mrf.mxu0
        %v5685 = vadd.f32 %v5563, %v5684
        %v5686 = vpop.f32.mrf.mxu0
        %v5687 = vadd.f32 %v5563, %v5686
        %5688 = vmatmul.bf16.gmra.mxu0 %v5557
        %v5689 = vpop.f32.mrf.mxu0
        %v5690 = vadd.f32 %v5563, %v5689
        %v5691 = vpop.f32.mrf.mxu0
        %v5692 = vadd.f32 %v5563, %v5691
        %5693 = vmatmul.bf16.gmra.mxu0 %v5558
        %v5694 = vpop.f32.mrf.mxu0
        %v5695 = vadd.f32 %v5563, %v5694
        %v5696 = vpop.f32.mrf.mxu0
        %v5697 = vadd.f32 %v5563, %v5696
        %5698 = vmatmul.bf16.gmra.mxu0 %v5559
        %v5699 = vpop.f32.mrf.mxu0
        %v5700 = vadd.f32 %v5563, %v5699
        %v5701 = vpop.f32.mrf.mxu0
        %v5702 = vadd.f32 %v5563, %v5701
        %5703 = vdwg.mxu0
        %5704 = vst [vmem:[%s634] sm:$0xff] %v5656
        %5705 = vst [vmem:[%s634 + $0x8] sm:$0xff] %v5685
        %5706 = vst [vmem:[%s634 + $0x10] sm:$0xff] %v5658
        %5707 = vst [vmem:[%s634 + $0x18] sm:$0xff] %v5687
        %5708 = vst [vmem:[%s634 + $0x20] sm:$0xff] %v5661
        %5709 = vst [vmem:[%s634 + $0x28] sm:$0xff] %v5690
        %5710 = vst [vmem:[%s634 + $0x30] sm:$0xff] %v5663
        %5711 = vst [vmem:[%s634 + $0x38] sm:$0xff] %v5692
        %5712 = vst [vmem:[%s634 + $0x40] sm:$0xff] %v5666
        %5713 = vst [vmem:[%s634 + $0x48] sm:$0xff] %v5695
        %5714 = vst [vmem:[%s634 + $0x50] sm:$0xff] %v5668
        %5715 = vst [vmem:[%s634 + $0x58] sm:$0xff] %v5697
        %5716 = vst [vmem:[%s634 + $0x60] sm:$0xff] %v5671
        %5717 = vst [vmem:[%s634 + $0x68] sm:$0xff] %v5700
        %5718 = vst [vmem:[%s634 + $0x70] sm:$0xff] %v5673
        %5719 = vst [vmem:[%s634 + $0x78] sm:$0xff] %v5702
        %s5720 = sand.u32 %s328, 1
        %s5721 = scalar_lea.sflag [#allocation4], %s5720
        %s5722 = sand.u32 %s328, 1
        %s5723 = smul.addr %s5722, 128
        %s5724 = scalar_lea.vmem [#allocation19], %s5723
        // Predicated region
        $region113: #{tpu_custom_call.1} parent=71 // pred_check
          %p5725 = pneg %p338
        $region114: #{tpu_custom_call.1} parent=71 // pred_check_branch
          %5727 = sbr.rel (%p5725) target = $region116
        $region115: #{tpu_custom_call.1} parent=71 // pred_region
          %5729 = vsyncadd %s5721, 0
          %s5730 = smul.addr %s37, 16
          %s5731 = smul.addr %s5730, 8
          %s5732 = scalar_lea.hbm %s13, %s5731
          %s5733 = sshll.u32 %s5724, 4
          %s5734 = int_to_ptr.vmem [resolvable:$true] %s5733
          %s5735 = sshll.u32 %s5732, 4
          %s5736 = int_to_ptr.hbm [resolvable:$true] %s5735
          %5741 = dma.vmem_to_hbm [thread:$0]  %s5734, 2048, %s5736, %s5721, 256, 256, 16
        $region116: #{tpu_custom_call.1} parent=71 // pred_fallthru
          _
      $region72: #{tpu_custom_call.1} parent=5 // pred_fallthru
        _
      %p5742 = scmp.le.s32.totalorder 2, %s32
      // Predicated region
      $region117: #{tpu_custom_call.1} parent=5 // pred_check
        %p5743 = pneg %p5742
      $region118: #{tpu_custom_call.1} parent=5 // pred_check_branch
        %5745 = sbr.rel (%p5743) target = $region120
      $region119: #{tpu_custom_call.1} parent=5 // pred_region
        %s5746 = ssub.s32 %s32, 2
        // Predicated region
        $region121: #{tpu_custom_call.1} parent=119 // pred_check
          %p5747 = pneg %p344
        $region122: #{tpu_custom_call.1} parent=119 // pred_check_branch
          %5749 = sbr.rel (%p5747) target = $region124
        $region123: #{tpu_custom_call.1} parent=119 // pred_region
          %s5750 = sand.u32 %s329, 1
          %s5751 = scalar_lea.sflag [#allocation4], %s5750
          %s5752 = sand.u32 %s329, 1
          %s5753 = smul.addr %s5752, 128
          %s5754 = scalar_lea.vmem [#allocation19], %s5753
          %5756 = dma.done %s5751, 2048
        $region124: #{tpu_custom_call.1} parent=119 // pred_fallthru
          _
      $region120: #{tpu_custom_call.1} parent=5 // pred_fallthru
        _
    $region6: #{tpu_custom_call.1} parent=1 // loop_footer
      %s36 = sadd.s32 1, %s32
    $region7: #{tpu_custom_call.1} parent=1 // loop_footer_branch
      %31 = sbr.rel target = $region3
    $region8: #{tpu_custom_call.1} parent=1 // loop_exit
      _
    %5757 = vsyncpa [#allocation3], 1
    %s5758 = scalar_lea.sflag [#allocation3], 1
    %5759 = vsyncpa %s5758, 1
    %5760 = vsyncpa [#allocation6], 1
    %s5761 = scalar_lea.sflag [#allocation6], 1
    %5762 = vsyncpa %s5761, 1
    %5763 = vsyncpa [#allocation9], 1
    %5764 = vsyncpa [#allocation12], 1
    %5765 = vsyncpa [#allocation15], 1
    %5766 = vsyncpa [#allocation18], 1
    %5767 = vsyncpa [#allocation4], 1
    %s5768 = scalar_lea.sflag [#allocation4], 1
    %5769 = vsyncpa %s5768, 1

</llo_original>
